<compile_context>
chip_gen: v6e
topology: v6e:2x2x1
jax: 0.10.0
libtpu: 0.0.40
codegen_flags: <defaults>
</compile_context>

<pallas_src>
import functools

import jax
import jax.numpy as jnp
from jax.experimental import pallas as pl
from jax.experimental.pallas import tpu as pltpu


# ----------------------------- in-kernel helpers -----------------------------

def _ln(x, g, b, eps):
    """LayerNorm over the last axis (fp32 math)."""
    m = jnp.mean(x, axis=-1, keepdims=True)
    v = jnp.mean(jnp.square(x - m), axis=-1, keepdims=True)
    return (x - m) * jax.lax.rsqrt(v + eps) * g + b


# ------------------------- fused transformer kernel --------------------------

def _transformer_kernel(x_ref, ln1g, ln1b, wqkv, wo, bo, ln2g, ln2b,
                        w1, b1, w2, b2, fng, fnb, o_ref,
                        state, attn_scr,
                        *, bt, n, heads, dim_head, mlp_chunk, eps):
    """One grid step == one transformer layer for one batch tile (all Bt
    batch elements at once, flattened to (Bt*N, D)).

    grid = (num_batch_tiles, depth); the activation lives in `state` (VMEM)
    across the depth axis; output (+ final LN) written only at the last layer.
    """
    layer = pl.program_id(1)

    @pl.when(layer == 0)
    def _():
        state[...] = x_ref[...].astype(jnp.float32)

    x = state[...]                                           # (Bt*N, D) fp32
    inner = heads * dim_head

    # ---------------- attention sub-block (pre-norm) ----------------
    xn = _ln(x, ln1g[0], ln1b[0], eps).astype(jnp.bfloat16)
    # Single wide QKV matmul for the whole batch tile (Q columns pre-scaled).
    qkv = jnp.dot(xn, wqkv[0], preferred_element_type=jnp.float32)  # (Bt*N, 3*inner)

    # TODO(synk): group 2 (v5e) / 4 (v6e, v7x) heads per MXU pass (head-major
    # qkv layout) to raise MXU utilization when dim_head < 128.
    for b in range(bt):                                      # static unroll
        r0 = b * n
        for h in range(heads):                               # static unroll
            c = h * dim_head
            q_h = qkv[r0:r0 + n, c:c + dim_head].astype(jnp.bfloat16)
            k_h = qkv[r0:r0 + n, inner + c:inner + c + dim_head].astype(jnp.bfloat16)
            v_h = qkv[r0:r0 + n, 2 * inner + c:2 * inner + c + dim_head].astype(jnp.bfloat16)
            s = jax.lax.dot_general(q_h, k_h, (((1,), (1,)), ((), ())),
                                    preferred_element_type=jnp.float32)
            s = s - jnp.max(s, axis=-1, keepdims=True)
            p = jnp.exp(s)
            p = p * pl.reciprocal(jnp.sum(p, axis=-1, keepdims=True), approx=True)
            attn_scr[r0:r0 + n, c:c + dim_head] = jnp.dot(
                p.astype(jnp.bfloat16), v_h, preferred_element_type=jnp.float32)

    attn = jnp.dot(attn_scr[...].astype(jnp.bfloat16), wo[0],
                   preferred_element_type=jnp.float32) + bo[0]
    x = x + attn

    # ---------------- feed-forward sub-block (pre-norm) ----------------
    xn = _ln(x, ln2g[0], ln2b[0], eps).astype(jnp.bfloat16)
    mlp_dim = w1.shape[2]
    # TODO(synk): PyTorch nn.GELU() default is exact erf; tanh approximation
    # is used for reliable Mosaic/EUP lowering.
    ffn = None
    for c0 in range(0, mlp_dim, mlp_chunk):                  # static chunk loop
        c1 = min(c0 + mlp_chunk, mlp_dim)
        h1c = jax.nn.gelu(
            jnp.dot(xn, w1[0, :, c0:c1], preferred_element_type=jnp.float32)
            + b1[0, :, c0:c1],
            approximate=True)
        part = jnp.dot(h1c.astype(jnp.bfloat16), w2[0, c0:c1, :],
                       preferred_element_type=jnp.float32)
        ffn = part if ffn is None else ffn + part
    x = x + ffn + b2[0]
    state[...] = x

    @pl.when(layer == pl.num_programs(1) - 1)
    def _():
        o_ref[...] = _ln(x, fng[...], fnb[...], eps).astype(o_ref.dtype)


def pallas_transformer(x, p, heads, dim_head, eps=1e-5, batch_tile=None,
                       mlp_chunk=512, vmem_limit_bytes=32 * 1024 * 1024):
    """x: (B, N, D) -> (B, N, D). Whole transformer in one pallas_call.

    Weights stream once per layer per *batch tile*; with batch_tile=B (default)
    they stream exactly once per layer.  For batch_tile < B, (batch_tile * N)
    must be a multiple of 8 and D a multiple of 128 (or equal to full extents).
    """
    B, N, D = x.shape
    depth = p["w_qkv"].shape[0]
    bt = B if batch_tile is None else batch_tile
    assert B % bt == 0
    x2 = x.reshape(B * N, D)

    layer_keys = ["ln1_g", "ln1_b", "w_qkv", "w_o", "b_o",
                  "ln2_g", "ln2_b", "w1", "b1", "w2", "b2"]

    in_specs = [pl.BlockSpec((bt * N, D), lambda g, d: (g, 0))]
    for k in layer_keys:                                     # per-layer stacked params
        arr = p[k]
        in_specs.append(pl.BlockSpec((1,) + arr.shape[1:], lambda g, d: (d, 0, 0)))
    in_specs += [pl.BlockSpec((1, D), lambda g, d: (0, 0)),  # final norm gamma
                 pl.BlockSpec((1, D), lambda g, d: (0, 0))]  # final norm beta

    out = pl.pallas_call(
        functools.partial(_transformer_kernel, bt=bt, n=N, heads=heads,
                          dim_head=dim_head, mlp_chunk=mlp_chunk, eps=eps),
        out_shape=jax.ShapeDtypeStruct((B * N, D), x.dtype),
        grid=(B // bt, depth),
        in_specs=in_specs,
        out_specs=pl.BlockSpec((bt * N, D), lambda g, d: (g, 0)),
        scratch_shapes=[pltpu.VMEM((bt * N, D), jnp.float32),
                        pltpu.VMEM((bt * N, heads * dim_head), jnp.float32)],
        compiler_params=pltpu.CompilerParams(
            # Batch-tile axis kept "arbitrary": on v7x a "parallel" split would
            # double the dominant per-layer weight HBM stream across the 2 TCs.
            # TODO(synk): on v7x prefer core-splitting heads / N instead.
            dimension_semantics=("arbitrary", "arbitrary"),
            # Above v5e's 16 MiB scoped default; re-derive for ViT-Base-scale
            # weights and for v7x's 64 MiB physical VMEM.
            vmem_limit_bytes=vmem_limit_bytes),
    )(x2, *[p[k] for k in layer_keys], p["norm_g"], p["norm_b"])
    return out.reshape(B, N, D)


# ----------------------- fused patch-embedding kernel ------------------------

def _patch_embed_kernel(p_ref, g1, b1, w, b, g2, b2, pos, o_ref, *, eps):
    x = p_ref[0].astype(jnp.float32)                        # (Np, pd)
    x = _ln(x, g1[...], b1[...], eps)
    x = jnp.dot(x.astype(jnp.bfloat16), w[...],
                preferred_element_type=jnp.float32) + b[...]
    x = _ln(x, g2[...], b2[...], eps)
    o_ref[0] = (x + pos[...]).astype(o_ref.dtype)


def pallas_patch_embed(patches, g1, b1, w, b, g2, b2, pos, eps=1e-5):
    """patches: (B, Np, pd); pos: (Np, D) (NOT pre-broadcast). -> (B, Np, D)."""
    B, Np, PD = patches.shape
    D = w.shape[1]
    return pl.pallas_call(
        functools.partial(_patch_embed_kernel, eps=eps),
        out_shape=jax.ShapeDtypeStruct((B, Np, D), jnp.float32),
        grid=(B,),
        in_specs=[
            pl.BlockSpec((1, Np, PD), lambda i: (i, 0, 0)),
            pl.BlockSpec((1, PD), lambda i: (0, 0)),
            pl.BlockSpec((1, PD), lambda i: (0, 0)),
            pl.BlockSpec((PD, D), lambda i: (0, 0)),        # weight stays resident
            pl.BlockSpec((1, D), lambda i: (0, 0)),
            pl.BlockSpec((1, D), lambda i: (0, 0)),
            pl.BlockSpec((1, D), lambda i: (0, 0)),
            pl.BlockSpec((Np, D), lambda i: (0, 0)),        # pos table, resident
        ],
        out_specs=pl.BlockSpec((1, Np, D), lambda i: (i, 0, 0)),
        compiler_params=pltpu.CompilerParams(dimension_semantics=("parallel",)),
    )(patches, g1, b1, w, b, g2, b2, pos)


# -------------------- enc_to_dec Linear + pos-emb add kernel -----------------

def _linear_add_kernel(x_ref, w_ref, b_ref, a_ref, o_ref):
    y = jnp.dot(x_ref[0].astype(jnp.bfloat16), w_ref[...],
                preferred_element_type=jnp.float32)
    o_ref[0] = (y + b_ref[...] + a_ref[0]).astype(o_ref.dtype)


def pallas_linear_add(x, w, b, add):
    """x: (B, N, K), add: (B, N, Dout) -> (B, N, Dout)."""
    B, N, K = x.shape
    Dout = w.shape[1]
    return pl.pallas_call(
        _linear_add_kernel,
        out_shape=jax.ShapeDtypeStruct((B, N, Dout), jnp.float32),
        grid=(B,),
        in_specs=[
            pl.BlockSpec((1, N, K), lambda i: (i, 0, 0)),
            pl.BlockSpec((K, Dout), lambda i: (0, 0)),
            pl.BlockSpec((1, Dout), lambda i: (0, 0)),
            pl.BlockSpec((1, N, Dout), lambda i: (i, 0, 0)),
        ],
        out_specs=pl.BlockSpec((1, N, Dout), lambda i: (i, 0, 0)),
        compiler_params=pltpu.CompilerParams(dimension_semantics=("parallel",)),
    )(x, w, b, add)


# ------------------- fused to_pixels Linear + MSE loss kernel ----------------

def _pixels_mse_kernel(x_ref, w_ref, b_ref, t_ref, pred_ref, loss_ref, acc_ref,
                       *, inv_total):
    i = pl.program_id(0)
    pred = jnp.dot(x_ref[0].astype(jnp.bfloat16), w_ref[...],
                   preferred_element_type=jnp.float32) + b_ref[...]
    pred_ref[0] = pred.astype(pred_ref.dtype)
    diff = pred - t_ref[0].astype(jnp.float32)
    blk = jnp.sum(diff * diff)

    @pl.when(i == 0)
    def _():
        acc_ref[0] = blk

    @pl.when(i > 0)
    def _():
        acc_ref[0] = acc_ref[0] + blk

    @pl.when(i == pl.num_programs(0) - 1)
    def _():
        loss_ref[0, 0] = acc_ref[0] * inv_total


def pallas_pixels_mse(x, w, b, target):
    """x: (B, Nm, K), target: (B, Nm, pd) -> (pred (B, Nm, pd), scalar loss)."""
    B, Nm, K = x.shape
    PD = w.shape[1]
    inv_total = 1.0 / float(B * Nm * PD)
    pred, loss = pl.pallas_call(
        functools.partial(_pixels_mse_kernel, inv_total=inv_total),
        out_shape=(jax.ShapeDtypeStruct((B, Nm, PD), jnp.float32),
                   jax.ShapeDtypeStruct((1, 1), jnp.float32)),
        grid=(B,),
        in_specs=[
            pl.BlockSpec((1, Nm, K), lambda i: (i, 0, 0)),
            pl.BlockSpec((K, PD), lambda i: (0, 0)),
            pl.BlockSpec((1, PD), lambda i: (0, 0)),
            pl.BlockSpec((1, Nm, PD), lambda i: (i, 0, 0)),
        ],
        out_specs=(
            pl.BlockSpec((1, Nm, PD), lambda i: (i, 0, 0)),
            pl.BlockSpec(memory_space=pltpu.MemorySpace.SMEM),   # scalar loss
        ),
        scratch_shapes=[pltpu.SMEM((1,), jnp.float32)],          # loss accumulator
        compiler_params=pltpu.CompilerParams(dimension_semantics=("arbitrary",)),
    )(x, w, b, target)
    return pred, loss[0, 0]


# ------------------------------- XLA glue ------------------------------------

def patchify(img, p1, p2):
    # 'b c (h p1) (w p2) -> b (h w) (p1 p2 c)'
    B, C, H, W = img.shape
    x = img.reshape(B, C, H // p1, p1, W // p2, p2)
    x = x.transpose(0, 2, 4, 3, 5, 1)  # b h w p1 p2 c
    return x.reshape(B, (H // p1) * (W // p2), p1 * p2 * C)


# --------------------------- Parameter creation ------------------------------

def init_transformer_params(key, dim, depth, heads, dim_head, mlp_dim):
    inner = heads * dim_head
    k = jax.random.split(key, 4)
    w_qkv = jax.random.normal(k[0], (depth, dim, inner * 3), jnp.float32) * 0.02
    # Fold the attention 1/sqrt(dim_head) scale into the Q columns (qkv has no
    # bias, so this is exact and removes a per-head NxN multiply in-kernel).
    w_qkv = w_qkv.at[:, :, :inner].multiply(dim_head ** -0.5)
    return dict(
        ln1_g=jnp.ones((depth, 1, dim), jnp.float32),
        ln1_b=jnp.zeros((depth, 1, dim), jnp.float32),
        w_qkv=w_qkv.astype(jnp.bfloat16),
        w_o=(jax.random.normal(k[1], (depth, inner, dim), jnp.float32) * 0.02
             ).astype(jnp.bfloat16),
        b_o=jnp.zeros((depth, 1, dim), jnp.float32),
        ln2_g=jnp.ones((depth, 1, dim), jnp.float32),
        ln2_b=jnp.zeros((depth, 1, dim), jnp.float32),
        w1=(jax.random.normal(k[2], (depth, dim, mlp_dim), jnp.float32) * 0.02
            ).astype(jnp.bfloat16),
        b1=jnp.zeros((depth, 1, mlp_dim), jnp.float32),
        w2=(jax.random.normal(k[3], (depth, mlp_dim, dim), jnp.float32) * 0.02
            ).astype(jnp.bfloat16),
        b2=jnp.zeros((depth, 1, dim), jnp.float32),
        norm_g=jnp.ones((1, dim), jnp.float32),
        norm_b=jnp.zeros((1, dim), jnp.float32),
    )


def init_mae_params(key, cfg):
    keys = jax.random.split(key, 8)
    pd = cfg["patch_h"] * cfg["patch_w"] * cfg["channels"]
    Np = cfg["num_patches"]
    ed, dd = cfg["enc_dim"], cfg["dec_dim"]
    return dict(
        # patch_to_emb: LayerNorm(pd), Linear(pd, ed), LayerNorm(ed)
        pe_ln1_g=jnp.ones((1, pd), jnp.float32),
        pe_ln1_b=jnp.zeros((1, pd), jnp.float32),
        pe_w=(jax.random.normal(keys[0], (pd, ed), jnp.float32) * 0.02
              ).astype(jnp.bfloat16),
        pe_b=jnp.zeros((1, ed), jnp.float32),
        pe_ln2_g=jnp.ones((1, ed), jnp.float32),
        pe_ln2_b=jnp.zeros((1, ed), jnp.float32),
        # encoder pos embedding (cls pool => Np + 1 rows)
        pos_embedding=jax.random.normal(keys[1], (1, Np + 1, ed), jnp.float32),
        enc_tf=init_transformer_params(keys[2], ed, cfg["enc_depth"],
                                       cfg["enc_heads"], cfg["enc_dim_head"], ed * 4),
        # enc_to_dec Linear (encoder_dim != decoder_dim)
        e2d_w=(jax.random.normal(keys[3], (ed, dd), jnp.float32) * 0.02
               ).astype(jnp.bfloat16),
        e2d_b=jnp.zeros((1, dd), jnp.float32),
        mask_token=jax.random.normal(keys[4], (dd,), jnp.float32),
        dec_tf=init_transformer_params(keys[5], dd, cfg["dec_depth"],
                                       cfg["dec_heads"], cfg["dec_dim_head"], dd * 4),
        # decoder_pos_emb: nn.Embedding(pos_embedding rows, dec_dim)
        dec_pos_emb=jax.random.normal(keys[6], (Np + 1, dd), jnp.float32),
        # to_pixels Linear(dec_dim, pixel_values_per_patch)
        px_w=(jax.random.normal(keys[7], (dd, pd), jnp.float32) * 0.02
              ).astype(jnp.bfloat16),
        px_b=jnp.zeros((1, pd), jnp.float32),
    )


# ------------------------------- MAE forward ---------------------------------

def mae_forward(params, img, mask_key, cfg):
    B = img.shape[0]
    enc_dim, dec_dim = cfg["enc_dim"], cfg["dec_dim"]

    patches = patchify(img, cfg["patch_h"], cfg["patch_w"])      # (B, Np, pd)
    Np, pd = patches.shape[1], patches.shape[2]

    # fused patch_to_emb (LN -> Linear -> LN) + pos-embedding add (cls pool);
    # pos table passed once, never broadcast to (B, Np, D) in HBM.
    tokens = pallas_patch_embed(
        patches,
        params["pe_ln1_g"], params["pe_ln1_b"],
        params["pe_w"], params["pe_b"],
        params["pe_ln2_g"], params["pe_ln2_b"],
        params["pos_embedding"][0, 1:Np + 1],
    )                                                             # (B, Np, ed)

    # random masking (torch.rand(...).argsort equivalent)
    num_masked = int(cfg["masking_ratio"] * Np)
    num_unmasked = Np - num_masked
    rand = jax.random.uniform(mask_key, (B, Np))
    rand_indices = jnp.argsort(rand, axis=-1)
    masked_indices = rand_indices[:, :num_masked]
    unmasked_indices = rand_indices[:, num_masked:]
    batch_range = jnp.arange(B)[:, None]

    # TODO(synk): the index gather/scatter of tokens stays in XLA; an in-kernel
    # PrefetchScalarGridSpec gather would save a couple more HBM round-trips.
    tokens_u = tokens[batch_range, unmasked_indices]             # (B, Nu, enc_dim)
    masked_patches = patches[batch_range, masked_indices]        # (B, Nm, pd)

    # encoder transformer: one fused pallas_call; whole batch per grid step so
    # per-layer weights stream exactly once per layer.
    encoded = pallas_transformer(tokens_u, params["enc_tf"],
                                 cfg["enc_heads"], cfg["enc_dim_head"])

    # enc_to_dec Linear + decoder pos-embedding add (one fused kernel)
    pos_u = params["dec_pos_emb"][unmasked_indices]              # (B, Nu, dec_dim)
    dec_u = pallas_linear_add(encoded, params["e2d_w"], params["e2d_b"], pos_u)

    mask_toks = params["mask_token"][None, None, :] + params["dec_pos_emb"][masked_indices]

    dtoks = jnp.zeros((B, Np, dec_dim), jnp.float32)
    dtoks = dtoks.at[batch_range, unmasked_indices].set(dec_u)
    dtoks = dtoks.at[batch_range, masked_indices].set(mask_toks)

    # decoder transformer
    decoded = pallas_transformer(dtoks, params["dec_tf"],
                                 cfg["dec_heads"], cfg["dec_dim_head"])

    mask_out = decoded[batch_range, masked_indices]              # (B, Nm, dec_dim)

    # fused to_pixels Linear + MSE (loss accumulated across batch grid steps)
    pred_pixel_values, recon_loss = pallas_pixels_mse(
        mask_out, params["px_w"], params["px_b"], masked_patches)
    return recon_loss, pred_pixel_values, masked_patches, patches, masked_indices


# ----------------------------------- main ------------------------------------

if __name__ == "__main__":
    cfg = dict(
        channels=1, image_h=16, image_w=16, patch_h=4, patch_w=4,
        num_patches=(16 // 4) * (16 // 4),            # 16
        enc_dim=32, enc_depth=1, enc_heads=4, enc_dim_head=8,
        dec_dim=16, dec_depth=1, dec_heads=2, dec_dim_head=8,
        masking_ratio=0.75,
    )

    root = jax.random.PRNGKey(0)
    k_param, k_img, k_mask = jax.random.split(root, 3)

    params = init_mae_params(k_param, cfg)
    img = jax.random.normal(k_img, (2, cfg["channels"], cfg["image_h"], cfg["image_w"]),
                            jnp.float32)

    fwd = jax.jit(functools.partial(mae_forward, cfg=cfg))
    loss, pred, masked_patches, patches, masked_indices = fwd(params, img, k_mask)
    jax.block_until_ready((loss, pred, masked_patches, patches, masked_indices))

    num_masked = int(cfg["masking_ratio"] * cfg["num_patches"])
    patch_dim = cfg["patch_h"] * cfg["patch_w"] * cfg["channels"]
    assert pred.shape == (2, num_masked, patch_dim)
    assert masked_patches.shape == pred.shape
    assert patches.shape == (2, cfg["num_patches"], patch_dim)
    assert loss.shape == ()
    assert bool(jnp.isfinite(loss))

    print("KERNEL_OK")
</pallas_src>

<mosaic_0001>
module attributes {stable_mosaic.version = 11 : i64} {
  func.func @_patch_embed_kernel(%arg0: i32, %arg1: memref<1x16x16xf32, #tpu.memory_space<vmem>>, %arg2: memref<1x16xf32, #tpu.memory_space<vmem>>, %arg3: memref<1x16xf32, #tpu.memory_space<vmem>>, %arg4: memref<16x32xbf16, #tpu.memory_space<vmem>>, %arg5: memref<1x32xf32, #tpu.memory_space<vmem>>, %arg6: memref<1x32xf32, #tpu.memory_space<vmem>>, %arg7: memref<1x32xf32, #tpu.memory_space<vmem>>, %arg8: memref<16x32xf32, #tpu.memory_space<vmem>>, %arg9: memref<1x16x32xf32, #tpu.memory_space<vmem>>) attributes {dimension_semantics = [#tpu.dimension_semantics<parallel>], iteration_bounds = array<i64: 2>, scalar_prefetch = 0 : i64, scratch_operands = 0 : i64, tpu.core_type = #tpu.core_type<tc>, window_params = [{transform_indices = @transform_0, window_bounds = array<i64: 1, 16, 16>}, {pipeline_mode = #tpu.pipeline_mode<synchronous>, transform_indices = @transform_1, window_bounds = array<i64: 1, 16>}, {pipeline_mode = #tpu.pipeline_mode<synchronous>, transform_indices = @transform_2, window_bounds = array<i64: 1, 16>}, {pipeline_mode = #tpu.pipeline_mode<synchronous>, transform_indices = @transform_3, window_bounds = array<i64: 16, 32>}, {pipeline_mode = #tpu.pipeline_mode<synchronous>, transform_indices = @transform_4, window_bounds = array<i64: 1, 32>}, {pipeline_mode = #tpu.pipeline_mode<synchronous>, transform_indices = @transform_5, window_bounds = array<i64: 1, 32>}, {pipeline_mode = #tpu.pipeline_mode<synchronous>, transform_indices = @transform_6, window_bounds = array<i64: 1, 32>}, {pipeline_mode = #tpu.pipeline_mode<synchronous>, transform_indices = @transform_7, window_bounds = array<i64: 16, 32>}, {transform_indices = @transform_8, window_bounds = array<i64: 1, 16, 32>}]} {
    %c0 = arith.constant 0 : index
    %c0_0 = arith.constant 0 : index
    %c0_1 = arith.constant 0 : index
    %0 = vector.load %arg1[%c0, %c0_0, %c0_1] : memref<1x16x16xf32, #tpu.memory_space<vmem>>, vector<1x16x16xf32>
    %1 = vector.shape_cast %0 : vector<1x16x16xf32> to vector<16x16xf32>
    %c0_2 = arith.constant 0 : index
    %c0_3 = arith.constant 0 : index
    %2 = vector.load %arg2[%c0_2, %c0_3] : memref<1x16xf32, #tpu.memory_space<vmem>>, vector<1x16xf32>
    %c0_4 = arith.constant 0 : index
    %c0_5 = arith.constant 0 : index
    %3 = vector.load %arg3[%c0_4, %c0_5] : memref<1x16xf32, #tpu.memory_space<vmem>>, vector<1x16xf32>
    %cst = arith.constant dense<0.000000e+00> : vector<16xf32>
    %4 = vector.multi_reduction <add>, %1, %cst [1] : vector<16x16xf32> to vector<16xf32>
    %5 = vector.shape_cast %4 : vector<16xf32> to vector<16x1xf32>
    %cst_6 = arith.constant 1.600000e+01 : f32
    %6 = vector.broadcast %cst_6 : f32 to vector<16x1xf32>
    %7 = arith.divf %5, %6 : vector<16x1xf32>
    %8 = vector.broadcast %7 : vector<16x1xf32> to vector<16x16xf32>
    %9 = arith.subf %1, %8 : vector<16x16xf32>
    %10 = arith.mulf %9, %9 : vector<16x16xf32>
    %cst_7 = arith.constant dense<0.000000e+00> : vector<16xf32>
    %11 = vector.multi_reduction <add>, %10, %cst_7 [1] : vector<16x16xf32> to vector<16xf32>
    %12 = vector.shape_cast %11 : vector<16xf32> to vector<16x1xf32>
    %cst_8 = arith.constant 1.600000e+01 : f32
    %13 = vector.broadcast %cst_8 : f32 to vector<16x1xf32>
    %14 = arith.divf %12, %13 : vector<16x1xf32>
    %15 = vector.broadcast %7 : vector<16x1xf32> to vector<16x16xf32>
    %16 = arith.subf %1, %15 : vector<16x16xf32>
    %cst_9 = arith.constant 9.99999974E-6 : f32
    %17 = vector.broadcast %cst_9 : f32 to vector<16x1xf32>
    %18 = arith.addf %14, %17 : vector<16x1xf32>
    %19 = math.rsqrt %18 : vector<16x1xf32>
    %20 = vector.broadcast %19 : vector<16x1xf32> to vector<16x16xf32>
    %21 = arith.mulf %16, %20 : vector<16x16xf32>
    %22 = vector.broadcast %2 : vector<1x16xf32> to vector<16x16xf32>
    %23 = arith.mulf %21, %22 : vector<16x16xf32>
    %24 = vector.broadcast %3 : vector<1x16xf32> to vector<16x16xf32>
    %25 = arith.addf %23, %24 : vector<16x16xf32>
    %26 = arith.truncf %25 : vector<16x16xf32> to vector<16x16xbf16>
    %c0_10 = arith.constant 0 : index
    %c0_11 = arith.constant 0 : index
    %27 = vector.load %arg4[%c0_10, %c0_11] : memref<16x32xbf16, #tpu.memory_space<vmem>>, vector<16x32xbf16>
    %cst_12 = arith.constant dense<0.000000e+00> : vector<16x32xf32>
    %28 = tpu.matmul %26, %27, %cst_12 {dimension_numbers = #tpu.dot_dimension_numbers<[1], [0], [0], [1], [0, 0, 1, 1], [], []>} : vector<16x16xbf16>, vector<16x32xbf16>, vector<16x32xf32> -> vector<16x32xf32>
    %c0_13 = arith.constant 0 : index
    %c0_14 = arith.constant 0 : index
    %29 = vector.load %arg5[%c0_13, %c0_14] : memref<1x32xf32, #tpu.memory_space<vmem>>, vector<1x32xf32>
    %30 = vector.broadcast %29 : vector<1x32xf32> to vector<16x32xf32>
    %31 = arith.addf %28, %30 : vector<16x32xf32>
    %c0_15 = arith.constant 0 : index
    %c0_16 = arith.constant 0 : index
    %32 = vector.load %arg6[%c0_15, %c0_16] : memref<1x32xf32, #tpu.memory_space<vmem>>, vector<1x32xf32>
    %c0_17 = arith.constant 0 : index
    %c0_18 = arith.constant 0 : index
    %33 = vector.load %arg7[%c0_17, %c0_18] : memref<1x32xf32, #tpu.memory_space<vmem>>, vector<1x32xf32>
    %cst_19 = arith.constant dense<0.000000e+00> : vector<16xf32>
    %34 = vector.multi_reduction <add>, %31, %cst_19 [1] : vector<16x32xf32> to vector<16xf32>
    %35 = vector.shape_cast %34 : vector<16xf32> to vector<16x1xf32>
    %cst_20 = arith.constant 3.200000e+01 : f32
    %36 = vector.broadcast %cst_20 : f32 to vector<16x1xf32>
    %37 = arith.divf %35, %36 : vector<16x1xf32>
    %38 = vector.broadcast %37 : vector<16x1xf32> to vector<16x32xf32>
    %39 = arith.subf %31, %38 : vector<16x32xf32>
    %40 = arith.mulf %39, %39 : vector<16x32xf32>
    %cst_21 = arith.constant dense<0.000000e+00> : vector<16xf32>
    %41 = vector.multi_reduction <add>, %40, %cst_21 [1] : vector<16x32xf32> to vector<16xf32>
    %42 = vector.shape_cast %41 : vector<16xf32> to vector<16x1xf32>
    %cst_22 = arith.constant 3.200000e+01 : f32
    %43 = vector.broadcast %cst_22 : f32 to vector<16x1xf32>
    %44 = arith.divf %42, %43 : vector<16x1xf32>
    %45 = vector.broadcast %37 : vector<16x1xf32> to vector<16x32xf32>
    %46 = arith.subf %31, %45 : vector<16x32xf32>
    %cst_23 = arith.constant 9.99999974E-6 : f32
    %47 = vector.broadcast %cst_23 : f32 to vector<16x1xf32>
    %48 = arith.addf %44, %47 : vector<16x1xf32>
    %49 = math.rsqrt %48 : vector<16x1xf32>
    %50 = vector.broadcast %49 : vector<16x1xf32> to vector<16x32xf32>
    %51 = arith.mulf %46, %50 : vector<16x32xf32>
    %52 = vector.broadcast %32 : vector<1x32xf32> to vector<16x32xf32>
    %53 = arith.mulf %51, %52 : vector<16x32xf32>
    %54 = vector.broadcast %33 : vector<1x32xf32> to vector<16x32xf32>
    %55 = arith.addf %53, %54 : vector<16x32xf32>
    %c0_24 = arith.constant 0 : index
    %c0_25 = arith.constant 0 : index
    %56 = vector.load %arg8[%c0_24, %c0_25] : memref<16x32xf32, #tpu.memory_space<vmem>>, vector<16x32xf32>
    %57 = arith.addf %55, %56 : vector<16x32xf32>
    %c0_26 = arith.constant 0 : index
    %c0_27 = arith.constant 0 : index
    %c0_28 = arith.constant 0 : index
    %58 = vector.load %arg9[%c0_26, %c0_27, %c0_28] : memref<1x16x32xf32, #tpu.memory_space<vmem>>, vector<1x16x32xf32>
    %59 = vector.shape_cast %58 : vector<1x16x32xf32> to vector<16x32xf32>
    %60 = vector.shape_cast %57 : vector<16x32xf32> to vector<1x16x32xf32>
    tpu.vector_store %arg9[%c0_26, %c0_27, %c0_28], %60 {strides = array<i32>} : memref<1x16x32xf32, #tpu.memory_space<vmem>>, vector<1x16x32xf32>,
    return
  }
  func.func @transform_0(%arg0: i32) -> (i32, i32, i32) {
    %c0_i32 = arith.constant 0 : i32
    %c0_i32_0 = arith.constant 0 : i32
    %c0_i32_1 = arith.constant 0 : i32
    return %arg0, %c0_i32, %c0_i32_0 : i32, i32, i32
  }
  func.func @transform_1(%arg0: i32) -> (i32, i32) {
    %c0_i32 = arith.constant 0 : i32
    %c0_i32_0 = arith.constant 0 : i32
    %c0_i32_1 = arith.constant 0 : i32
    return %c0_i32, %c0_i32_0 : i32, i32
  }
  func.func @transform_2(%arg0: i32) -> (i32, i32) {
    %c0_i32 = arith.constant 0 : i32
    %c0_i32_0 = arith.constant 0 : i32
    %c0_i32_1 = arith.constant 0 : i32
    return %c0_i32, %c0_i32_0 : i32, i32
  }
  func.func @transform_3(%arg0: i32) -> (i32, i32) {
    %c0_i32 = arith.constant 0 : i32
    %c0_i32_0 = arith.constant 0 : i32
    %c0_i32_1 = arith.constant 0 : i32
    return %c0_i32, %c0_i32_0 : i32, i32
  }
  func.func @transform_4(%arg0: i32) -> (i32, i32) {
    %c0_i32 = arith.constant 0 : i32
    %c0_i32_0 = arith.constant 0 : i32
    %c0_i32_1 = arith.constant 0 : i32
    return %c0_i32, %c0_i32_0 : i32, i32
  }
  func.func @transform_5(%arg0: i32) -> (i32, i32) {
    %c0_i32 = arith.constant 0 : i32
    %c0_i32_0 = arith.constant 0 : i32
    %c0_i32_1 = arith.constant 0 : i32
    return %c0_i32, %c0_i32_0 : i32, i32
  }
  func.func @transform_6(%arg0: i32) -> (i32, i32) {
    %c0_i32 = arith.constant 0 : i32
    %c0_i32_0 = arith.constant 0 : i32
    %c0_i32_1 = arith.constant 0 : i32
    return %c0_i32, %c0_i32_0 : i32, i32
  }
  func.func @transform_7(%arg0: i32) -> (i32, i32) {
    %c0_i32 = arith.constant 0 : i32
    %c0_i32_0 = arith.constant 0 : i32
    %c0_i32_1 = arith.constant 0 : i32
    return %c0_i32, %c0_i32_0 : i32, i32
  }
  func.func @transform_8(%arg0: i32) -> (i32, i32, i32) {
    %c0_i32 = arith.constant 0 : i32
    %c0_i32_0 = arith.constant 0 : i32
    %c0_i32_1 = arith.constant 0 : i32
    return %arg0, %c0_i32, %c0_i32_0 : i32, i32, i32
  }
}

module attributes {stable_mosaic.version = 11 : i64} {
  func.func @_transformer_kernel(%arg0: i32, %arg1: i32, %arg2: memref<8x32xf32, #tpu.memory_space<vmem>>, %arg3: memref<1x1x32xf32, #tpu.memory_space<vmem>>, %arg4: memref<1x1x32xf32, #tpu.memory_space<vmem>>, %arg5: memref<1x32x96xbf16, #tpu.memory_space<vmem>>, %arg6: memref<1x32x32xbf16, #tpu.memory_space<vmem>>, %arg7: memref<1x1x32xf32, #tpu.memory_space<vmem>>, %arg8: memref<1x1x32xf32, #tpu.memory_space<vmem>>, %arg9: memref<1x1x32xf32, #tpu.memory_space<vmem>>, %arg10: memref<1x32x128xbf16, #tpu.memory_space<vmem>>, %arg11: memref<1x1x128xf32, #tpu.memory_space<vmem>>, %arg12: memref<1x128x32xbf16, #tpu.memory_space<vmem>>, %arg13: memref<1x1x32xf32, #tpu.memory_space<vmem>>, %arg14: memref<1x32xf32, #tpu.memory_space<vmem>>, %arg15: memref<1x32xf32, #tpu.memory_space<vmem>>, %arg16: memref<8x32xf32, #tpu.memory_space<vmem>>, %arg17: memref<8x32xf32, #tpu.memory_space<vmem>>, %arg18: memref<8x32xf32, #tpu.memory_space<vmem>>) attributes {dimension_semantics = [#tpu.dimension_semantics<arbitrary>, #tpu.dimension_semantics<arbitrary>], iteration_bounds = array<i64: 1, 1>, scalar_prefetch = 0 : i64, scratch_operands = 2 : i64, tpu.core_type = #tpu.core_type<tc>, window_params = [{transform_indices = @transform_0, window_bounds = array<i64: 8, 32>}, {transform_indices = @transform_1, window_bounds = array<i64: 1, 1, 32>}, {transform_indices = @transform_2, window_bounds = array<i64: 1, 1, 32>}, {transform_indices = @transform_3, window_bounds = array<i64: 1, 32, 96>}, {transform_indices = @transform_4, window_bounds = array<i64: 1, 32, 32>}, {transform_indices = @transform_5, window_bounds = array<i64: 1, 1, 32>}, {transform_indices = @transform_6, window_bounds = array<i64: 1, 1, 32>}, {transform_indices = @transform_7, window_bounds = array<i64: 1, 1, 32>}, {transform_indices = @transform_8, window_bounds = array<i64: 1, 32, 128>}, {transform_indices = @transform_9, window_bounds = array<i64: 1, 1, 128>}, {transform_indices = @transform_10, window_bounds = array<i64: 1, 128, 32>}, {transform_indices = @transform_11, window_bounds = array<i64: 1, 1, 32>}, {pipeline_mode = #tpu.pipeline_mode<synchronous>, transform_indices = @transform_12, window_bounds = array<i64: 1, 32>}, {pipeline_mode = #tpu.pipeline_mode<synchronous>, transform_indices = @transform_13, window_bounds = array<i64: 1, 32>}, {transform_indices = @transform_14, window_bounds = array<i64: 8, 32>}]} {
    %c0_i32 = arith.constant 0 : i32
    %0 = arith.cmpi eq, %arg1, %c0_i32 : i32
    %1 = arith.extui %0 : i1 to i32
    %c0_i32_0 = arith.constant 0 : i32
    %2 = arith.cmpi ne, %1, %c0_i32_0 : i32
    scf.if %2 {
      %c0_102 = arith.constant 0 : index
      %c0_103 = arith.constant 0 : index
      %264 = vector.load %arg2[%c0_102, %c0_103] : memref<8x32xf32, #tpu.memory_space<vmem>>, vector<8x32xf32>
      %c0_104 = arith.constant 0 : index
      %c0_105 = arith.constant 0 : index
      %265 = vector.load %arg17[%c0_104, %c0_105] : memref<8x32xf32, #tpu.memory_space<vmem>>, vector<8x32xf32>
      tpu.vector_store %arg17[%c0_104, %c0_105], %264 {strides = array<i32>} : memref<8x32xf32, #tpu.memory_space<vmem>>, vector<8x32xf32>,
    } else {
    }
    %c0 = arith.constant 0 : index
    %c0_1 = arith.constant 0 : index
    %3 = vector.load %arg17[%c0, %c0_1] : memref<8x32xf32, #tpu.memory_space<vmem>>, vector<8x32xf32>
    %c0_2 = arith.constant 0 : index
    %c0_3 = arith.constant 0 : index
    %c0_4 = arith.constant 0 : index
    %4 = vector.load %arg3[%c0_2, %c0_3, %c0_4] : memref<1x1x32xf32, #tpu.memory_space<vmem>>, vector<1x1x32xf32>
    %5 = vector.shape_cast %4 : vector<1x1x32xf32> to vector<1x32xf32>
    %c0_5 = arith.constant 0 : index
    %c0_6 = arith.constant 0 : index
    %c0_7 = arith.constant 0 : index
    %6 = vector.load %arg4[%c0_5, %c0_6, %c0_7] : memref<1x1x32xf32, #tpu.memory_space<vmem>>, vector<1x1x32xf32>
    %7 = vector.shape_cast %6 : vector<1x1x32xf32> to vector<1x32xf32>
    %cst = arith.constant dense<0.000000e+00> : vector<8xf32>
    %8 = vector.multi_reduction <add>, %3, %cst [1] : vector<8x32xf32> to vector<8xf32>
    %9 = vector.shape_cast %8 : vector<8xf32> to vector<8x1xf32>
    %cst_8 = arith.constant 3.200000e+01 : f32
    %10 = vector.broadcast %cst_8 : f32 to vector<8x1xf32>
    %11 = arith.divf %9, %10 : vector<8x1xf32>
    %12 = vector.broadcast %11 : vector<8x1xf32> to vector<8x32xf32>
    %13 = arith.subf %3, %12 : vector<8x32xf32>
    %14 = arith.mulf %13, %13 : vector<8x32xf32>
    %cst_9 = arith.constant dense<0.000000e+00> : vector<8xf32>
    %15 = vector.multi_reduction <add>, %14, %cst_9 [1] : vector<8x32xf32> to vector<8xf32>
    %16 = vector.shape_cast %15 : vector<8xf32> to vector<8x1xf32>
    %cst_10 = arith.constant 3.200000e+01 : f32
    %17 = vector.broadcast %cst_10 : f32 to vector<8x1xf32>
    %18 = arith.divf %16, %17 : vector<8x1xf32>
    %19 = vector.broadcast %11 : vector<8x1xf32> to vector<8x32xf32>
    %20 = arith.subf %3, %19 : vector<8x32xf32>
    %cst_11 = arith.constant 9.99999974E-6 : f32
    %21 = vector.broadcast %cst_11 : f32 to vector<8x1xf32>
    %22 = arith.addf %18, %21 : vector<8x1xf32>
    %23 = math.rsqrt %22 : vector<8x1xf32>
    %24 = vector.broadcast %23 : vector<8x1xf32> to vector<8x32xf32>
    %25 = arith.mulf %20, %24 : vector<8x32xf32>
    %26 = vector.broadcast %5 : vector<1x32xf32> to vector<8x32xf32>
    %27 = arith.mulf %25, %26 : vector<8x32xf32>
    %28 = vector.broadcast %7 : vector<1x32xf32> to vector<8x32xf32>
    %29 = arith.addf %27, %28 : vector<8x32xf32>
    %30 = arith.truncf %29 : vector<8x32xf32> to vector<8x32xbf16>
    %c0_12 = arith.constant 0 : index
    %c0_13 = arith.constant 0 : index
    %c0_14 = arith.constant 0 : index
    %31 = vector.load %arg5[%c0_12, %c0_13, %c0_14] : memref<1x32x96xbf16, #tpu.memory_space<vmem>>, vector<1x32x96xbf16>
    %32 = vector.shape_cast %31 : vector<1x32x96xbf16> to vector<32x96xbf16>
    %cst_15 = arith.constant dense<0.000000e+00> : vector<8x96xf32>
    %33 = tpu.matmul %30, %32, %cst_15 {dimension_numbers = #tpu.dot_dimension_numbers<[1], [0], [0], [1], [0, 0, 1, 1], [], []>} : vector<8x32xbf16>, vector<32x96xbf16>, vector<8x96xf32> -> vector<8x96xf32>
    %34 = vector.extract_strided_slice %33 {offsets = [0, 0], sizes = [4, 8], strides = [1, 1]} : vector<8x96xf32> to vector<4x8xf32>
    %35 = arith.truncf %34 : vector<4x8xf32> to vector<4x8xbf16>
    %36 = vector.extract_strided_slice %33 {offsets = [0, 32], sizes = [4, 8], strides = [1, 1]} : vector<8x96xf32> to vector<4x8xf32>
    %37 = arith.truncf %36 : vector<4x8xf32> to vector<4x8xbf16>
    %38 = vector.extract_strided_slice %33 {offsets = [0, 64], sizes = [4, 8], strides = [1, 1]} : vector<8x96xf32> to vector<4x8xf32>
    %39 = arith.truncf %38 : vector<4x8xf32> to vector<4x8xbf16>
    %cst_16 = arith.constant dense<0.000000e+00> : vector<4x4xf32>
    %40 = tpu.matmul %35, %37, %cst_16 {dimension_numbers = #tpu.dot_dimension_numbers<[1], [1], [0], [0], [0, 0, 1, 0], [], []>} : vector<4x8xbf16>, vector<4x8xbf16>, vector<4x4xf32> -> vector<4x4xf32>
    %cst_17 = arith.constant dense<0xFF800000> : vector<4xf32>
    %41 = vector.multi_reduction <maximumf>, %40, %cst_17 [1] : vector<4x4xf32> to vector<4xf32>
    %42 = vector.shape_cast %41 : vector<4xf32> to vector<4x1xf32>
    %43 = vector.broadcast %42 : vector<4x1xf32> to vector<4x4xf32>
    %44 = arith.subf %40, %43 : vector<4x4xf32>
    %45 = math.exp %44 : vector<4x4xf32>
    %cst_18 = arith.constant dense<0.000000e+00> : vector<4xf32>
    %46 = vector.multi_reduction <add>, %45, %cst_18 [1] : vector<4x4xf32> to vector<4xf32>
    %47 = vector.shape_cast %46 : vector<4xf32> to vector<4x1xf32>
    %48 = tpu.reciprocal %47 {approx = true} : vector<4x1xf32> -> vector<4x1xf32>
    %49 = vector.broadcast %48 : vector<4x1xf32> to vector<4x4xf32>
    %50 = arith.mulf %45, %49 : vector<4x4xf32>
    %51 = arith.truncf %50 : vector<4x4xf32> to vector<4x4xbf16>
    %cst_19 = arith.constant dense<0.000000e+00> : vector<4x8xf32>
    %52 = tpu.matmul %51, %39, %cst_19 {dimension_numbers = #tpu.dot_dimension_numbers<[1], [0], [0], [1], [0, 0, 1, 1], [], []>} : vector<4x4xbf16>, vector<4x8xbf16>, vector<4x8xf32> -> vector<4x8xf32>
    %c0_20 = arith.constant 0 : index
    %c0_21 = arith.constant 0 : index
    %53 = vector.load %arg18[%c0_20, %c0_21] : memref<8x32xf32, #tpu.memory_space<vmem>>, vector<4x8xf32>
    tpu.vector_store %arg18[%c0_20, %c0_21], %52 {strides = array<i32>} : memref<8x32xf32, #tpu.memory_space<vmem>>, vector<4x8xf32>,
    %54 = vector.extract_strided_slice %33 {offsets = [0, 8], sizes = [4, 8], strides = [1, 1]} : vector<8x96xf32> to vector<4x8xf32>
    %55 = arith.truncf %54 : vector<4x8xf32> to vector<4x8xbf16>
    %56 = vector.extract_strided_slice %33 {offsets = [0, 40], sizes = [4, 8], strides = [1, 1]} : vector<8x96xf32> to vector<4x8xf32>
    %57 = arith.truncf %56 : vector<4x8xf32> to vector<4x8xbf16>
    %58 = vector.extract_strided_slice %33 {offsets = [0, 72], sizes = [4, 8], strides = [1, 1]} : vector<8x96xf32> to vector<4x8xf32>
    %59 = arith.truncf %58 : vector<4x8xf32> to vector<4x8xbf16>
    %cst_22 = arith.constant dense<0.000000e+00> : vector<4x4xf32>
    %60 = tpu.matmul %55, %57, %cst_22 {dimension_numbers = #tpu.dot_dimension_numbers<[1], [1], [0], [0], [0, 0, 1, 0], [], []>} : vector<4x8xbf16>, vector<4x8xbf16>, vector<4x4xf32> -> vector<4x4xf32>
    %cst_23 = arith.constant dense<0xFF800000> : vector<4xf32>
    %61 = vector.multi_reduction <maximumf>, %60, %cst_23 [1] : vector<4x4xf32> to vector<4xf32>
    %62 = vector.shape_cast %61 : vector<4xf32> to vector<4x1xf32>
    %63 = vector.broadcast %62 : vector<4x1xf32> to vector<4x4xf32>
    %64 = arith.subf %60, %63 : vector<4x4xf32>
    %65 = math.exp %64 : vector<4x4xf32>
    %cst_24 = arith.constant dense<0.000000e+00> : vector<4xf32>
    %66 = vector.multi_reduction <add>, %65, %cst_24 [1] : vector<4x4xf32> to vector<4xf32>
    %67 = vector.shape_cast %66 : vector<4xf32> to vector<4x1xf32>
    %68 = tpu.reciprocal %67 {approx = true} : vector<4x1xf32> -> vector<4x1xf32>
    %69 = vector.broadcast %68 : vector<4x1xf32> to vector<4x4xf32>
    %70 = arith.mulf %65, %69 : vector<4x4xf32>
    %71 = arith.truncf %70 : vector<4x4xf32> to vector<4x4xbf16>
    %cst_25 = arith.constant dense<0.000000e+00> : vector<4x8xf32>
    %72 = tpu.matmul %71, %59, %cst_25 {dimension_numbers = #tpu.dot_dimension_numbers<[1], [0], [0], [1], [0, 0, 1, 1], [], []>} : vector<4x4xbf16>, vector<4x8xbf16>, vector<4x8xf32> -> vector<4x8xf32>
    %c0_26 = arith.constant 0 : index
    %c8 = arith.constant 8 : index
    %73 = vector.load %arg18[%c0_26, %c8] : memref<8x32xf32, #tpu.memory_space<vmem>>, vector<4x8xf32>
    tpu.vector_store %arg18[%c0_26, %c8], %72 {strides = array<i32>} : memref<8x32xf32, #tpu.memory_space<vmem>>, vector<4x8xf32>,
    %74 = vector.extract_strided_slice %33 {offsets = [0, 16], sizes = [4, 8], strides = [1, 1]} : vector<8x96xf32> to vector<4x8xf32>
    %75 = arith.truncf %74 : vector<4x8xf32> to vector<4x8xbf16>
    %76 = vector.extract_strided_slice %33 {offsets = [0, 48], sizes = [4, 8], strides = [1, 1]} : vector<8x96xf32> to vector<4x8xf32>
    %77 = arith.truncf %76 : vector<4x8xf32> to vector<4x8xbf16>
    %78 = vector.extract_strided_slice %33 {offsets = [0, 80], sizes = [4, 8], strides = [1, 1]} : vector<8x96xf32> to vector<4x8xf32>
    %79 = arith.truncf %78 : vector<4x8xf32> to vector<4x8xbf16>
    %cst_27 = arith.constant dense<0.000000e+00> : vector<4x4xf32>
    %80 = tpu.matmul %75, %77, %cst_27 {dimension_numbers = #tpu.dot_dimension_numbers<[1], [1], [0], [0], [0, 0, 1, 0], [], []>} : vector<4x8xbf16>, vector<4x8xbf16>, vector<4x4xf32> -> vector<4x4xf32>
    %cst_28 = arith.constant dense<0xFF800000> : vector<4xf32>
    %81 = vector.multi_reduction <maximumf>, %80, %cst_28 [1] : vector<4x4xf32> to vector<4xf32>
    %82 = vector.shape_cast %81 : vector<4xf32> to vector<4x1xf32>
    %83 = vector.broadcast %82 : vector<4x1xf32> to vector<4x4xf32>
    %84 = arith.subf %80, %83 : vector<4x4xf32>
    %85 = math.exp %84 : vector<4x4xf32>
    %cst_29 = arith.constant dense<0.000000e+00> : vector<4xf32>
    %86 = vector.multi_reduction <add>, %85, %cst_29 [1] : vector<4x4xf32> to vector<4xf32>
    %87 = vector.shape_cast %86 : vector<4xf32> to vector<4x1xf32>
    %88 = tpu.reciprocal %87 {approx = true} : vector<4x1xf32> -> vector<4x1xf32>
    %89 = vector.broadcast %88 : vector<4x1xf32> to vector<4x4xf32>
    %90 = arith.mulf %85, %89 : vector<4x4xf32>
    %91 = arith.truncf %90 : vector<4x4xf32> to vector<4x4xbf16>
    %cst_30 = arith.constant dense<0.000000e+00> : vector<4x8xf32>
    %92 = tpu.matmul %91, %79, %cst_30 {dimension_numbers = #tpu.dot_dimension_numbers<[1], [0], [0], [1], [0, 0, 1, 1], [], []>} : vector<4x4xbf16>, vector<4x8xbf16>, vector<4x8xf32> -> vector<4x8xf32>
    %c0_31 = arith.constant 0 : index
    %c16 = arith.constant 16 : index
    %93 = vector.load %arg18[%c0_31, %c16] : memref<8x32xf32, #tpu.memory_space<vmem>>, vector<4x8xf32>
    tpu.vector_store %arg18[%c0_31, %c16], %92 {strides = array<i32>} : memref<8x32xf32, #tpu.memory_space<vmem>>, vector<4x8xf32>,
    %94 = vector.extract_strided_slice %33 {offsets = [0, 24], sizes = [4, 8], strides = [1, 1]} : vector<8x96xf32> to vector<4x8xf32>
    %95 = arith.truncf %94 : vector<4x8xf32> to vector<4x8xbf16>
    %96 = vector.extract_strided_slice %33 {offsets = [0, 56], sizes = [4, 8], strides = [1, 1]} : vector<8x96xf32> to vector<4x8xf32>
    %97 = arith.truncf %96 : vector<4x8xf32> to vector<4x8xbf16>
    %98 = vector.extract_strided_slice %33 {offsets = [0, 88], sizes = [4, 8], strides = [1, 1]} : vector<8x96xf32> to vector<4x8xf32>
    %99 = arith.truncf %98 : vector<4x8xf32> to vector<4x8xbf16>
    %cst_32 = arith.constant dense<0.000000e+00> : vector<4x4xf32>
    %100 = tpu.matmul %95, %97, %cst_32 {dimension_numbers = #tpu.dot_dimension_numbers<[1], [1], [0], [0], [0, 0, 1, 0], [], []>} : vector<4x8xbf16>, vector<4x8xbf16>, vector<4x4xf32> -> vector<4x4xf32>
    %cst_33 = arith.constant dense<0xFF800000> : vector<4xf32>
    %101 = vector.multi_reduction <maximumf>, %100, %cst_33 [1] : vector<4x4xf32> to vector<4xf32>
    %102 = vector.shape_cast %101 : vector<4xf32> to vector<4x1xf32>
    %103 = vector.broadcast %102 : vector<4x1xf32> to vector<4x4xf32>
    %104 = arith.subf %100, %103 : vector<4x4xf32>
    %105 = math.exp %104 : vector<4x4xf32>
    %cst_34 = arith.constant dense<0.000000e+00> : vector<4xf32>
    %106 = vector.multi_reduction <add>, %105, %cst_34 [1] : vector<4x4xf32> to vector<4xf32>
    %107 = vector.shape_cast %106 : vector<4xf32> to vector<4x1xf32>
    %108 = tpu.reciprocal %107 {approx = true} : vector<4x1xf32> -> vector<4x1xf32>
    %109 = vector.broadcast %108 : vector<4x1xf32> to vector<4x4xf32>
    %110 = arith.mulf %105, %109 : vector<4x4xf32>
    %111 = arith.truncf %110 : vector<4x4xf32> to vector<4x4xbf16>
    %cst_35 = arith.constant dense<0.000000e+00> : vector<4x8xf32>
    %112 = tpu.matmul %111, %99, %cst_35 {dimension_numbers = #tpu.dot_dimension_numbers<[1], [0], [0], [1], [0, 0, 1, 1], [], []>} : vector<4x4xbf16>, vector<4x8xbf16>, vector<4x8xf32> -> vector<4x8xf32>
    %c0_36 = arith.constant 0 : index
    %c24 = arith.constant 24 : index
    %113 = vector.load %arg18[%c0_36, %c24] : memref<8x32xf32, #tpu.memory_space<vmem>>, vector<4x8xf32>
    tpu.vector_store %arg18[%c0_36, %c24], %112 {strides = array<i32>} : memref<8x32xf32, #tpu.memory_space<vmem>>, vector<4x8xf32>,
    %114 = vector.extract_strided_slice %33 {offsets = [4, 0], sizes = [4, 8], strides = [1, 1]} : vector<8x96xf32> to vector<4x8xf32>
    %115 = arith.truncf %114 : vector<4x8xf32> to vector<4x8xbf16>
    %116 = vector.extract_strided_slice %33 {offsets = [4, 32], sizes = [4, 8], strides = [1, 1]} : vector<8x96xf32> to vector<4x8xf32>
    %117 = arith.truncf %116 : vector<4x8xf32> to vector<4x8xbf16>
    %118 = vector.extract_strided_slice %33 {offsets = [4, 64], sizes = [4, 8], strides = [1, 1]} : vector<8x96xf32> to vector<4x8xf32>
    %119 = arith.truncf %118 : vector<4x8xf32> to vector<4x8xbf16>
    %cst_37 = arith.constant dense<0.000000e+00> : vector<4x4xf32>
    %120 = tpu.matmul %115, %117, %cst_37 {dimension_numbers = #tpu.dot_dimension_numbers<[1], [1], [0], [0], [0, 0, 1, 0], [], []>} : vector<4x8xbf16>, vector<4x8xbf16>, vector<4x4xf32> -> vector<4x4xf32>
    %cst_38 = arith.constant dense<0xFF800000> : vector<4xf32>
    %121 = vector.multi_reduction <maximumf>, %120, %cst_38 [1] : vector<4x4xf32> to vector<4xf32>
    %122 = vector.shape_cast %121 : vector<4xf32> to vector<4x1xf32>
    %123 = vector.broadcast %122 : vector<4x1xf32> to vector<4x4xf32>
    %124 = arith.subf %120, %123 : vector<4x4xf32>
    %125 = math.exp %124 : vector<4x4xf32>
    %cst_39 = arith.constant dense<0.000000e+00> : vector<4xf32>
    %126 = vector.multi_reduction <add>, %125, %cst_39 [1] : vector<4x4xf32> to vector<4xf32>
    %127 = vector.shape_cast %126 : vector<4xf32> to vector<4x1xf32>
    %128 = tpu.reciprocal %127 {approx = true} : vector<4x1xf32> -> vector<4x1xf32>
    %129 = vector.broadcast %128 : vector<4x1xf32> to vector<4x4xf32>
    %130 = arith.mulf %125, %129 : vector<4x4xf32>
    %131 = arith.truncf %130 : vector<4x4xf32> to vector<4x4xbf16>
    %cst_40 = arith.constant dense<0.000000e+00> : vector<4x8xf32>
    %132 = tpu.matmul %131, %119, %cst_40 {dimension_numbers = #tpu.dot_dimension_numbers<[1], [0], [0], [1], [0, 0, 1, 1], [], []>} : vector<4x4xbf16>, vector<4x8xbf16>, vector<4x8xf32> -> vector<4x8xf32>
    %c4 = arith.constant 4 : index
    %c0_41 = arith.constant 0 : index
    %133 = vector.load %arg18[%c4, %c0_41] : memref<8x32xf32, #tpu.memory_space<vmem>>, vector<4x8xf32>
    tpu.vector_store %arg18[%c4, %c0_41], %132 {strides = array<i32>} : memref<8x32xf32, #tpu.memory_space<vmem>>, vector<4x8xf32>,
    %134 = vector.extract_strided_slice %33 {offsets = [4, 8], sizes = [4, 8], strides = [1, 1]} : vector<8x96xf32> to vector<4x8xf32>
    %135 = arith.truncf %134 : vector<4x8xf32> to vector<4x8xbf16>
    %136 = vector.extract_strided_slice %33 {offsets = [4, 40], sizes = [4, 8], strides = [1, 1]} : vector<8x96xf32> to vector<4x8xf32>
    %137 = arith.truncf %136 : vector<4x8xf32> to vector<4x8xbf16>
    %138 = vector.extract_strided_slice %33 {offsets = [4, 72], sizes = [4, 8], strides = [1, 1]} : vector<8x96xf32> to vector<4x8xf32>
    %139 = arith.truncf %138 : vector<4x8xf32> to vector<4x8xbf16>
    %cst_42 = arith.constant dense<0.000000e+00> : vector<4x4xf32>
    %140 = tpu.matmul %135, %137, %cst_42 {dimension_numbers = #tpu.dot_dimension_numbers<[1], [1], [0], [0], [0, 0, 1, 0], [], []>} : vector<4x8xbf16>, vector<4x8xbf16>, vector<4x4xf32> -> vector<4x4xf32>
    %cst_43 = arith.constant dense<0xFF800000> : vector<4xf32>
    %141 = vector.multi_reduction <maximumf>, %140, %cst_43 [1] : vector<4x4xf32> to vector<4xf32>
    %142 = vector.shape_cast %141 : vector<4xf32> to vector<4x1xf32>
    %143 = vector.broadcast %142 : vector<4x1xf32> to vector<4x4xf32>
    %144 = arith.subf %140, %143 : vector<4x4xf32>
    %145 = math.exp %144 : vector<4x4xf32>
    %cst_44 = arith.constant dense<0.000000e+00> : vector<4xf32>
    %146 = vector.multi_reduction <add>, %145, %cst_44 [1] : vector<4x4xf32> to vector<4xf32>
    %147 = vector.shape_cast %146 : vector<4xf32> to vector<4x1xf32>
    %148 = tpu.reciprocal %147 {approx = true} : vector<4x1xf32> -> vector<4x1xf32>
    %149 = vector.broadcast %148 : vector<4x1xf32> to vector<4x4xf32>
    %150 = arith.mulf %145, %149 : vector<4x4xf32>
    %151 = arith.truncf %150 : vector<4x4xf32> to vector<4x4xbf16>
    %cst_45 = arith.constant dense<0.000000e+00> : vector<4x8xf32>
    %152 = tpu.matmul %151, %139, %cst_45 {dimension_numbers = #tpu.dot_dimension_numbers<[1], [0], [0], [1], [0, 0, 1, 1], [], []>} : vector<4x4xbf16>, vector<4x8xbf16>, vector<4x8xf32> -> vector<4x8xf32>
    %c4_46 = arith.constant 4 : index
    %c8_47 = arith.constant 8 : index
    %153 = vector.load %arg18[%c4_46, %c8_47] : memref<8x32xf32, #tpu.memory_space<vmem>>, vector<4x8xf32>
    tpu.vector_store %arg18[%c4_46, %c8_47], %152 {strides = array<i32>} : memref<8x32xf32, #tpu.memory_space<vmem>>, vector<4x8xf32>,
    %154 = vector.extract_strided_slice %33 {offsets = [4, 16], sizes = [4, 8], strides = [1, 1]} : vector<8x96xf32> to vector<4x8xf32>
    %155 = arith.truncf %154 : vector<4x8xf32> to vector<4x8xbf16>
    %156 = vector.extract_strided_slice %33 {offsets = [4, 48], sizes = [4, 8], strides = [1, 1]} : vector<8x96xf32> to vector<4x8xf32>
    %157 = arith.truncf %156 : vector<4x8xf32> to vector<4x8xbf16>
    %158 = vector.extract_strided_slice %33 {offsets = [4, 80], sizes = [4, 8], strides = [1, 1]} : vector<8x96xf32> to vector<4x8xf32>
    %159 = arith.truncf %158 : vector<4x8xf32> to vector<4x8xbf16>
    %cst_48 = arith.constant dense<0.000000e+00> : vector<4x4xf32>
    %160 = tpu.matmul %155, %157, %cst_48 {dimension_numbers = #tpu.dot_dimension_numbers<[1], [1], [0], [0], [0, 0, 1, 0], [], []>} : vector<4x8xbf16>, vector<4x8xbf16>, vector<4x4xf32> -> vector<4x4xf32>
    %cst_49 = arith.constant dense<0xFF800000> : vector<4xf32>
    %161 = vector.multi_reduction <maximumf>, %160, %cst_49 [1] : vector<4x4xf32> to vector<4xf32>
    %162 = vector.shape_cast %161 : vector<4xf32> to vector<4x1xf32>
    %163 = vector.broadcast %162 : vector<4x1xf32> to vector<4x4xf32>
    %164 = arith.subf %160, %163 : vector<4x4xf32>
    %165 = math.exp %164 : vector<4x4xf32>
    %cst_50 = arith.constant dense<0.000000e+00> : vector<4xf32>
    %166 = vector.multi_reduction <add>, %165, %cst_50 [1] : vector<4x4xf32> to vector<4xf32>
    %167 = vector.shape_cast %166 : vector<4xf32> to vector<4x1xf32>
    %168 = tpu.reciprocal %167 {approx = true} : vector<4x1xf32> -> vector<4x1xf32>
    %169 = vector.broadcast %168 : vector<4x1xf32> to vector<4x4xf32>
    %170 = arith.mulf %165, %169 : vector<4x4xf32>
    %171 = arith.truncf %170 : vector<4x4xf32> to vector<4x4xbf16>
    %cst_51 = arith.constant dense<0.000000e+00> : vector<4x8xf32>
    %172 = tpu.matmul %171, %159, %cst_51 {dimension_numbers = #tpu.dot_dimension_numbers<[1], [0], [0], [1], [0, 0, 1, 1], [], []>} : vector<4x4xbf16>, vector<4x8xbf16>, vector<4x8xf32> -> vector<4x8xf32>
    %c4_52 = arith.constant 4 : index
    %c16_53 = arith.constant 16 : index
    %173 = vector.load %arg18[%c4_52, %c16_53] : memref<8x32xf32, #tpu.memory_space<vmem>>, vector<4x8xf32>
    tpu.vector_store %arg18[%c4_52, %c16_53], %172 {strides = array<i32>} : memref<8x32xf32, #tpu.memory_space<vmem>>, vector<4x8xf32>,
    %174 = vector.extract_strided_slice %33 {offsets = [4, 24], sizes = [4, 8], strides = [1, 1]} : vector<8x96xf32> to vector<4x8xf32>
    %175 = arith.truncf %174 : vector<4x8xf32> to vector<4x8xbf16>
    %176 = vector.extract_strided_slice %33 {offsets = [4, 56], sizes = [4, 8], strides = [1, 1]} : vector<8x96xf32> to vector<4x8xf32>
    %177 = arith.truncf %176 : vector<4x8xf32> to vector<4x8xbf16>
    %178 = vector.extract_strided_slice %33 {offsets = [4, 88], sizes = [4, 8], strides = [1, 1]} : vector<8x96xf32> to vector<4x8xf32>
    %179 = arith.truncf %178 : vector<4x8xf32> to vector<4x8xbf16>
    %cst_54 = arith.constant dense<0.000000e+00> : vector<4x4xf32>
    %180 = tpu.matmul %175, %177, %cst_54 {dimension_numbers = #tpu.dot_dimension_numbers<[1], [1], [0], [0], [0, 0, 1, 0], [], []>} : vector<4x8xbf16>, vector<4x8xbf16>, vector<4x4xf32> -> vector<4x4xf32>
    %cst_55 = arith.constant dense<0xFF800000> : vector<4xf32>
    %181 = vector.multi_reduction <maximumf>, %180, %cst_55 [1] : vector<4x4xf32> to vector<4xf32>
    %182 = vector.shape_cast %181 : vector<4xf32> to vector<4x1xf32>
    %183 = vector.broadcast %182 : vector<4x1xf32> to vector<4x4xf32>
    %184 = arith.subf %180, %183 : vector<4x4xf32>
    %185 = math.exp %184 : vector<4x4xf32>
    %cst_56 = arith.constant dense<0.000000e+00> : vector<4xf32>
    %186 = vector.multi_reduction <add>, %185, %cst_56 [1] : vector<4x4xf32> to vector<4xf32>
    %187 = vector.shape_cast %186 : vector<4xf32> to vector<4x1xf32>
    %188 = tpu.reciprocal %187 {approx = true} : vector<4x1xf32> -> vector<4x1xf32>
    %189 = vector.broadcast %188 : vector<4x1xf32> to vector<4x4xf32>
    %190 = arith.mulf %185, %189 : vector<4x4xf32>
    %191 = arith.truncf %190 : vector<4x4xf32> to vector<4x4xbf16>
    %cst_57 = arith.constant dense<0.000000e+00> : vector<4x8xf32>
    %192 = tpu.matmul %191, %179, %cst_57 {dimension_numbers = #tpu.dot_dimension_numbers<[1], [0], [0], [1], [0, 0, 1, 1], [], []>} : vector<4x4xbf16>, vector<4x8xbf16>, vector<4x8xf32> -> vector<4x8xf32>
    %c4_58 = arith.constant 4 : index
    %c24_59 = arith.constant 24 : index
    %193 = vector.load %arg18[%c4_58, %c24_59] : memref<8x32xf32, #tpu.memory_space<vmem>>, vector<4x8xf32>
    tpu.vector_store %arg18[%c4_58, %c24_59], %192 {strides = array<i32>} : memref<8x32xf32, #tpu.memory_space<vmem>>, vector<4x8xf32>,
    %c0_60 = arith.constant 0 : index
    %c0_61 = arith.constant 0 : index
    %194 = vector.load %arg18[%c0_60, %c0_61] : memref<8x32xf32, #tpu.memory_space<vmem>>, vector<8x32xf32>
    %195 = arith.truncf %194 : vector<8x32xf32> to vector<8x32xbf16>
    %c0_62 = arith.constant 0 : index
    %c0_63 = arith.constant 0 : index
    %c0_64 = arith.constant 0 : index
    %196 = vector.load %arg6[%c0_62, %c0_63, %c0_64] : memref<1x32x32xbf16, #tpu.memory_space<vmem>>, vector<1x32x32xbf16>
    %197 = vector.shape_cast %196 : vector<1x32x32xbf16> to vector<32x32xbf16>
    %cst_65 = arith.constant dense<0.000000e+00> : vector<8x32xf32>
    %198 = tpu.matmul %195, %197, %cst_65 {dimension_numbers = #tpu.dot_dimension_numbers<[1], [0], [0], [1], [0, 0, 1, 1], [], []>} : vector<8x32xbf16>, vector<32x32xbf16>, vector<8x32xf32> -> vector<8x32xf32>
    %c0_66 = arith.constant 0 : index
    %c0_67 = arith.constant 0 : index
    %c0_68 = arith.constant 0 : index
    %199 = vector.load %arg7[%c0_66, %c0_67, %c0_68] : memref<1x1x32xf32, #tpu.memory_space<vmem>>, vector<1x1x32xf32>
    %200 = vector.shape_cast %199 : vector<1x1x32xf32> to vector<1x32xf32>
    %201 = vector.broadcast %200 : vector<1x32xf32> to vector<8x32xf32>
    %202 = arith.addf %198, %201 : vector<8x32xf32>
    %203 = arith.addf %3, %202 : vector<8x32xf32>
    %c0_69 = arith.constant 0 : index
    %c0_70 = arith.constant 0 : index
    %c0_71 = arith.constant 0 : index
    %204 = vector.load %arg8[%c0_69, %c0_70, %c0_71] : memref<1x1x32xf32, #tpu.memory_space<vmem>>, vector<1x1x32xf32>
    %205 = vector.shape_cast %204 : vector<1x1x32xf32> to vector<1x32xf32>
    %c0_72 = arith.constant 0 : index
    %c0_73 = arith.constant 0 : index
    %c0_74 = arith.constant 0 : index
    %206 = vector.load %arg9[%c0_72, %c0_73, %c0_74] : memref<1x1x32xf32, #tpu.memory_space<vmem>>, vector<1x1x32xf32>
    %207 = vector.shape_cast %206 : vector<1x1x32xf32> to vector<1x32xf32>
    %cst_75 = arith.constant dense<0.000000e+00> : vector<8xf32>
    %208 = vector.multi_reduction <add>, %203, %cst_75 [1] : vector<8x32xf32> to vector<8xf32>
    %209 = vector.shape_cast %208 : vector<8xf32> to vector<8x1xf32>
    %cst_76 = arith.constant 3.200000e+01 : f32
    %210 = vector.broadcast %cst_76 : f32 to vector<8x1xf32>
    %211 = arith.divf %209, %210 : vector<8x1xf32>
    %212 = vector.broadcast %211 : vector<8x1xf32> to vector<8x32xf32>
    %213 = arith.subf %203, %212 : vector<8x32xf32>
    %214 = arith.mulf %213, %213 : vector<8x32xf32>
    %cst_77 = arith.constant dense<0.000000e+00> : vector<8xf32>
    %215 = vector.multi_reduction <add>, %214, %cst_77 [1] : vector<8x32xf32> to vector<8xf32>
    %216 = vector.shape_cast %215 : vector<8xf32> to vector<8x1xf32>
    %cst_78 = arith.constant 3.200000e+01 : f32
    %217 = vector.broadcast %cst_78 : f32 to vector<8x1xf32>
    %218 = arith.divf %216, %217 : vector<8x1xf32>
    %219 = vector.broadcast %211 : vector<8x1xf32> to vector<8x32xf32>
    %220 = arith.subf %203, %219 : vector<8x32xf32>
    %cst_79 = arith.constant 9.99999974E-6 : f32
    %221 = vector.broadcast %cst_79 : f32 to vector<8x1xf32>
    %222 = arith.addf %218, %221 : vector<8x1xf32>
    %223 = math.rsqrt %222 : vector<8x1xf32>
    %224 = vector.broadcast %223 : vector<8x1xf32> to vector<8x32xf32>
    %225 = arith.mulf %220, %224 : vector<8x32xf32>
    %226 = vector.broadcast %205 : vector<1x32xf32> to vector<8x32xf32>
    %227 = arith.mulf %225, %226 : vector<8x32xf32>
    %228 = vector.broadcast %207 : vector<1x32xf32> to vector<8x32xf32>
    %229 = arith.addf %227, %228 : vector<8x32xf32>
    %230 = arith.truncf %229 : vector<8x32xf32> to vector<8x32xbf16>
    %c0_80 = arith.constant 0 : index
    %c0_81 = arith.constant 0 : index
    %c0_82 = arith.constant 0 : index
    %231 = vector.load %arg10[%c0_80, %c0_81, %c0_82] : memref<1x32x128xbf16, #tpu.memory_space<vmem>>, vector<1x32x128xbf16>
    %232 = vector.shape_cast %231 : vector<1x32x128xbf16> to vector<32x128xbf16>
    %cst_83 = arith.constant dense<0.000000e+00> : vector<8x128xf32>
    %233 = tpu.matmul %230, %232, %cst_83 {dimension_numbers = #tpu.dot_dimension_numbers<[1], [0], [0], [1], [0, 0, 1, 1], [], []>} : vector<8x32xbf16>, vector<32x128xbf16>, vector<8x128xf32> -> vector<8x128xf32>
    %c0_84 = arith.constant 0 : index
    %c0_85 = arith.constant 0 : index
    %c0_86 = arith.constant 0 : index
    %234 = vector.load %arg11[%c0_84, %c0_85, %c0_86] : memref<1x1x128xf32, #tpu.memory_space<vmem>>, vector<1x1x128xf32>
    %235 = vector.shape_cast %234 : vector<1x1x128xf32> to vector<1x128xf32>
    %236 = vector.broadcast %235 : vector<1x128xf32> to vector<8x128xf32>
    %237 = arith.addf %233, %236 : vector<8x128xf32>
    %238 = arith.mulf %237, %237 : vector<8x128xf32>
    %239 = arith.mulf %237, %238 : vector<8x128xf32>
    %cst_87 = arith.constant 4.471500e-02 : f32
    %240 = vector.broadcast %cst_87 : f32 to vector<8x128xf32>
    %241 = arith.mulf %240, %239 : vector<8x128xf32>
    %242 = arith.addf %237, %241 : vector<8x128xf32>
    %cst_88 = arith.constant 0.797884583 : f32
    %243 = vector.broadcast %cst_88 : f32 to vector<8x128xf32>
    %244 = arith.mulf %243, %242 : vector<8x128xf32>
    %245 = math.tanh %244 : vector<8x128xf32>
    %cst_89 = arith.constant 1.000000e+00 : f32
    %246 = vector.broadcast %cst_89 : f32 to vector<8x128xf32>
    %247 = arith.addf %246, %245 : vector<8x128xf32>
    %cst_90 = arith.constant 5.000000e-01 : f32
    %248 = vector.broadcast %cst_90 : f32 to vector<8x128xf32>
    %249 = arith.mulf %248, %247 : vector<8x128xf32>
    %250 = arith.mulf %237, %249 : vector<8x128xf32>
    %251 = arith.truncf %250 : vector<8x128xf32> to vector<8x128xbf16>
    %c0_91 = arith.constant 0 : index
    %c0_92 = arith.constant 0 : index
    %c0_93 = arith.constant 0 : index
    %252 = vector.load %arg12[%c0_91, %c0_92, %c0_93] : memref<1x128x32xbf16, #tpu.memory_space<vmem>>, vector<1x128x32xbf16>
    %253 = vector.shape_cast %252 : vector<1x128x32xbf16> to vector<128x32xbf16>
    %cst_94 = arith.constant dense<0.000000e+00> : vector<8x32xf32>
    %254 = tpu.matmul %251, %253, %cst_94 {dimension_numbers = #tpu.dot_dimension_numbers<[1], [0], [0], [1], [0, 0, 1, 1], [], []>} : vector<8x128xbf16>, vector<128x32xbf16>, vector<8x32xf32> -> vector<8x32xf32>
    %255 = arith.addf %203, %254 : vector<8x32xf32>
    %c0_95 = arith.constant 0 : index
    %c0_96 = arith.constant 0 : index
    %c0_97 = arith.constant 0 : index
    %256 = vector.load %arg13[%c0_95, %c0_96, %c0_97] : memref<1x1x32xf32, #tpu.memory_space<vmem>>, vector<1x1x32xf32>
    %257 = vector.shape_cast %256 : vector<1x1x32xf32> to vector<1x32xf32>
    %258 = vector.broadcast %257 : vector<1x32xf32> to vector<8x32xf32>
    %259 = arith.addf %255, %258 : vector<8x32xf32>
    %c0_98 = arith.constant 0 : index
    %c0_99 = arith.constant 0 : index
    %260 = vector.load %arg17[%c0_98, %c0_99] : memref<8x32xf32, #tpu.memory_space<vmem>>, vector<8x32xf32>
    tpu.vector_store %arg17[%c0_98, %c0_99], %259 {strides = array<i32>} : memref<8x32xf32, #tpu.memory_space<vmem>>, vector<8x32xf32>,
    %c0_i32_100 = arith.constant 0 : i32
    %261 = arith.cmpi eq, %arg1, %c0_i32_100 : i32
    %262 = arith.extui %261 : i1 to i32
    %c0_i32_101 = arith.constant 0 : i32
    %263 = arith.cmpi ne, %262, %c0_i32_101 : i32
    scf.if %263 {
      %c0_102 = arith.constant 0 : index
      %c0_103 = arith.constant 0 : index
      %264 = vector.load %arg14[%c0_102, %c0_103] : memref<1x32xf32, #tpu.memory_space<vmem>>, vector<1x32xf32>
      %c0_104 = arith.constant 0 : index
      %c0_105 = arith.constant 0 : index
      %265 = vector.load %arg15[%c0_104, %c0_105] : memref<1x32xf32, #tpu.memory_space<vmem>>, vector<1x32xf32>
      %cst_106 = arith.constant dense<0.000000e+00> : vector<8xf32>
      %266 = vector.multi_reduction <add>, %259, %cst_106 [1] : vector<8x32xf32> to vector<8xf32>
      %267 = vector.shape_cast %266 : vector<8xf32> to vector<8x1xf32>
      %cst_107 = arith.constant 3.200000e+01 : f32
      %268 = vector.broadcast %cst_107 : f32 to vector<8x1xf32>
      %269 = arith.divf %267, %268 : vector<8x1xf32>
      %270 = vector.broadcast %269 : vector<8x1xf32> to vector<8x32xf32>
      %271 = arith.subf %259, %270 : vector<8x32xf32>
      %272 = arith.mulf %271, %271 : vector<8x32xf32>
      %cst_108 = arith.constant dense<0.000000e+00> : vector<8xf32>
      %273 = vector.multi_reduction <add>, %272, %cst_108 [1] : vector<8x32xf32> to vector<8xf32>
      %274 = vector.shape_cast %273 : vector<8xf32> to vector<8x1xf32>
      %cst_109 = arith.constant 3.200000e+01 : f32
      %275 = vector.broadcast %cst_109 : f32 to vector<8x1xf32>
      %276 = arith.divf %274, %275 : vector<8x1xf32>
      %277 = vector.broadcast %269 : vector<8x1xf32> to vector<8x32xf32>
      %278 = arith.subf %259, %277 : vector<8x32xf32>
      %cst_110 = arith.constant 9.99999974E-6 : f32
      %279 = vector.broadcast %cst_110 : f32 to vector<8x1xf32>
      %280 = arith.addf %276, %279 : vector<8x1xf32>
      %281 = math.rsqrt %280 : vector<8x1xf32>
      %282 = vector.broadcast %281 : vector<8x1xf32> to vector<8x32xf32>
      %283 = arith.mulf %278, %282 : vector<8x32xf32>
      %284 = vector.broadcast %264 : vector<1x32xf32> to vector<8x32xf32>
      %285 = arith.mulf %283, %284 : vector<8x32xf32>
      %286 = vector.broadcast %265 : vector<1x32xf32> to vector<8x32xf32>
      %287 = arith.addf %285, %286 : vector<8x32xf32>
      %c0_111 = arith.constant 0 : index
      %c0_112 = arith.constant 0 : index
      %288 = vector.load %arg16[%c0_111, %c0_112] : memref<8x32xf32, #tpu.memory_space<vmem>>, vector<8x32xf32>
      tpu.vector_store %arg16[%c0_111, %c0_112], %287 {strides = array<i32>} : memref<8x32xf32, #tpu.memory_space<vmem>>, vector<8x32xf32>,
    } else {
    }
    return
  }
  func.func @transform_0(%arg0: i32, %arg1: i32) -> (i32, i32) {
    %c0_i32 = arith.constant 0 : i32
    %c0_i32_0 = arith.constant 0 : i32
    return %arg0, %c0_i32 : i32, i32
  }
  func.func @transform_1(%arg0: i32, %arg1: i32) -> (i32, i32, i32) {
    %c0_i32 = arith.constant 0 : i32
    %c0_i32_0 = arith.constant 0 : i32
    %c0_i32_1 = arith.constant 0 : i32
    return %arg1, %c0_i32, %c0_i32_0 : i32, i32, i32
  }
  func.func @transform_2(%arg0: i32, %arg1: i32) -> (i32, i32, i32) {
    %c0_i32 = arith.constant 0 : i32
    %c0_i32_0 = arith.constant 0 : i32
    %c0_i32_1 = arith.constant 0 : i32
    return %arg1, %c0_i32, %c0_i32_0 : i32, i32, i32
  }
  func.func @transform_3(%arg0: i32, %arg1: i32) -> (i32, i32, i32) {
    %c0_i32 = arith.constant 0 : i32
    %c0_i32_0 = arith.constant 0 : i32
    %c0_i32_1 = arith.constant 0 : i32
    return %arg1, %c0_i32, %c0_i32_0 : i32, i32, i32
  }
  func.func @transform_4(%arg0: i32, %arg1: i32) -> (i32, i32, i32) {
    %c0_i32 = arith.constant 0 : i32
    %c0_i32_0 = arith.constant 0 : i32
    %c0_i32_1 = arith.constant 0 : i32
    return %arg1, %c0_i32, %c0_i32_0 : i32, i32, i32
  }
  func.func @transform_5(%arg0: i32, %arg1: i32) -> (i32, i32, i32) {
    %c0_i32 = arith.constant 0 : i32
    %c0_i32_0 = arith.constant 0 : i32
    %c0_i32_1 = arith.constant 0 : i32
    return %arg1, %c0_i32, %c0_i32_0 : i32, i32, i32
  }
  func.func @transform_6(%arg0: i32, %arg1: i32) -> (i32, i32, i32) {
    %c0_i32 = arith.constant 0 : i32
    %c0_i32_0 = arith.constant 0 : i32
    %c0_i32_1 = arith.constant 0 : i32
    return %arg1, %c0_i32, %c0_i32_0 : i32, i32, i32
  }
  func.func @transform_7(%arg0: i32, %arg1: i32) -> (i32, i32, i32) {
    %c0_i32 = arith.constant 0 : i32
    %c0_i32_0 = arith.constant 0 : i32
    %c0_i32_1 = arith.constant 0 : i32
    return %arg1, %c0_i32, %c0_i32_0 : i32, i32, i32
  }
  func.func @transform_8(%arg0: i32, %arg1: i32) -> (i32, i32, i32) {
    %c0_i32 = arith.constant 0 : i32
    %c0_i32_0 = arith.constant 0 : i32
    %c0_i32_1 = arith.constant 0 : i32
    return %arg1, %c0_i32, %c0_i32_0 : i32, i32, i32
  }
  func.func @transform_9(%arg0: i32, %arg1: i32) -> (i32, i32, i32) {
    %c0_i32 = arith.constant 0 : i32
    %c0_i32_0 = arith.constant 0 : i32
    %c0_i32_1 = arith.constant 0 : i32
    return %arg1, %c0_i32, %c0_i32_0 : i32, i32, i32
  }
  func.func @transform_10(%arg0: i32, %arg1: i32) -> (i32, i32, i32) {
    %c0_i32 = arith.constant 0 : i32
    %c0_i32_0 = arith.constant 0 : i32
    %c0_i32_1 = arith.constant 0 : i32
    return %arg1, %c0_i32, %c0_i32_0 : i32, i32, i32
  }
  func.func @transform_11(%arg0: i32, %arg1: i32) -> (i32, i32, i32) {
    %c0_i32 = arith.constant 0 : i32
    %c0_i32_0 = arith.constant 0 : i32
    %c0_i32_1 = arith.constant 0 : i32
    return %arg1, %c0_i32, %c0_i32_0 : i32, i32, i32
  }
  func.func @transform_12(%arg0: i32, %arg1: i32) -> (i32, i32) {
    %c0_i32 = arith.constant 0 : i32
    %c0_i32_0 = arith.constant 0 : i32
    %c0_i32_1 = arith.constant 0 : i32
    return %c0_i32, %c0_i32_0 : i32, i32
  }
  func.func @transform_13(%arg0: i32, %arg1: i32) -> (i32, i32) {
    %c0_i32 = arith.constant 0 : i32
    %c0_i32_0 = arith.constant 0 : i32
    %c0_i32_1 = arith.constant 0 : i32
    return %c0_i32, %c0_i32_0 : i32, i32
  }
  func.func @transform_14(%arg0: i32, %arg1: i32) -> (i32, i32) {
    %c0_i32 = arith.constant 0 : i32
    %c0_i32_0 = arith.constant 0 : i32
    return %arg0, %c0_i32 : i32, i32
  }
}

module attributes {stable_mosaic.version = 11 : i64} {
  func.func @_linear_add_kernel(%arg0: i32, %arg1: memref<1x4x32xf32, #tpu.memory_space<vmem>>, %arg2: memref<32x16xbf16, #tpu.memory_space<vmem>>, %arg3: memref<1x16xf32, #tpu.memory_space<vmem>>, %arg4: memref<1x4x16xf32, #tpu.memory_space<vmem>>, %arg5: memref<1x4x16xf32, #tpu.memory_space<vmem>>) attributes {dimension_semantics = [#tpu.dimension_semantics<parallel>], iteration_bounds = array<i64: 2>, scalar_prefetch = 0 : i64, scratch_operands = 0 : i64, tpu.core_type = #tpu.core_type<tc>, window_params = [{transform_indices = @transform_0, window_bounds = array<i64: 1, 4, 32>}, {pipeline_mode = #tpu.pipeline_mode<synchronous>, transform_indices = @transform_1, window_bounds = array<i64: 32, 16>}, {pipeline_mode = #tpu.pipeline_mode<synchronous>, transform_indices = @transform_2, window_bounds = array<i64: 1, 16>}, {transform_indices = @transform_3, window_bounds = array<i64: 1, 4, 16>}, {transform_indices = @transform_4, window_bounds = array<i64: 1, 4, 16>}]} {
    %c0 = arith.constant 0 : index
    %c0_0 = arith.constant 0 : index
    %c0_1 = arith.constant 0 : index
    %0 = vector.load %arg1[%c0, %c0_0, %c0_1] : memref<1x4x32xf32, #tpu.memory_space<vmem>>, vector<1x4x32xf32>
    %1 = vector.shape_cast %0 : vector<1x4x32xf32> to vector<4x32xf32>
    %2 = arith.truncf %1 : vector<4x32xf32> to vector<4x32xbf16>
    %c0_2 = arith.constant 0 : index
    %c0_3 = arith.constant 0 : index
    %3 = vector.load %arg2[%c0_2, %c0_3] : memref<32x16xbf16, #tpu.memory_space<vmem>>, vector<32x16xbf16>
    %cst = arith.constant dense<0.000000e+00> : vector<4x16xf32>
    %4 = tpu.matmul %2, %3, %cst {dimension_numbers = #tpu.dot_dimension_numbers<[1], [0], [0], [1], [0, 0, 1, 1], [], []>} : vector<4x32xbf16>, vector<32x16xbf16>, vector<4x16xf32> -> vector<4x16xf32>
    %c0_4 = arith.constant 0 : index
    %c0_5 = arith.constant 0 : index
    %5 = vector.load %arg3[%c0_4, %c0_5] : memref<1x16xf32, #tpu.memory_space<vmem>>, vector<1x16xf32>
    %6 = vector.broadcast %5 : vector<1x16xf32> to vector<4x16xf32>
    %7 = arith.addf %4, %6 : vector<4x16xf32>
    %c0_6 = arith.constant 0 : index
    %c0_7 = arith.constant 0 : index
    %c0_8 = arith.constant 0 : index
    %8 = vector.load %arg4[%c0_6, %c0_7, %c0_8] : memref<1x4x16xf32, #tpu.memory_space<vmem>>, vector<1x4x16xf32>
    %9 = vector.shape_cast %8 : vector<1x4x16xf32> to vector<4x16xf32>
    %10 = arith.addf %7, %9 : vector<4x16xf32>
    %c0_9 = arith.constant 0 : index
    %c0_10 = arith.constant 0 : index
    %c0_11 = arith.constant 0 : index
    %11 = vector.load %arg5[%c0_9, %c0_10, %c0_11] : memref<1x4x16xf32, #tpu.memory_space<vmem>>, vector<1x4x16xf32>
    %12 = vector.shape_cast %11 : vector<1x4x16xf32> to vector<4x16xf32>
    %13 = vector.shape_cast %10 : vector<4x16xf32> to vector<1x4x16xf32>
    tpu.vector_store %arg5[%c0_9, %c0_10, %c0_11], %13 {strides = array<i32>} : memref<1x4x16xf32, #tpu.memory_space<vmem>>, vector<1x4x16xf32>,
    return
  }
  func.func @transform_0(%arg0: i32) -> (i32, i32, i32) {
    %c0_i32 = arith.constant 0 : i32
    %c0_i32_0 = arith.constant 0 : i32
    %c0_i32_1 = arith.constant 0 : i32
    return %arg0, %c0_i32, %c0_i32_0 : i32, i32, i32
  }
  func.func @transform_1(%arg0: i32) -> (i32, i32) {
    %c0_i32 = arith.constant 0 : i32
    %c0_i32_0 = arith.constant 0 : i32
    %c0_i32_1 = arith.constant 0 : i32
    return %c0_i32, %c0_i32_0 : i32, i32
  }
  func.func @transform_2(%arg0: i32) -> (i32, i32) {
    %c0_i32 = arith.constant 0 : i32
    %c0_i32_0 = arith.constant 0 : i32
    %c0_i32_1 = arith.constant 0 : i32
    return %c0_i32, %c0_i32_0 : i32, i32
  }
  func.func @transform_3(%arg0: i32) -> (i32, i32, i32) {
    %c0_i32 = arith.constant 0 : i32
    %c0_i32_0 = arith.constant 0 : i32
    %c0_i32_1 = arith.constant 0 : i32
    return %arg0, %c0_i32, %c0_i32_0 : i32, i32, i32
  }
  func.func @transform_4(%arg0: i32) -> (i32, i32, i32) {
    %c0_i32 = arith.constant 0 : i32
    %c0_i32_0 = arith.constant 0 : i32
    %c0_i32_1 = arith.constant 0 : i32
    return %arg0, %c0_i32, %c0_i32_0 : i32, i32, i32
  }
}

module attributes {stable_mosaic.version = 11 : i64} {
  func.func @_transformer_kernel(%arg0: i32, %arg1: i32, %arg2: memref<32x16xf32, #tpu.memory_space<vmem>>, %arg3: memref<1x1x16xf32, #tpu.memory_space<vmem>>, %arg4: memref<1x1x16xf32, #tpu.memory_space<vmem>>, %arg5: memref<1x16x48xbf16, #tpu.memory_space<vmem>>, %arg6: memref<1x16x16xbf16, #tpu.memory_space<vmem>>, %arg7: memref<1x1x16xf32, #tpu.memory_space<vmem>>, %arg8: memref<1x1x16xf32, #tpu.memory_space<vmem>>, %arg9: memref<1x1x16xf32, #tpu.memory_space<vmem>>, %arg10: memref<1x16x64xbf16, #tpu.memory_space<vmem>>, %arg11: memref<1x1x64xf32, #tpu.memory_space<vmem>>, %arg12: memref<1x64x16xbf16, #tpu.memory_space<vmem>>, %arg13: memref<1x1x16xf32, #tpu.memory_space<vmem>>, %arg14: memref<1x16xf32, #tpu.memory_space<vmem>>, %arg15: memref<1x16xf32, #tpu.memory_space<vmem>>, %arg16: memref<32x16xf32, #tpu.memory_space<vmem>>, %arg17: memref<32x16xf32, #tpu.memory_space<vmem>>, %arg18: memref<32x16xf32, #tpu.memory_space<vmem>>) attributes {dimension_semantics = [#tpu.dimension_semantics<arbitrary>, #tpu.dimension_semantics<arbitrary>], iteration_bounds = array<i64: 1, 1>, scalar_prefetch = 0 : i64, scratch_operands = 2 : i64, tpu.core_type = #tpu.core_type<tc>, window_params = [{transform_indices = @transform_0, window_bounds = array<i64: 32, 16>}, {transform_indices = @transform_1, window_bounds = array<i64: 1, 1, 16>}, {transform_indices = @transform_2, window_bounds = array<i64: 1, 1, 16>}, {transform_indices = @transform_3, window_bounds = array<i64: 1, 16, 48>}, {transform_indices = @transform_4, window_bounds = array<i64: 1, 16, 16>}, {transform_indices = @transform_5, window_bounds = array<i64: 1, 1, 16>}, {transform_indices = @transform_6, window_bounds = array<i64: 1, 1, 16>}, {transform_indices = @transform_7, window_bounds = array<i64: 1, 1, 16>}, {transform_indices = @transform_8, window_bounds = array<i64: 1, 16, 64>}, {transform_indices = @transform_9, window_bounds = array<i64: 1, 1, 64>}, {transform_indices = @transform_10, window_bounds = array<i64: 1, 64, 16>}, {transform_indices = @transform_11, window_bounds = array<i64: 1, 1, 16>}, {pipeline_mode = #tpu.pipeline_mode<synchronous>, transform_indices = @transform_12, window_bounds = array<i64: 1, 16>}, {pipeline_mode = #tpu.pipeline_mode<synchronous>, transform_indices = @transform_13, window_bounds = array<i64: 1, 16>}, {transform_indices = @transform_14, window_bounds = array<i64: 32, 16>}]} {
    %c0_i32 = arith.constant 0 : i32
    %0 = arith.cmpi eq, %arg1, %c0_i32 : i32
    %1 = arith.extui %0 : i1 to i32
    %c0_i32_0 = arith.constant 0 : i32
    %2 = arith.cmpi ne, %1, %c0_i32_0 : i32
    scf.if %2 {
      %c0_80 = arith.constant 0 : index
      %c0_81 = arith.constant 0 : index
      %184 = vector.load %arg2[%c0_80, %c0_81] : memref<32x16xf32, #tpu.memory_space<vmem>>, vector<32x16xf32>
      %c0_82 = arith.constant 0 : index
      %c0_83 = arith.constant 0 : index
      %185 = vector.load %arg17[%c0_82, %c0_83] : memref<32x16xf32, #tpu.memory_space<vmem>>, vector<32x16xf32>
      tpu.vector_store %arg17[%c0_82, %c0_83], %184 {strides = array<i32>} : memref<32x16xf32, #tpu.memory_space<vmem>>, vector<32x16xf32>,
    } else {
    }
    %c0 = arith.constant 0 : index
    %c0_1 = arith.constant 0 : index
    %3 = vector.load %arg17[%c0, %c0_1] : memref<32x16xf32, #tpu.memory_space<vmem>>, vector<32x16xf32>
    %c0_2 = arith.constant 0 : index
    %c0_3 = arith.constant 0 : index
    %c0_4 = arith.constant 0 : index
    %4 = vector.load %arg3[%c0_2, %c0_3, %c0_4] : memref<1x1x16xf32, #tpu.memory_space<vmem>>, vector<1x1x16xf32>
    %5 = vector.shape_cast %4 : vector<1x1x16xf32> to vector<1x16xf32>
    %c0_5 = arith.constant 0 : index
    %c0_6 = arith.constant 0 : index
    %c0_7 = arith.constant 0 : index
    %6 = vector.load %arg4[%c0_5, %c0_6, %c0_7] : memref<1x1x16xf32, #tpu.memory_space<vmem>>, vector<1x1x16xf32>
    %7 = vector.shape_cast %6 : vector<1x1x16xf32> to vector<1x16xf32>
    %cst = arith.constant dense<0.000000e+00> : vector<32xf32>
    %8 = vector.multi_reduction <add>, %3, %cst [1] : vector<32x16xf32> to vector<32xf32>
    %9 = vector.shape_cast %8 : vector<32xf32> to vector<32x1xf32>
    %cst_8 = arith.constant 1.600000e+01 : f32
    %10 = vector.broadcast %cst_8 : f32 to vector<32x1xf32>
    %11 = arith.divf %9, %10 : vector<32x1xf32>
    %12 = vector.broadcast %11 : vector<32x1xf32> to vector<32x16xf32>
    %13 = arith.subf %3, %12 : vector<32x16xf32>
    %14 = arith.mulf %13, %13 : vector<32x16xf32>
    %cst_9 = arith.constant dense<0.000000e+00> : vector<32xf32>
    %15 = vector.multi_reduction <add>, %14, %cst_9 [1] : vector<32x16xf32> to vector<32xf32>
    %16 = vector.shape_cast %15 : vector<32xf32> to vector<32x1xf32>
    %cst_10 = arith.constant 1.600000e+01 : f32
    %17 = vector.broadcast %cst_10 : f32 to vector<32x1xf32>
    %18 = arith.divf %16, %17 : vector<32x1xf32>
    %19 = vector.broadcast %11 : vector<32x1xf32> to vector<32x16xf32>
    %20 = arith.subf %3, %19 : vector<32x16xf32>
    %cst_11 = arith.constant 9.99999974E-6 : f32
    %21 = vector.broadcast %cst_11 : f32 to vector<32x1xf32>
    %22 = arith.addf %18, %21 : vector<32x1xf32>
    %23 = math.rsqrt %22 : vector<32x1xf32>
    %24 = vector.broadcast %23 : vector<32x1xf32> to vector<32x16xf32>
    %25 = arith.mulf %20, %24 : vector<32x16xf32>
    %26 = vector.broadcast %5 : vector<1x16xf32> to vector<32x16xf32>
    %27 = arith.mulf %25, %26 : vector<32x16xf32>
    %28 = vector.broadcast %7 : vector<1x16xf32> to vector<32x16xf32>
    %29 = arith.addf %27, %28 : vector<32x16xf32>
    %30 = arith.truncf %29 : vector<32x16xf32> to vector<32x16xbf16>
    %c0_12 = arith.constant 0 : index
    %c0_13 = arith.constant 0 : index
    %c0_14 = arith.constant 0 : index
    %31 = vector.load %arg5[%c0_12, %c0_13, %c0_14] : memref<1x16x48xbf16, #tpu.memory_space<vmem>>, vector<1x16x48xbf16>
    %32 = vector.shape_cast %31 : vector<1x16x48xbf16> to vector<16x48xbf16>
    %cst_15 = arith.constant dense<0.000000e+00> : vector<32x48xf32>
    %33 = tpu.matmul %30, %32, %cst_15 {dimension_numbers = #tpu.dot_dimension_numbers<[1], [0], [0], [1], [0, 0, 1, 1], [], []>} : vector<32x16xbf16>, vector<16x48xbf16>, vector<32x48xf32> -> vector<32x48xf32>
    %34 = vector.extract_strided_slice %33 {offsets = [0, 0], sizes = [16, 8], strides = [1, 1]} : vector<32x48xf32> to vector<16x8xf32>
    %35 = arith.truncf %34 : vector<16x8xf32> to vector<16x8xbf16>
    %36 = vector.extract_strided_slice %33 {offsets = [0, 16], sizes = [16, 8], strides = [1, 1]} : vector<32x48xf32> to vector<16x8xf32>
    %37 = arith.truncf %36 : vector<16x8xf32> to vector<16x8xbf16>
    %38 = vector.extract_strided_slice %33 {offsets = [0, 32], sizes = [16, 8], strides = [1, 1]} : vector<32x48xf32> to vector<16x8xf32>
    %39 = arith.truncf %38 : vector<16x8xf32> to vector<16x8xbf16>
    %cst_16 = arith.constant dense<0.000000e+00> : vector<16x16xf32>
    %40 = tpu.matmul %35, %37, %cst_16 {dimension_numbers = #tpu.dot_dimension_numbers<[1], [1], [0], [0], [0, 0, 1, 0], [], []>} : vector<16x8xbf16>, vector<16x8xbf16>, vector<16x16xf32> -> vector<16x16xf32>
    %cst_17 = arith.constant dense<0xFF800000> : vector<16xf32>
    %41 = vector.multi_reduction <maximumf>, %40, %cst_17 [1] : vector<16x16xf32> to vector<16xf32>
    %42 = vector.shape_cast %41 : vector<16xf32> to vector<16x1xf32>
    %43 = vector.broadcast %42 : vector<16x1xf32> to vector<16x16xf32>
    %44 = arith.subf %40, %43 : vector<16x16xf32>
    %45 = math.exp %44 : vector<16x16xf32>
    %cst_18 = arith.constant dense<0.000000e+00> : vector<16xf32>
    %46 = vector.multi_reduction <add>, %45, %cst_18 [1] : vector<16x16xf32> to vector<16xf32>
    %47 = vector.shape_cast %46 : vector<16xf32> to vector<16x1xf32>
    %48 = tpu.reciprocal %47 {approx = true} : vector<16x1xf32> -> vector<16x1xf32>
    %49 = vector.broadcast %48 : vector<16x1xf32> to vector<16x16xf32>
    %50 = arith.mulf %45, %49 : vector<16x16xf32>
    %51 = arith.truncf %50 : vector<16x16xf32> to vector<16x16xbf16>
    %cst_19 = arith.constant dense<0.000000e+00> : vector<16x8xf32>
    %52 = tpu.matmul %51, %39, %cst_19 {dimension_numbers = #tpu.dot_dimension_numbers<[1], [0], [0], [1], [0, 0, 1, 1], [], []>} : vector<16x16xbf16>, vector<16x8xbf16>, vector<16x8xf32> -> vector<16x8xf32>
    %c0_20 = arith.constant 0 : index
    %c0_21 = arith.constant 0 : index
    %53 = vector.load %arg18[%c0_20, %c0_21] : memref<32x16xf32, #tpu.memory_space<vmem>>, vector<16x8xf32>
    tpu.vector_store %arg18[%c0_20, %c0_21], %52 {strides = array<i32>} : memref<32x16xf32, #tpu.memory_space<vmem>>, vector<16x8xf32>,
    %54 = vector.extract_strided_slice %33 {offsets = [0, 8], sizes = [16, 8], strides = [1, 1]} : vector<32x48xf32> to vector<16x8xf32>
    %55 = arith.truncf %54 : vector<16x8xf32> to vector<16x8xbf16>
    %56 = vector.extract_strided_slice %33 {offsets = [0, 24], sizes = [16, 8], strides = [1, 1]} : vector<32x48xf32> to vector<16x8xf32>
    %57 = arith.truncf %56 : vector<16x8xf32> to vector<16x8xbf16>
    %58 = vector.extract_strided_slice %33 {offsets = [0, 40], sizes = [16, 8], strides = [1, 1]} : vector<32x48xf32> to vector<16x8xf32>
    %59 = arith.truncf %58 : vector<16x8xf32> to vector<16x8xbf16>
    %cst_22 = arith.constant dense<0.000000e+00> : vector<16x16xf32>
    %60 = tpu.matmul %55, %57, %cst_22 {dimension_numbers = #tpu.dot_dimension_numbers<[1], [1], [0], [0], [0, 0, 1, 0], [], []>} : vector<16x8xbf16>, vector<16x8xbf16>, vector<16x16xf32> -> vector<16x16xf32>
    %cst_23 = arith.constant dense<0xFF800000> : vector<16xf32>
    %61 = vector.multi_reduction <maximumf>, %60, %cst_23 [1] : vector<16x16xf32> to vector<16xf32>
    %62 = vector.shape_cast %61 : vector<16xf32> to vector<16x1xf32>
    %63 = vector.broadcast %62 : vector<16x1xf32> to vector<16x16xf32>
    %64 = arith.subf %60, %63 : vector<16x16xf32>
    %65 = math.exp %64 : vector<16x16xf32>
    %cst_24 = arith.constant dense<0.000000e+00> : vector<16xf32>
    %66 = vector.multi_reduction <add>, %65, %cst_24 [1] : vector<16x16xf32> to vector<16xf32>
    %67 = vector.shape_cast %66 : vector<16xf32> to vector<16x1xf32>
    %68 = tpu.reciprocal %67 {approx = true} : vector<16x1xf32> -> vector<16x1xf32>
    %69 = vector.broadcast %68 : vector<16x1xf32> to vector<16x16xf32>
    %70 = arith.mulf %65, %69 : vector<16x16xf32>
    %71 = arith.truncf %70 : vector<16x16xf32> to vector<16x16xbf16>
    %cst_25 = arith.constant dense<0.000000e+00> : vector<16x8xf32>
    %72 = tpu.matmul %71, %59, %cst_25 {dimension_numbers = #tpu.dot_dimension_numbers<[1], [0], [0], [1], [0, 0, 1, 1], [], []>} : vector<16x16xbf16>, vector<16x8xbf16>, vector<16x8xf32> -> vector<16x8xf32>
    %c0_26 = arith.constant 0 : index
    %c8 = arith.constant 8 : index
    %73 = vector.load %arg18[%c0_26, %c8] : memref<32x16xf32, #tpu.memory_space<vmem>>, vector<16x8xf32>
    tpu.vector_store %arg18[%c0_26, %c8], %72 {strides = array<i32>} : memref<32x16xf32, #tpu.memory_space<vmem>>, vector<16x8xf32>,
    %74 = vector.extract_strided_slice %33 {offsets = [16, 0], sizes = [16, 8], strides = [1, 1]} : vector<32x48xf32> to vector<16x8xf32>
    %75 = arith.truncf %74 : vector<16x8xf32> to vector<16x8xbf16>
    %76 = vector.extract_strided_slice %33 {offsets = [16, 16], sizes = [16, 8], strides = [1, 1]} : vector<32x48xf32> to vector<16x8xf32>
    %77 = arith.truncf %76 : vector<16x8xf32> to vector<16x8xbf16>
    %78 = vector.extract_strided_slice %33 {offsets = [16, 32], sizes = [16, 8], strides = [1, 1]} : vector<32x48xf32> to vector<16x8xf32>
    %79 = arith.truncf %78 : vector<16x8xf32> to vector<16x8xbf16>
    %cst_27 = arith.constant dense<0.000000e+00> : vector<16x16xf32>
    %80 = tpu.matmul %75, %77, %cst_27 {dimension_numbers = #tpu.dot_dimension_numbers<[1], [1], [0], [0], [0, 0, 1, 0], [], []>} : vector<16x8xbf16>, vector<16x8xbf16>, vector<16x16xf32> -> vector<16x16xf32>
    %cst_28 = arith.constant dense<0xFF800000> : vector<16xf32>
    %81 = vector.multi_reduction <maximumf>, %80, %cst_28 [1] : vector<16x16xf32> to vector<16xf32>
    %82 = vector.shape_cast %81 : vector<16xf32> to vector<16x1xf32>
    %83 = vector.broadcast %82 : vector<16x1xf32> to vector<16x16xf32>
    %84 = arith.subf %80, %83 : vector<16x16xf32>
    %85 = math.exp %84 : vector<16x16xf32>
    %cst_29 = arith.constant dense<0.000000e+00> : vector<16xf32>
    %86 = vector.multi_reduction <add>, %85, %cst_29 [1] : vector<16x16xf32> to vector<16xf32>
    %87 = vector.shape_cast %86 : vector<16xf32> to vector<16x1xf32>
    %88 = tpu.reciprocal %87 {approx = true} : vector<16x1xf32> -> vector<16x1xf32>
    %89 = vector.broadcast %88 : vector<16x1xf32> to vector<16x16xf32>
    %90 = arith.mulf %85, %89 : vector<16x16xf32>
    %91 = arith.truncf %90 : vector<16x16xf32> to vector<16x16xbf16>
    %cst_30 = arith.constant dense<0.000000e+00> : vector<16x8xf32>
    %92 = tpu.matmul %91, %79, %cst_30 {dimension_numbers = #tpu.dot_dimension_numbers<[1], [0], [0], [1], [0, 0, 1, 1], [], []>} : vector<16x16xbf16>, vector<16x8xbf16>, vector<16x8xf32> -> vector<16x8xf32>
    %c16 = arith.constant 16 : index
    %c0_31 = arith.constant 0 : index
    %93 = vector.load %arg18[%c16, %c0_31] : memref<32x16xf32, #tpu.memory_space<vmem>>, vector<16x8xf32>
    tpu.vector_store %arg18[%c16, %c0_31], %92 {strides = array<i32>} : memref<32x16xf32, #tpu.memory_space<vmem>>, vector<16x8xf32>,
    %94 = vector.extract_strided_slice %33 {offsets = [16, 8], sizes = [16, 8], strides = [1, 1]} : vector<32x48xf32> to vector<16x8xf32>
    %95 = arith.truncf %94 : vector<16x8xf32> to vector<16x8xbf16>
    %96 = vector.extract_strided_slice %33 {offsets = [16, 24], sizes = [16, 8], strides = [1, 1]} : vector<32x48xf32> to vector<16x8xf32>
    %97 = arith.truncf %96 : vector<16x8xf32> to vector<16x8xbf16>
    %98 = vector.extract_strided_slice %33 {offsets = [16, 40], sizes = [16, 8], strides = [1, 1]} : vector<32x48xf32> to vector<16x8xf32>
    %99 = arith.truncf %98 : vector<16x8xf32> to vector<16x8xbf16>
    %cst_32 = arith.constant dense<0.000000e+00> : vector<16x16xf32>
    %100 = tpu.matmul %95, %97, %cst_32 {dimension_numbers = #tpu.dot_dimension_numbers<[1], [1], [0], [0], [0, 0, 1, 0], [], []>} : vector<16x8xbf16>, vector<16x8xbf16>, vector<16x16xf32> -> vector<16x16xf32>
    %cst_33 = arith.constant dense<0xFF800000> : vector<16xf32>
    %101 = vector.multi_reduction <maximumf>, %100, %cst_33 [1] : vector<16x16xf32> to vector<16xf32>
    %102 = vector.shape_cast %101 : vector<16xf32> to vector<16x1xf32>
    %103 = vector.broadcast %102 : vector<16x1xf32> to vector<16x16xf32>
    %104 = arith.subf %100, %103 : vector<16x16xf32>
    %105 = math.exp %104 : vector<16x16xf32>
    %cst_34 = arith.constant dense<0.000000e+00> : vector<16xf32>
    %106 = vector.multi_reduction <add>, %105, %cst_34 [1] : vector<16x16xf32> to vector<16xf32>
    %107 = vector.shape_cast %106 : vector<16xf32> to vector<16x1xf32>
    %108 = tpu.reciprocal %107 {approx = true} : vector<16x1xf32> -> vector<16x1xf32>
    %109 = vector.broadcast %108 : vector<16x1xf32> to vector<16x16xf32>
    %110 = arith.mulf %105, %109 : vector<16x16xf32>
    %111 = arith.truncf %110 : vector<16x16xf32> to vector<16x16xbf16>
    %cst_35 = arith.constant dense<0.000000e+00> : vector<16x8xf32>
    %112 = tpu.matmul %111, %99, %cst_35 {dimension_numbers = #tpu.dot_dimension_numbers<[1], [0], [0], [1], [0, 0, 1, 1], [], []>} : vector<16x16xbf16>, vector<16x8xbf16>, vector<16x8xf32> -> vector<16x8xf32>
    %c16_36 = arith.constant 16 : index
    %c8_37 = arith.constant 8 : index
    %113 = vector.load %arg18[%c16_36, %c8_37] : memref<32x16xf32, #tpu.memory_space<vmem>>, vector<16x8xf32>
    tpu.vector_store %arg18[%c16_36, %c8_37], %112 {strides = array<i32>} : memref<32x16xf32, #tpu.memory_space<vmem>>, vector<16x8xf32>,
    %c0_38 = arith.constant 0 : index
    %c0_39 = arith.constant 0 : index
    %114 = vector.load %arg18[%c0_38, %c0_39] : memref<32x16xf32, #tpu.memory_space<vmem>>, vector<32x16xf32>
    %115 = arith.truncf %114 : vector<32x16xf32> to vector<32x16xbf16>
    %c0_40 = arith.constant 0 : index
    %c0_41 = arith.constant 0 : index
    %c0_42 = arith.constant 0 : index
    %116 = vector.load %arg6[%c0_40, %c0_41, %c0_42] : memref<1x16x16xbf16, #tpu.memory_space<vmem>>, vector<1x16x16xbf16>
    %117 = vector.shape_cast %116 : vector<1x16x16xbf16> to vector<16x16xbf16>
    %cst_43 = arith.constant dense<0.000000e+00> : vector<32x16xf32>
    %118 = tpu.matmul %115, %117, %cst_43 {dimension_numbers = #tpu.dot_dimension_numbers<[1], [0], [0], [1], [0, 0, 1, 1], [], []>} : vector<32x16xbf16>, vector<16x16xbf16>, vector<32x16xf32> -> vector<32x16xf32>
    %c0_44 = arith.constant 0 : index
    %c0_45 = arith.constant 0 : index
    %c0_46 = arith.constant 0 : index
    %119 = vector.load %arg7[%c0_44, %c0_45, %c0_46] : memref<1x1x16xf32, #tpu.memory_space<vmem>>, vector<1x1x16xf32>
    %120 = vector.shape_cast %119 : vector<1x1x16xf32> to vector<1x16xf32>
    %121 = vector.broadcast %120 : vector<1x16xf32> to vector<32x16xf32>
    %122 = arith.addf %118, %121 : vector<32x16xf32>
    %123 = arith.addf %3, %122 : vector<32x16xf32>
    %c0_47 = arith.constant 0 : index
    %c0_48 = arith.constant 0 : index
    %c0_49 = arith.constant 0 : index
    %124 = vector.load %arg8[%c0_47, %c0_48, %c0_49] : memref<1x1x16xf32, #tpu.memory_space<vmem>>, vector<1x1x16xf32>
    %125 = vector.shape_cast %124 : vector<1x1x16xf32> to vector<1x16xf32>
    %c0_50 = arith.constant 0 : index
    %c0_51 = arith.constant 0 : index
    %c0_52 = arith.constant 0 : index
    %126 = vector.load %arg9[%c0_50, %c0_51, %c0_52] : memref<1x1x16xf32, #tpu.memory_space<vmem>>, vector<1x1x16xf32>
    %127 = vector.shape_cast %126 : vector<1x1x16xf32> to vector<1x16xf32>
    %cst_53 = arith.constant dense<0.000000e+00> : vector<32xf32>
    %128 = vector.multi_reduction <add>, %123, %cst_53 [1] : vector<32x16xf32> to vector<32xf32>
    %129 = vector.shape_cast %128 : vector<32xf32> to vector<32x1xf32>
    %cst_54 = arith.constant 1.600000e+01 : f32
    %130 = vector.broadcast %cst_54 : f32 to vector<32x1xf32>
    %131 = arith.divf %129, %130 : vector<32x1xf32>
    %132 = vector.broadcast %131 : vector<32x1xf32> to vector<32x16xf32>
    %133 = arith.subf %123, %132 : vector<32x16xf32>
    %134 = arith.mulf %133, %133 : vector<32x16xf32>
    %cst_55 = arith.constant dense<0.000000e+00> : vector<32xf32>
    %135 = vector.multi_reduction <add>, %134, %cst_55 [1] : vector<32x16xf32> to vector<32xf32>
    %136 = vector.shape_cast %135 : vector<32xf32> to vector<32x1xf32>
    %cst_56 = arith.constant 1.600000e+01 : f32
    %137 = vector.broadcast %cst_56 : f32 to vector<32x1xf32>
    %138 = arith.divf %136, %137 : vector<32x1xf32>
    %139 = vector.broadcast %131 : vector<32x1xf32> to vector<32x16xf32>
    %140 = arith.subf %123, %139 : vector<32x16xf32>
    %cst_57 = arith.constant 9.99999974E-6 : f32
    %141 = vector.broadcast %cst_57 : f32 to vector<32x1xf32>
    %142 = arith.addf %138, %141 : vector<32x1xf32>
    %143 = math.rsqrt %142 : vector<32x1xf32>
    %144 = vector.broadcast %143 : vector<32x1xf32> to vector<32x16xf32>
    %145 = arith.mulf %140, %144 : vector<32x16xf32>
    %146 = vector.broadcast %125 : vector<1x16xf32> to vector<32x16xf32>
    %147 = arith.mulf %145, %146 : vector<32x16xf32>
    %148 = vector.broadcast %127 : vector<1x16xf32> to vector<32x16xf32>
    %149 = arith.addf %147, %148 : vector<32x16xf32>
    %150 = arith.truncf %149 : vector<32x16xf32> to vector<32x16xbf16>
    %c0_58 = arith.constant 0 : index
    %c0_59 = arith.constant 0 : index
    %c0_60 = arith.constant 0 : index
    %151 = vector.load %arg10[%c0_58, %c0_59, %c0_60] : memref<1x16x64xbf16, #tpu.memory_space<vmem>>, vector<1x16x64xbf16>
    %152 = vector.shape_cast %151 : vector<1x16x64xbf16> to vector<16x64xbf16>
    %cst_61 = arith.constant dense<0.000000e+00> : vector<32x64xf32>
    %153 = tpu.matmul %150, %152, %cst_61 {dimension_numbers = #tpu.dot_dimension_numbers<[1], [0], [0], [1], [0, 0, 1, 1], [], []>} : vector<32x16xbf16>, vector<16x64xbf16>, vector<32x64xf32> -> vector<32x64xf32>
    %c0_62 = arith.constant 0 : index
    %c0_63 = arith.constant 0 : index
    %c0_64 = arith.constant 0 : index
    %154 = vector.load %arg11[%c0_62, %c0_63, %c0_64] : memref<1x1x64xf32, #tpu.memory_space<vmem>>, vector<1x1x64xf32>
    %155 = vector.shape_cast %154 : vector<1x1x64xf32> to vector<1x64xf32>
    %156 = vector.broadcast %155 : vector<1x64xf32> to vector<32x64xf32>
    %157 = arith.addf %153, %156 : vector<32x64xf32>
    %158 = arith.mulf %157, %157 : vector<32x64xf32>
    %159 = arith.mulf %157, %158 : vector<32x64xf32>
    %cst_65 = arith.constant 4.471500e-02 : f32
    %160 = vector.broadcast %cst_65 : f32 to vector<32x64xf32>
    %161 = arith.mulf %160, %159 : vector<32x64xf32>
    %162 = arith.addf %157, %161 : vector<32x64xf32>
    %cst_66 = arith.constant 0.797884583 : f32
    %163 = vector.broadcast %cst_66 : f32 to vector<32x64xf32>
    %164 = arith.mulf %163, %162 : vector<32x64xf32>
    %165 = math.tanh %164 : vector<32x64xf32>
    %cst_67 = arith.constant 1.000000e+00 : f32
    %166 = vector.broadcast %cst_67 : f32 to vector<32x64xf32>
    %167 = arith.addf %166, %165 : vector<32x64xf32>
    %cst_68 = arith.constant 5.000000e-01 : f32
    %168 = vector.broadcast %cst_68 : f32 to vector<32x64xf32>
    %169 = arith.mulf %168, %167 : vector<32x64xf32>
    %170 = arith.mulf %157, %169 : vector<32x64xf32>
    %171 = arith.truncf %170 : vector<32x64xf32> to vector<32x64xbf16>
    %c0_69 = arith.constant 0 : index
    %c0_70 = arith.constant 0 : index
    %c0_71 = arith.constant 0 : index
    %172 = vector.load %arg12[%c0_69, %c0_70, %c0_71] : memref<1x64x16xbf16, #tpu.memory_space<vmem>>, vector<1x64x16xbf16>
    %173 = vector.shape_cast %172 : vector<1x64x16xbf16> to vector<64x16xbf16>
    %cst_72 = arith.constant dense<0.000000e+00> : vector<32x16xf32>
    %174 = tpu.matmul %171, %173, %cst_72 {dimension_numbers = #tpu.dot_dimension_numbers<[1], [0], [0], [1], [0, 0, 1, 1], [], []>} : vector<32x64xbf16>, vector<64x16xbf16>, vector<32x16xf32> -> vector<32x16xf32>
    %175 = arith.addf %123, %174 : vector<32x16xf32>
    %c0_73 = arith.constant 0 : index
    %c0_74 = arith.constant 0 : index
    %c0_75 = arith.constant 0 : index
    %176 = vector.load %arg13[%c0_73, %c0_74, %c0_75] : memref<1x1x16xf32, #tpu.memory_space<vmem>>, vector<1x1x16xf32>
    %177 = vector.shape_cast %176 : vector<1x1x16xf32> to vector<1x16xf32>
    %178 = vector.broadcast %177 : vector<1x16xf32> to vector<32x16xf32>
    %179 = arith.addf %175, %178 : vector<32x16xf32>
    %c0_76 = arith.constant 0 : index
    %c0_77 = arith.constant 0 : index
    %180 = vector.load %arg17[%c0_76, %c0_77] : memref<32x16xf32, #tpu.memory_space<vmem>>, vector<32x16xf32>
    tpu.vector_store %arg17[%c0_76, %c0_77], %179 {strides = array<i32>} : memref<32x16xf32, #tpu.memory_space<vmem>>, vector<32x16xf32>,
    %c0_i32_78 = arith.constant 0 : i32
    %181 = arith.cmpi eq, %arg1, %c0_i32_78 : i32
    %182 = arith.extui %181 : i1 to i32
    %c0_i32_79 = arith.constant 0 : i32
    %183 = arith.cmpi ne, %182, %c0_i32_79 : i32
    scf.if %183 {
      %c0_80 = arith.constant 0 : index
      %c0_81 = arith.constant 0 : index
      %184 = vector.load %arg14[%c0_80, %c0_81] : memref<1x16xf32, #tpu.memory_space<vmem>>, vector<1x16xf32>
      %c0_82 = arith.constant 0 : index
      %c0_83 = arith.constant 0 : index
      %185 = vector.load %arg15[%c0_82, %c0_83] : memref<1x16xf32, #tpu.memory_space<vmem>>, vector<1x16xf32>
      %cst_84 = arith.constant dense<0.000000e+00> : vector<32xf32>
      %186 = vector.multi_reduction <add>, %179, %cst_84 [1] : vector<32x16xf32> to vector<32xf32>
      %187 = vector.shape_cast %186 : vector<32xf32> to vector<32x1xf32>
      %cst_85 = arith.constant 1.600000e+01 : f32
      %188 = vector.broadcast %cst_85 : f32 to vector<32x1xf32>
      %189 = arith.divf %187, %188 : vector<32x1xf32>
      %190 = vector.broadcast %189 : vector<32x1xf32> to vector<32x16xf32>
      %191 = arith.subf %179, %190 : vector<32x16xf32>
      %192 = arith.mulf %191, %191 : vector<32x16xf32>
      %cst_86 = arith.constant dense<0.000000e+00> : vector<32xf32>
      %193 = vector.multi_reduction <add>, %192, %cst_86 [1] : vector<32x16xf32> to vector<32xf32>
      %194 = vector.shape_cast %193 : vector<32xf32> to vector<32x1xf32>
      %cst_87 = arith.constant 1.600000e+01 : f32
      %195 = vector.broadcast %cst_87 : f32 to vector<32x1xf32>
      %196 = arith.divf %194, %195 : vector<32x1xf32>
      %197 = vector.broadcast %189 : vector<32x1xf32> to vector<32x16xf32>
      %198 = arith.subf %179, %197 : vector<32x16xf32>
      %cst_88 = arith.constant 9.99999974E-6 : f32
      %199 = vector.broadcast %cst_88 : f32 to vector<32x1xf32>
      %200 = arith.addf %196, %199 : vector<32x1xf32>
      %201 = math.rsqrt %200 : vector<32x1xf32>
      %202 = vector.broadcast %201 : vector<32x1xf32> to vector<32x16xf32>
      %203 = arith.mulf %198, %202 : vector<32x16xf32>
      %204 = vector.broadcast %184 : vector<1x16xf32> to vector<32x16xf32>
      %205 = arith.mulf %203, %204 : vector<32x16xf32>
      %206 = vector.broadcast %185 : vector<1x16xf32> to vector<32x16xf32>
      %207 = arith.addf %205, %206 : vector<32x16xf32>
      %c0_89 = arith.constant 0 : index
      %c0_90 = arith.constant 0 : index
      %208 = vector.load %arg16[%c0_89, %c0_90] : memref<32x16xf32, #tpu.memory_space<vmem>>, vector<32x16xf32>
      tpu.vector_store %arg16[%c0_89, %c0_90], %207 {strides = array<i32>} : memref<32x16xf32, #tpu.memory_space<vmem>>, vector<32x16xf32>,
    } else {
    }
    return
  }
  func.func @transform_0(%arg0: i32, %arg1: i32) -> (i32, i32) {
    %c0_i32 = arith.constant 0 : i32
    %c0_i32_0 = arith.constant 0 : i32
    return %arg0, %c0_i32 : i32, i32
  }
  func.func @transform_1(%arg0: i32, %arg1: i32) -> (i32, i32, i32) {
    %c0_i32 = arith.constant 0 : i32
    %c0_i32_0 = arith.constant 0 : i32
    %c0_i32_1 = arith.constant 0 : i32
    return %arg1, %c0_i32, %c0_i32_0 : i32, i32, i32
  }
  func.func @transform_2(%arg0: i32, %arg1: i32) -> (i32, i32, i32) {
    %c0_i32 = arith.constant 0 : i32
    %c0_i32_0 = arith.constant 0 : i32
    %c0_i32_1 = arith.constant 0 : i32
    return %arg1, %c0_i32, %c0_i32_0 : i32, i32, i32
  }
  func.func @transform_3(%arg0: i32, %arg1: i32) -> (i32, i32, i32) {
    %c0_i32 = arith.constant 0 : i32
    %c0_i32_0 = arith.constant 0 : i32
    %c0_i32_1 = arith.constant 0 : i32
    return %arg1, %c0_i32, %c0_i32_0 : i32, i32, i32
  }
  func.func @transform_4(%arg0: i32, %arg1: i32) -> (i32, i32, i32) {
    %c0_i32 = arith.constant 0 : i32
    %c0_i32_0 = arith.constant 0 : i32
    %c0_i32_1 = arith.constant 0 : i32
    return %arg1, %c0_i32, %c0_i32_0 : i32, i32, i32
  }
  func.func @transform_5(%arg0: i32, %arg1: i32) -> (i32, i32, i32) {
    %c0_i32 = arith.constant 0 : i32
    %c0_i32_0 = arith.constant 0 : i32
    %c0_i32_1 = arith.constant 0 : i32
    return %arg1, %c0_i32, %c0_i32_0 : i32, i32, i32
  }
  func.func @transform_6(%arg0: i32, %arg1: i32) -> (i32, i32, i32) {
    %c0_i32 = arith.constant 0 : i32
    %c0_i32_0 = arith.constant 0 : i32
    %c0_i32_1 = arith.constant 0 : i32
    return %arg1, %c0_i32, %c0_i32_0 : i32, i32, i32
  }
  func.func @transform_7(%arg0: i32, %arg1: i32) -> (i32, i32, i32) {
    %c0_i32 = arith.constant 0 : i32
    %c0_i32_0 = arith.constant 0 : i32
    %c0_i32_1 = arith.constant 0 : i32
    return %arg1, %c0_i32, %c0_i32_0 : i32, i32, i32
  }
  func.func @transform_8(%arg0: i32, %arg1: i32) -> (i32, i32, i32) {
    %c0_i32 = arith.constant 0 : i32
    %c0_i32_0 = arith.constant 0 : i32
    %c0_i32_1 = arith.constant 0 : i32
    return %arg1, %c0_i32, %c0_i32_0 : i32, i32, i32
  }
  func.func @transform_9(%arg0: i32, %arg1: i32) -> (i32, i32, i32) {
    %c0_i32 = arith.constant 0 : i32
    %c0_i32_0 = arith.constant 0 : i32
    %c0_i32_1 = arith.constant 0 : i32
    return %arg1, %c0_i32, %c0_i32_0 : i32, i32, i32
  }
  func.func @transform_10(%arg0: i32, %arg1: i32) -> (i32, i32, i32) {
    %c0_i32 = arith.constant 0 : i32
    %c0_i32_0 = arith.constant 0 : i32
    %c0_i32_1 = arith.constant 0 : i32
    return %arg1, %c0_i32, %c0_i32_0 : i32, i32, i32
  }
  func.func @transform_11(%arg0: i32, %arg1: i32) -> (i32, i32, i32) {
    %c0_i32 = arith.constant 0 : i32
    %c0_i32_0 = arith.constant 0 : i32
    %c0_i32_1 = arith.constant 0 : i32
    return %arg1, %c0_i32, %c0_i32_0 : i32, i32, i32
  }
  func.func @transform_12(%arg0: i32, %arg1: i32) -> (i32, i32) {
    %c0_i32 = arith.constant 0 : i32
    %c0_i32_0 = arith.constant 0 : i32
    %c0_i32_1 = arith.constant 0 : i32
    return %c0_i32, %c0_i32_0 : i32, i32
  }
  func.func @transform_13(%arg0: i32, %arg1: i32) -> (i32, i32) {
    %c0_i32 = arith.constant 0 : i32
    %c0_i32_0 = arith.constant 0 : i32
    %c0_i32_1 = arith.constant 0 : i32
    return %c0_i32, %c0_i32_0 : i32, i32
  }
  func.func @transform_14(%arg0: i32, %arg1: i32) -> (i32, i32) {
    %c0_i32 = arith.constant 0 : i32
    %c0_i32_0 = arith.constant 0 : i32
    return %arg0, %c0_i32 : i32, i32
  }
}

module attributes {stable_mosaic.version = 11 : i64} {
  func.func @_pixels_mse_kernel(%arg0: i32, %arg1: memref<1x12x16xf32, #tpu.memory_space<vmem>>, %arg2: memref<16x16xbf16, #tpu.memory_space<vmem>>, %arg3: memref<1x16xf32, #tpu.memory_space<vmem>>, %arg4: memref<1x12x16xf32, #tpu.memory_space<vmem>>, %arg5: memref<1x12x16xf32, #tpu.memory_space<vmem>>, %arg6: memref<1x1xf32, #tpu.memory_space<smem>>, %arg7: memref<1xf32, #tpu.memory_space<smem>>) attributes {dimension_semantics = [#tpu.dimension_semantics<arbitrary>], iteration_bounds = array<i64: 2>, scalar_prefetch = 0 : i64, scratch_operands = 1 : i64, tpu.core_type = #tpu.core_type<tc>, window_params = [{transform_indices = @transform_0, window_bounds = array<i64: 1, 12, 16>}, {pipeline_mode = #tpu.pipeline_mode<synchronous>, transform_indices = @transform_1, window_bounds = array<i64: 16, 16>}, {pipeline_mode = #tpu.pipeline_mode<synchronous>, transform_indices = @transform_2, window_bounds = array<i64: 1, 16>}, {transform_indices = @transform_3, window_bounds = array<i64: 1, 12, 16>}, {transform_indices = @transform_4, window_bounds = array<i64: 1, 12, 16>}, {transform_indices = @transform_5, window_bounds = array<i64: 1, 1>}]} {
    %c0 = arith.constant 0 : index
    %c0_0 = arith.constant 0 : index
    %c0_1 = arith.constant 0 : index
    %0 = vector.load %arg1[%c0, %c0_0, %c0_1] : memref<1x12x16xf32, #tpu.memory_space<vmem>>, vector<1x12x16xf32>
    %1 = vector.shape_cast %0 : vector<1x12x16xf32> to vector<12x16xf32>
    %2 = arith.truncf %1 : vector<12x16xf32> to vector<12x16xbf16>
    %c0_2 = arith.constant 0 : index
    %c0_3 = arith.constant 0 : index
    %3 = vector.load %arg2[%c0_2, %c0_3] : memref<16x16xbf16, #tpu.memory_space<vmem>>, vector<16x16xbf16>
    %cst = arith.constant dense<0.000000e+00> : vector<12x16xf32>
    %4 = tpu.matmul %2, %3, %cst {dimension_numbers = #tpu.dot_dimension_numbers<[1], [0], [0], [1], [0, 0, 1, 1], [], []>} : vector<12x16xbf16>, vector<16x16xbf16>, vector<12x16xf32> -> vector<12x16xf32>
    %c0_4 = arith.constant 0 : index
    %c0_5 = arith.constant 0 : index
    %5 = vector.load %arg3[%c0_4, %c0_5] : memref<1x16xf32, #tpu.memory_space<vmem>>, vector<1x16xf32>
    %6 = vector.broadcast %5 : vector<1x16xf32> to vector<12x16xf32>
    %7 = arith.addf %4, %6 : vector<12x16xf32>
    %c0_6 = arith.constant 0 : index
    %c0_7 = arith.constant 0 : index
    %c0_8 = arith.constant 0 : index
    %8 = vector.load %arg5[%c0_6, %c0_7, %c0_8] : memref<1x12x16xf32, #tpu.memory_space<vmem>>, vector<1x12x16xf32>
    %9 = vector.shape_cast %8 : vector<1x12x16xf32> to vector<12x16xf32>
    %10 = vector.shape_cast %7 : vector<12x16xf32> to vector<1x12x16xf32>
    tpu.vector_store %arg5[%c0_6, %c0_7, %c0_8], %10 {strides = array<i32>} : memref<1x12x16xf32, #tpu.memory_space<vmem>>, vector<1x12x16xf32>,
    %c0_9 = arith.constant 0 : index
    %c0_10 = arith.constant 0 : index
    %c0_11 = arith.constant 0 : index
    %11 = vector.load %arg4[%c0_9, %c0_10, %c0_11] : memref<1x12x16xf32, #tpu.memory_space<vmem>>, vector<1x12x16xf32>
    %12 = vector.shape_cast %11 : vector<1x12x16xf32> to vector<12x16xf32>
    %13 = arith.subf %7, %12 : vector<12x16xf32>
    %14 = arith.mulf %13, %13 : vector<12x16xf32>
    %15 = vector.shape_cast %14 : vector<12x16xf32> to vector<1x12x16xf32>
    %cst_12 = arith.constant dense<0.000000e+00> : vector<1xf32>
    %16 = vector.multi_reduction <add>, %15, %cst_12 [1, 2] : vector<1x12x16xf32> to vector<1xf32>
    %17 = vector.shape_cast %16 : vector<1xf32> to vector<1x1x1xf32>
    %18 = vector.extract %17[0, 0, 0] : f32 from vector<1x1x1xf32>
    %c0_i32 = arith.constant 0 : i32
    %19 = arith.cmpi eq, %arg0, %c0_i32 : i32
    %20 = arith.extui %19 : i1 to i32
    %c0_i32_13 = arith.constant 0 : i32
    %21 = arith.cmpi ne, %20, %c0_i32_13 : i32
    scf.if %21 {
      %c0_17 = arith.constant 0 : index
      %28 = memref.load %arg7[%c0_17] : memref<1xf32, #tpu.memory_space<smem>>
      memref.store %18, %arg7[%c0_17] : memref<1xf32, #tpu.memory_space<smem>>
    } else {
    }
    %c0_i32_14 = arith.constant 0 : i32
    %22 = arith.cmpi sgt, %arg0, %c0_i32_14 : i32
    %23 = arith.extui %22 : i1 to i32
    %c0_i32_15 = arith.constant 0 : i32
    %24 = arith.cmpi ne, %23, %c0_i32_15 : i32
    scf.if %24 {
      %c0_17 = arith.constant 0 : index
      %28 = memref.load %arg7[%c0_17] : memref<1xf32, #tpu.memory_space<smem>>
      %29 = arith.addf %28, %18 : f32
      %c0_18 = arith.constant 0 : index
      %30 = memref.load %arg7[%c0_18] : memref<1xf32, #tpu.memory_space<smem>>
      memref.store %29, %arg7[%c0_18] : memref<1xf32, #tpu.memory_space<smem>>
    } else {
    }
    %c1_i32 = arith.constant 1 : i32
    %25 = arith.cmpi eq, %arg0, %c1_i32 : i32
    %26 = arith.extui %25 : i1 to i32
    %c0_i32_16 = arith.constant 0 : i32
    %27 = arith.cmpi ne, %26, %c0_i32_16 : i32
    scf.if %27 {
      %c0_17 = arith.constant 0 : index
      %28 = memref.load %arg7[%c0_17] : memref<1xf32, #tpu.memory_space<smem>>
      %cst_18 = arith.constant 0.00260416674 : f32
      %29 = arith.mulf %28, %cst_18 : f32
      %c0_19 = arith.constant 0 : index
      %c0_20 = arith.constant 0 : index
      %30 = memref.load %arg6[%c0_19, %c0_20] : memref<1x1xf32, #tpu.memory_space<smem>>
      memref.store %29, %arg6[%c0_19, %c0_20] : memref<1x1xf32, #tpu.memory_space<smem>>
    } else {
    }
    return
  }
  func.func @transform_0(%arg0: i32) -> (i32, i32, i32) {
    %c0_i32 = arith.constant 0 : i32
    %c0_i32_0 = arith.constant 0 : i32
    %c0_i32_1 = arith.constant 0 : i32
    return %arg0, %c0_i32, %c0_i32_0 : i32, i32, i32
  }
  func.func @transform_1(%arg0: i32) -> (i32, i32) {
    %c0_i32 = arith.constant 0 : i32
    %c0_i32_0 = arith.constant 0 : i32
    %c0_i32_1 = arith.constant 0 : i32
    return %c0_i32, %c0_i32_0 : i32, i32
  }
  func.func @transform_2(%arg0: i32) -> (i32, i32) {
    %c0_i32 = arith.constant 0 : i32
    %c0_i32_0 = arith.constant 0 : i32
    %c0_i32_1 = arith.constant 0 : i32
    return %c0_i32, %c0_i32_0 : i32, i32
  }
  func.func @transform_3(%arg0: i32) -> (i32, i32, i32) {
    %c0_i32 = arith.constant 0 : i32
    %c0_i32_0 = arith.constant 0 : i32
    %c0_i32_1 = arith.constant 0 : i32
    return %arg0, %c0_i32, %c0_i32_0 : i32, i32, i32
  }
  func.func @transform_4(%arg0: i32) -> (i32, i32, i32) {
    %c0_i32 = arith.constant 0 : i32
    %c0_i32_0 = arith.constant 0 : i32
    %c0_i32_1 = arith.constant 0 : i32
    return %arg0, %c0_i32, %c0_i32_0 : i32, i32, i32
  }
  func.func @transform_5(%arg0: i32) -> (i32, i32) {
    %c0_i32 = arith.constant 0 : i32
    %c0_i32_0 = arith.constant 0 : i32
    %c0_i32_1 = arith.constant 0 : i32
    return %c0_i32, %c0_i32_0 : i32, i32
  }
}

</mosaic_0001>

<llo_original>
// kernel: mae_forward.5
$region0: #{mae_forward.5}
  #allocation0 [shape = 'u32[]', space=smem, size = 0x4, offset = 0x4, fixed_abs, tag = 'smem constant byte address 0x4 - core index']
  #allocation1 [shape = 'u32[144,128]{1,0:T(1,128)}', space=vmem, size = 0x12000, scoped, tag = 'internal scratch']
  %s0 = inlined_call_operand.vmem [shape: f32[2,16,16], index: 0, kind: input, shape index: {}]
  %s1 = inlined_call_operand.vmem [shape: f32[1,16], index: 1, kind: input, shape index: {}]
  %s2 = inlined_call_operand.vmem [shape: f32[1,16], index: 2, kind: input, shape index: {}]
  %s3 = inlined_call_operand.vmem [shape: bf16[16,32], index: 3, kind: input, shape index: {}]
  %s4 = inlined_call_operand.vmem [shape: f32[1,32], index: 4, kind: input, shape index: {}]
  %s5 = inlined_call_operand.vmem [shape: f32[1,32], index: 5, kind: input, shape index: {}]
  %s6 = inlined_call_operand.vmem [shape: f32[1,32], index: 6, kind: input, shape index: {}]
  %s7 = inlined_call_operand.vmem [shape: f32[16,32], index: 7, kind: input, shape index: {}]
  %s8 = inlined_call_operand.vmem [shape: f32[2,16,32], index: 8, kind: output, shape index: {}]
  %s9 = sld [smem:[#allocation0]]
  $region65: #{mae_forward.5} parent=0
    _
  %s11 = ssub.s32 1, %s9
  %s12 = scalar_select 0, %s11, %s9
  loop: start=0, step=1, limit=4
  $region2: #{mae_forward.5} parent=0 // loop_pre_header
    _
  $region3: #{mae_forward.5} parent=0 // loop_header
    %s14 = sphi 0, %s18
    %p15 = scmp.ge.s32.totalorder %s14, 4
    %s24 = sphi 0, %s26
    %s27 = sphi 0, %s24
    %s28 = sphi 0, %s27
    %s44 = sphi 0, %s28
    %s48 = sphi 0, %s48
    %s50 = sphi 0, %s48
    %s51 = sphi 0, %s50
    %s65 = sphi 0, %s51
    %s69 = sphi 0, %s69
    %s71 = sphi 0, %s69
    %s72 = sphi 0, %s71
    %s86 = sphi 0, %s72
    %s90 = sphi 0, %s90
    %s92 = sphi 0, %s90
    %s93 = sphi 0, %s92
    %s107 = sphi 0, %s93
    %s111 = sphi 0, %s111
    %s113 = sphi 0, %s111
    %s114 = sphi 0, %s113
    %s128 = sphi 0, %s114
    %s132 = sphi 0, %s132
    %s134 = sphi 0, %s132
    %s135 = sphi 0, %s134
    %s149 = sphi 0, %s135
    %s153 = sphi 0, %s153
    %s155 = sphi 0, %s153
    %s156 = sphi 0, %s155
    %s170 = sphi 0, %s156
    %s174 = sphi 0, %s174
    %s176 = sphi 0, %s174
    %s177 = sphi 0, %s176
    %s191 = sphi 0, %s177
    %s197 = sphi 0, %s199
    %s200 = sphi 0, %s197
    %s201 = sphi 0, %s200
    %s217 = sphi 0, %s201
  $region4: #{mae_forward.5} parent=0 // loop_header_branch
    %17 = sbr.rel (%p15) target = $region8
  $region5: #{mae_forward.5} parent=0 // loop_body
    %s19 = ssub.s32 %s14, 1
    %s20 = ssub.s32 %s14, 2
    %s21 = sadd.s32 %s14, 1
    %s22 = ssub.s32 %s14, %s21
    %p23 = scmp.eq.s32.totalorder %s22, 0
    %s25 = sadd.s32 %s24, 1
    %s26 = scalar_select %p23, %s24, %s25
    %p29 = pneg %p23
    %p30 = scmp.eq.s32.totalorder %s14, 1
    %p31 = por %p29, %p30
    %p32 = scmp.ne.s32.totalorder %s24, %s27
    %p33 = scmp.eq.s32.totalorder %s14, 0
    %p34 = por %p32, %p33
    %p35 = scmp.ne.s32.totalorder %s24, %s27
    %p36 = scmp.eq.s32.totalorder %s19, 1
    %p37 = por %p35, %p36
    %p38 = scmp.ne.s32.totalorder %s27, %s28
    %p39 = scmp.eq.s32.totalorder %s19, 0
    %p40 = por %p38, %p39
    %p41 = scmp.ne.s32.totalorder %s27, %s28
    %p42 = scmp.eq.s32.totalorder %s20, 1
    %p43 = por %p41, %p42
    %p45 = scmp.ne.s32.totalorder %s28, %s44
    %p46 = scmp.eq.s32.totalorder %s20, 0
    %p47 = por %p45, %p46
    %s49 = sadd.s32 %s48, 1
    %p52 = scmp.eq.s32.totalorder %s14, 1
    %p53 = scmp.ne.s32.totalorder %s48, %s50
    %p54 = scmp.eq.s32.totalorder %s14, 0
    %p55 = por %p53, %p54
    %p56 = scmp.ne.s32.totalorder %s48, %s50
    %p57 = scmp.eq.s32.totalorder %s19, 1
    %p58 = por %p56, %p57
    %p59 = scmp.ne.s32.totalorder %s50, %s51
    %p60 = scmp.eq.s32.totalorder %s19, 0
    %p61 = por %p59, %p60
    %p62 = scmp.ne.s32.totalorder %s50, %s51
    %p63 = scmp.eq.s32.totalorder %s20, 1
    %p64 = por %p62, %p63
    %p66 = scmp.ne.s32.totalorder %s51, %s65
    %p67 = scmp.eq.s32.totalorder %s20, 0
    %p68 = por %p66, %p67
    %s70 = sadd.s32 %s69, 1
    %p73 = scmp.eq.s32.totalorder %s14, 1
    %p74 = scmp.ne.s32.totalorder %s69, %s71
    %p75 = scmp.eq.s32.totalorder %s14, 0
    %p76 = por %p74, %p75
    %p77 = scmp.ne.s32.totalorder %s69, %s71
    %p78 = scmp.eq.s32.totalorder %s19, 1
    %p79 = por %p77, %p78
    %p80 = scmp.ne.s32.totalorder %s71, %s72
    %p81 = scmp.eq.s32.totalorder %s19, 0
    %p82 = por %p80, %p81
    %p83 = scmp.ne.s32.totalorder %s71, %s72
    %p84 = scmp.eq.s32.totalorder %s20, 1
    %p85 = por %p83, %p84
    %p87 = scmp.ne.s32.totalorder %s72, %s86
    %p88 = scmp.eq.s32.totalorder %s20, 0
    %p89 = por %p87, %p88
    %s91 = sadd.s32 %s90, 1
    %p94 = scmp.eq.s32.totalorder %s14, 1
    %p95 = scmp.ne.s32.totalorder %s90, %s92
    %p96 = scmp.eq.s32.totalorder %s14, 0
    %p97 = por %p95, %p96
    %p98 = scmp.ne.s32.totalorder %s90, %s92
    %p99 = scmp.eq.s32.totalorder %s19, 1
    %p100 = por %p98, %p99
    %p101 = scmp.ne.s32.totalorder %s92, %s93
    %p102 = scmp.eq.s32.totalorder %s19, 0
    %p103 = por %p101, %p102
    %p104 = scmp.ne.s32.totalorder %s92, %s93
    %p105 = scmp.eq.s32.totalorder %s20, 1
    %p106 = por %p104, %p105
    %p108 = scmp.ne.s32.totalorder %s93, %s107
    %p109 = scmp.eq.s32.totalorder %s20, 0
    %p110 = por %p108, %p109
    %s112 = sadd.s32 %s111, 1
    %p115 = scmp.eq.s32.totalorder %s14, 1
    %p116 = scmp.ne.s32.totalorder %s111, %s113
    %p117 = scmp.eq.s32.totalorder %s14, 0
    %p118 = por %p116, %p117
    %p119 = scmp.ne.s32.totalorder %s111, %s113
    %p120 = scmp.eq.s32.totalorder %s19, 1
    %p121 = por %p119, %p120
    %p122 = scmp.ne.s32.totalorder %s113, %s114
    %p123 = scmp.eq.s32.totalorder %s19, 0
    %p124 = por %p122, %p123
    %p125 = scmp.ne.s32.totalorder %s113, %s114
    %p126 = scmp.eq.s32.totalorder %s20, 1
    %p127 = por %p125, %p126
    %p129 = scmp.ne.s32.totalorder %s114, %s128
    %p130 = scmp.eq.s32.totalorder %s20, 0
    %p131 = por %p129, %p130
    %s133 = sadd.s32 %s132, 1
    %p136 = scmp.eq.s32.totalorder %s14, 1
    %p137 = scmp.ne.s32.totalorder %s132, %s134
    %p138 = scmp.eq.s32.totalorder %s14, 0
    %p139 = por %p137, %p138
    %p140 = scmp.ne.s32.totalorder %s132, %s134
    %p141 = scmp.eq.s32.totalorder %s19, 1
    %p142 = por %p140, %p141
    %p143 = scmp.ne.s32.totalorder %s134, %s135
    %p144 = scmp.eq.s32.totalorder %s19, 0
    %p145 = por %p143, %p144
    %p146 = scmp.ne.s32.totalorder %s134, %s135
    %p147 = scmp.eq.s32.totalorder %s20, 1
    %p148 = por %p146, %p147
    %p150 = scmp.ne.s32.totalorder %s135, %s149
    %p151 = scmp.eq.s32.totalorder %s20, 0
    %p152 = por %p150, %p151
    %s154 = sadd.s32 %s153, 1
    %p157 = scmp.eq.s32.totalorder %s14, 1
    %p158 = scmp.ne.s32.totalorder %s153, %s155
    %p159 = scmp.eq.s32.totalorder %s14, 0
    %p160 = por %p158, %p159
    %p161 = scmp.ne.s32.totalorder %s153, %s155
    %p162 = scmp.eq.s32.totalorder %s19, 1
    %p163 = por %p161, %p162
    %p164 = scmp.ne.s32.totalorder %s155, %s156
    %p165 = scmp.eq.s32.totalorder %s19, 0
    %p166 = por %p164, %p165
    %p167 = scmp.ne.s32.totalorder %s155, %s156
    %p168 = scmp.eq.s32.totalorder %s20, 1
    %p169 = por %p167, %p168
    %p171 = scmp.ne.s32.totalorder %s156, %s170
    %p172 = scmp.eq.s32.totalorder %s20, 0
    %p173 = por %p171, %p172
    %s175 = sadd.s32 %s174, 1
    %p178 = scmp.eq.s32.totalorder %s14, 1
    %p179 = scmp.ne.s32.totalorder %s174, %s176
    %p180 = scmp.eq.s32.totalorder %s14, 0
    %p181 = por %p179, %p180
    %p182 = scmp.ne.s32.totalorder %s174, %s176
    %p183 = scmp.eq.s32.totalorder %s19, 1
    %p184 = por %p182, %p183
    %p185 = scmp.ne.s32.totalorder %s176, %s177
    %p186 = scmp.eq.s32.totalorder %s19, 0
    %p187 = por %p185, %p186
    %p188 = scmp.ne.s32.totalorder %s176, %s177
    %p189 = scmp.eq.s32.totalorder %s20, 1
    %p190 = por %p188, %p189
    %p192 = scmp.ne.s32.totalorder %s177, %s191
    %p193 = scmp.eq.s32.totalorder %s20, 0
    %p194 = por %p192, %p193
    %s195 = ssub.s32 %s14, %s21
    %p196 = scmp.eq.s32.totalorder %s195, 0
    %s198 = sadd.s32 %s197, 1
    %s199 = scalar_select %p196, %s197, %s198
    %p202 = pneg %p196
    %p203 = scmp.eq.s32.totalorder %s14, 1
    %p204 = por %p202, %p203
    %p205 = scmp.ne.s32.totalorder %s197, %s200
    %p206 = scmp.eq.s32.totalorder %s14, 0
    %p207 = por %p205, %p206
    %p208 = scmp.ne.s32.totalorder %s197, %s200
    %p209 = scmp.eq.s32.totalorder %s19, 1
    %p210 = por %p208, %p209
    %p211 = scmp.ne.s32.totalorder %s200, %s201
    %p212 = scmp.eq.s32.totalorder %s19, 0
    %p213 = por %p211, %p212
    %p214 = scmp.ne.s32.totalorder %s200, %s201
    %p215 = scmp.eq.s32.totalorder %s20, 1
    %p216 = por %p214, %p215
    %p218 = scmp.ne.s32.totalorder %s201, %s217
    %p219 = scmp.eq.s32.totalorder %s20, 0
    %p220 = por %p218, %p219
    %p221 = scmp.le.s32.totalorder 1, %s14
    %p222 = scmp.lt.s32.totalorder %s14, 3
    %p223 = pnand %p221, %p222
    %p224 = pneg %p223
    // Predicated region
    $region9: #{mae_forward.5} parent=5 // pred_check
      _
    $region10: #{mae_forward.5} parent=5 // pred_check_branch
      %226 = sbr.rel (%p223) target = $region12
    $region11: #{mae_forward.5} parent=5 // pred_region
      %s227 = ssub.s32 %s14, 1
      // Predicated region
      $region13: #{mae_forward.5} parent=11 // pred_check
        %p228 = pneg %p61
      $region14: #{mae_forward.5} parent=11 // pred_check_branch
        %230 = sbr.rel (%p228) target = $region16
      $region15: #{mae_forward.5} parent=11 // pred_region
        _
      $region16: #{mae_forward.5} parent=11 // pred_fallthru
        _
      // Predicated region
      $region17: #{mae_forward.5} parent=11 // pred_check
        %p231 = pneg %p82
      $region18: #{mae_forward.5} parent=11 // pred_check_branch
        %233 = sbr.rel (%p231) target = $region20
      $region19: #{mae_forward.5} parent=11 // pred_region
        _
      $region20: #{mae_forward.5} parent=11 // pred_fallthru
        _
      // Predicated region
      $region21: #{mae_forward.5} parent=11 // pred_check
        %p234 = pneg %p103
      $region22: #{mae_forward.5} parent=11 // pred_check_branch
        %236 = sbr.rel (%p234) target = $region24
      $region23: #{mae_forward.5} parent=11 // pred_region
        _
      $region24: #{mae_forward.5} parent=11 // pred_fallthru
        _
      // Predicated region
      $region25: #{mae_forward.5} parent=11 // pred_check
        %p237 = pneg %p124
      $region26: #{mae_forward.5} parent=11 // pred_check_branch
        %239 = sbr.rel (%p237) target = $region28
      $region27: #{mae_forward.5} parent=11 // pred_region
        _
      $region28: #{mae_forward.5} parent=11 // pred_fallthru
        _
      // Predicated region
      $region29: #{mae_forward.5} parent=11 // pred_check
        %p240 = pneg %p145
      $region30: #{mae_forward.5} parent=11 // pred_check_branch
        %242 = sbr.rel (%p240) target = $region32
      $region31: #{mae_forward.5} parent=11 // pred_region
        _
      $region32: #{mae_forward.5} parent=11 // pred_fallthru
        _
      // Predicated region
      $region33: #{mae_forward.5} parent=11 // pred_check
        %p243 = pneg %p166
      $region34: #{mae_forward.5} parent=11 // pred_check_branch
        %245 = sbr.rel (%p243) target = $region36
      $region35: #{mae_forward.5} parent=11 // pred_region
        _
      $region36: #{mae_forward.5} parent=11 // pred_fallthru
        _
      // Predicated region
      $region37: #{mae_forward.5} parent=11 // pred_check
        %p246 = pneg %p187
      $region38: #{mae_forward.5} parent=11 // pred_check_branch
        %248 = sbr.rel (%p246) target = $region40
      $region39: #{mae_forward.5} parent=11 // pred_region
        _
      $region40: #{mae_forward.5} parent=11 // pred_fallthru
        _
    $region12: #{mae_forward.5} parent=5 // pred_fallthru
      _
    %p249 = scmp.lt.s32.totalorder %s14, 2
    // Predicated region
    $region41: #{mae_forward.5} parent=5 // pred_check
      %p250 = pneg %p249
    $region42: #{mae_forward.5} parent=5 // pred_check_branch
      %252 = sbr.rel (%p250) target = $region44
    $region43: #{mae_forward.5} parent=5 // pred_region
      // Predicated region
      $region45: #{mae_forward.5} parent=43 // pred_check
        %p253 = pneg %p34
      $region46: #{mae_forward.5} parent=43 // pred_check_branch
        %255 = sbr.rel (%p253) target = $region48
      $region47: #{mae_forward.5} parent=43 // pred_region
        %p256 = scmp.lt.s32.totalorder %s14, 1
        %s257 = scalar_select %p256, %s14, 1
        %s258 = smul.addr %s257, 2
        %s259 = smul.addr %s258, 8
        %s260 = scalar_lea.vmem %s0, %s259
      $region48: #{mae_forward.5} parent=43 // pred_fallthru
        _
    $region44: #{mae_forward.5} parent=5 // pred_fallthru
      _
    %p261 = scmp.le.s32.totalorder 1, %s14
    %p262 = scmp.lt.s32.totalorder %s14, 3
    %p263 = pnand %p261, %p262
    %p264 = pneg %p263
    // Predicated region
    $region49: #{mae_forward.5} parent=5 // pred_check
      _
    $region50: #{mae_forward.5} parent=5 // pred_check_branch
      %266 = sbr.rel (%p263) target = $region52
    $region51: #{mae_forward.5} parent=5 // pred_region
      %s267 = ssub.s32 %s14, 1
      %p268 = scmp.lt.s32.totalorder %s19, 1
      %s269 = scalar_select %p268, %s19, 1
      %s270 = smul.addr %s269, 2
      %s271 = smul.addr %s270, 8
      %s272 = scalar_lea.vmem %s0, %s271
      %p273 = pneg %p40
      %p274 = pneg %p37
      %p275 = pneg %p61
      %p276 = pneg %p58
      %p277 = pneg %p82
      %p278 = pneg %p79
      %p279 = pneg %p103
      %p280 = pneg %p100
      %p281 = pneg %p124
      %p282 = pneg %p121
      %p283 = pneg %p145
      %p284 = pneg %p142
      %p285 = pneg %p166
      %p286 = pneg %p163
      %p287 = pneg %p187
      %p288 = pneg %p184
      %p289 = pneg %p213
      %p290 = pneg %p210
      %p291 = scmp.lt.s32.totalorder %s19, 1
      %s292 = scalar_select %p291, %s19, 1
      %s293 = smul.addr %s292, 2
      %s294 = smul.addr %s293, 8
      %s295 = scalar_lea.vmem %s8, %s294
      %p296 = scmp.lt.s32.totalorder %s19, 1
      %s297 = scalar_select %p296, %s19, 1
      %s298 = smul.addr %s297, 2
      %s299 = smul.addr %s298, 8
      %s300 = scalar_lea.vmem %s0, %s299
      %p301 = scmp.lt.s32.totalorder %s19, 1
      %s302 = scalar_select %p301, %s19, 1
      %s303 = smul.addr %s302, 2
      %s304 = smul.addr %s303, 8
      %s305 = scalar_lea.vmem %s8, %s304
      %v307 = vld [vmem:[%s300] sm:$0xff]
      %v308 = vld [vmem:[%s300 + $0x8] sm:$0xff]
      %v309 = vld [vmem:[%s1] sm:$0x1]
      %v310 = vld [vmem:[%s2] sm:$0x1]
      %vm311 = vcmask 130048
      %v312 = vsel %vm311, %v307, 0.0
      %313 = vadd.xlane.f32.xlu0 %v312
      %v314 = vpop.xlane.xlu0 %313
      %v315 = vsel %vm311, %v308, 0.0
      %316 = vadd.xlane.f32.xlu0 %v315
      %v317 = vpop.xlane.xlu0 %316
      %v318 = vrcp.pop 16.0
      %v319 = vmul.f32 %v314, %v318
      %v320 = vmul.f32 %v317, %v318
      %v321 = vsub.f32 %v307, %v319
      %v322 = vsub.f32 %v308, %v320
      %v323 = vmul.f32 %v321, %v321
      %v324 = vmul.f32 %v322, %v322
      %v325 = vsel %vm311, %v323, 0.0
      %326 = vadd.xlane.f32.xlu0 %v325
      %v327 = vpop.xlane.xlu0 %326
      %v328 = vsel %vm311, %v324, 0.0
      %329 = vadd.xlane.f32.xlu0 %v328
      %v330 = vpop.xlane.xlu0 %329
      %v331 = vmul.f32 %v327, %v318
      %v332 = vmul.f32 %v330, %v318
      %v333 = vadd.f32 %v331, 1e-05
      %v334 = vadd.f32 %v332, 1e-05
      %v335 = vrsqrt.pop %v333
      %v336 = vrsqrt.pop %v334
      %v337 = vmul.f32 %v321, %v335
      %v338 = vmul.f32 %v322, %v336
      %v340 = vlaneseq
      %v341 = vshrl.u32 %v340, 7
      %v342 = vsub.s32 0, %v341
      %v343 = vrot.slane %v309, %v342
      %v345 = vmul.f32 %v337, %v343
      %v346 = vmul.f32 %v338, %v343
      %v348 = vlaneseq
      %v349 = vshrl.u32 %v348, 7
      %v350 = vsub.s32 0, %v349
      %v351 = vrot.slane %v310, %v350
      %v353 = vadd.f32 %v345, %v351
      %v354 = vadd.f32 %v346, %v351
      %v355 = vpack.c.bf16 %v354, %v353
      %v356 = vld [vmem:[%s3] sm:$0xf]
      %v357 = vld [vmem:[%s3 + $0x4] sm:$0xf]
      %v358 = vld [vmem:[%s4] sm:$0x1]
      %v360 = vlaneseq
      %v361 = vshrl.u32 %v360, 7
      %v362 = vsub.s32 0, %v361
      %v363 = vrot.slane %v358, %v362
      %v367 = vunpack.c.l.b16 %v356
      %v368 = vunpack.c.l.b16 %v357
      %v369 = vpack.c.b16 %v368, %v367
      %v372 = vsel %vm311, %v355, 0
      %374 = vmatprep.subr.bf16.mxu0 0
      %375 = vmatpush1.bf16.msra.mxu0 0
      %376 = vmatprep.subr.bf16.mxu0 0
      %377 = vmatpush1.bf16.msra.mxu0 0
      %378 = vmatprep.subr.bf16.mxu0 0
      %379 = vmatpush1.bf16.msra.mxu0 0
      %380 = vmatprep.subr.bf16.mxu0 0
      %381 = vmatpush1.bf16.msra.mxu0 0
      %382 = vmatprep.subr.bf16.mxu0 0
      %383 = vmatpush1.bf16.msra.mxu0 0
      %384 = vmatprep.subr.bf16.mxu0 0
      %385 = vmatpush1.bf16.msra.mxu0 0
      %386 = vmatprep.subr.bf16.mxu0 0
      %387 = vmatpush1.bf16.msra.mxu0 0
      %388 = vmatprep.subr.bf16.mxu0 0
      %389 = vmatpush1.bf16.msra.mxu0 %v369
      %390 = vmatprep.subr.bf16.mxu0 0
      %391 = vmatpush2.bf16.msra.mxu0 0
      %392 = vmatprep.subr.bf16.mxu0 0
      %393 = vmatpush2.bf16.msra.mxu0 0
      %394 = vmatprep.subr.bf16.mxu0 0
      %395 = vmatpush2.bf16.msra.mxu0 0
      %396 = vmatprep.subr.bf16.mxu0 0
      %397 = vmatpush2.bf16.msra.mxu0 0
      %398 = vmatprep.subr.bf16.mxu0 0
      %399 = vmatpush2.bf16.msra.mxu0 0
      %400 = vmatprep.subr.bf16.mxu0 0
      %401 = vmatpush2.bf16.msra.mxu0 0
      %402 = vmatprep.subr.bf16.mxu0 0
      %403 = vmatpush2.bf16.msra.mxu0 0
      %404 = vmatprep.subr.bf16.mxu0 0
      %405 = vmatpush2.bf16.msra.mxu0 0
      %406 = vmatprep.mubr.bf16.mxu0 0
      %407 = vmatmul.mubr.bf16.gmra.mxu0 %v372
      %v408 = vpop.f32.mrf.mxu0
      %v409 = vadd.f32 %v363, %v408
      %v410 = vpop.f32.mrf.mxu0
      %v411 = vpop.f32.mrf.mxu0
      %v412 = vadd.f32 %v363, %v411
      %v413 = vpop.f32.mrf.mxu0
      %414 = vdwg.mxu0
      %v415 = vld [vmem:[%s5] sm:$0x1]
      %v416 = vld [vmem:[%s6] sm:$0x1]
      %vm417 = vcmask 261120
      %v418 = vsel %vm417, %v409, 0.0
      %419 = vadd.xlane.f32.xlu0 %v418
      %v420 = vpop.xlane.xlu0 %419
      %v421 = vsel %vm417, %v412, 0.0
      %422 = vadd.xlane.f32.xlu0 %v421
      %v423 = vpop.xlane.xlu0 %422
      %v424 = vrcp.pop 32.0
      %v425 = vmul.f32 %v420, %v424
      %v426 = vmul.f32 %v423, %v424
      %v427 = vsub.f32 %v409, %v425
      %v428 = vsub.f32 %v412, %v426
      %v429 = vmul.f32 %v427, %v427
      %v430 = vmul.f32 %v428, %v428
      %v431 = vsel %vm417, %v429, 0.0
      %432 = vadd.xlane.f32.xlu0 %v431
      %v433 = vpop.xlane.xlu0 %432
      %v434 = vsel %vm417, %v430, 0.0
      %435 = vadd.xlane.f32.xlu0 %v434
      %v436 = vpop.xlane.xlu0 %435
      %v437 = vmul.f32 %v433, %v424
      %v438 = vmul.f32 %v436, %v424
      %v439 = vadd.f32 %v437, 1e-05
      %v440 = vadd.f32 %v438, 1e-05
      %v441 = vrsqrt.pop %v439
      %v442 = vrsqrt.pop %v440
      %v443 = vmul.f32 %v427, %v441
      %v444 = vmul.f32 %v428, %v442
      %v446 = vlaneseq
      %v447 = vshrl.u32 %v446, 7
      %v448 = vsub.s32 0, %v447
      %v449 = vrot.slane %v415, %v448
      %v451 = vmul.f32 %v443, %v449
      %v452 = vmul.f32 %v444, %v449
      %v454 = vlaneseq
      %v455 = vshrl.u32 %v454, 7
      %v456 = vsub.s32 0, %v455
      %v457 = vrot.slane %v416, %v456
      %v459 = vadd.f32 %v451, %v457
      %v460 = vadd.f32 %v452, %v457
      %v461 = vld [vmem:[%s7] sm:$0xff]
      %v462 = vld [vmem:[%s7 + $0x8] sm:$0xff]
      %v463 = vadd.f32 %v459, %v461
      %v464 = vadd.f32 %v460, %v462
      %465 = vst.msk [vmem:[%s305] sm:$0xff] %vm417, %v463
      %466 = vst.msk [vmem:[%s305 + $0x8] sm:$0xff] %vm417, %v464
      %p467 = scmp.lt.s32.totalorder %s19, 1
      %s468 = scalar_select %p467, %s19, 1
      %s469 = smul.addr %s468, 2
      %s470 = smul.addr %s469, 8
      %s471 = scalar_lea.vmem %s8, %s470
      // Predicated region
      $region53: #{mae_forward.5} parent=51 // pred_check
        %p472 = pneg %p210
      $region54: #{mae_forward.5} parent=51 // pred_check_branch
        %474 = sbr.rel (%p472) target = $region56
      $region55: #{mae_forward.5} parent=51 // pred_region
        _
      $region56: #{mae_forward.5} parent=51 // pred_fallthru
        _
    $region52: #{mae_forward.5} parent=5 // pred_fallthru
      _
    %p475 = scmp.le.s32.totalorder 2, %s14
    // Predicated region
    $region57: #{mae_forward.5} parent=5 // pred_check
      %p476 = pneg %p475
    $region58: #{mae_forward.5} parent=5 // pred_check_branch
      %478 = sbr.rel (%p476) target = $region60
    $region59: #{mae_forward.5} parent=5 // pred_region
      %s479 = ssub.s32 %s14, 2
      // Predicated region
      $region61: #{mae_forward.5} parent=59 // pred_check
        %p480 = pneg %p216
      $region62: #{mae_forward.5} parent=59 // pred_check_branch
        %482 = sbr.rel (%p480) target = $region64
      $region63: #{mae_forward.5} parent=59 // pred_region
        %p483 = scmp.lt.s32.totalorder %s20, 1
        %s484 = scalar_select %p483, %s20, 1
        %s485 = smul.addr %s484, 2
        %s486 = smul.addr %s485, 8
        %s487 = scalar_lea.vmem %s8, %s486
      $region64: #{mae_forward.5} parent=59 // pred_fallthru
        _
    $region60: #{mae_forward.5} parent=5 // pred_fallthru
      _
  $region6: #{mae_forward.5} parent=0 // loop_footer
    %s18 = sadd.s32 1, %s14
  $region7: #{mae_forward.5} parent=0 // loop_footer_branch
    %13 = sbr.rel target = $region3
  $region8: #{mae_forward.5} parent=0 // loop_exit
    _

// kernel: mae_forward.7
$region0: #{mae_forward.7}
  #allocation0 [shape = 'u32[]', space=smem, size = 0x4, offset = 0x4, fixed_abs, tag = 'smem constant byte address 0x4 - core index']
  #allocation1 [shape = 'u32[144,128]{1,0:T(1,128)}', space=vmem, size = 0x12000, scoped, tag = 'internal scratch']
  %s0 = inlined_call_operand.vmem [shape: f32[2,4,32], index: 0, kind: input, shape index: {}]
  %s1 = inlined_call_operand.vmem [shape: bf16[32,16], index: 1, kind: input, shape index: {}]
  %s2 = inlined_call_operand.vmem [shape: f32[1,16], index: 2, kind: input, shape index: {}]
  %s3 = inlined_call_operand.vmem [shape: f32[2,4,16], index: 3, kind: input, shape index: {}]
  %s4 = inlined_call_operand.vmem [shape: f32[2,4,16], index: 4, kind: output, shape index: {}]
  %s5 = sld [smem:[#allocation0]]
  $region49: #{mae_forward.7} parent=0
    _
  %s7 = ssub.s32 1, %s5
  %s8 = scalar_select 0, %s7, %s5
  loop: start=0, step=1, limit=4
  $region2: #{mae_forward.7} parent=0 // loop_pre_header
    _
  $region3: #{mae_forward.7} parent=0 // loop_header
    %s10 = sphi 0, %s14
    %p11 = scmp.ge.s32.totalorder %s10, 4
    %s20 = sphi 0, %s22
    %s23 = sphi 0, %s20
    %s24 = sphi 0, %s23
    %s40 = sphi 0, %s24
    %s44 = sphi 0, %s44
    %s46 = sphi 0, %s44
    %s47 = sphi 0, %s46
    %s61 = sphi 0, %s47
    %s65 = sphi 0, %s65
    %s67 = sphi 0, %s65
    %s68 = sphi 0, %s67
    %s82 = sphi 0, %s68
    %s88 = sphi 0, %s90
    %s91 = sphi 0, %s88
    %s92 = sphi 0, %s91
    %s108 = sphi 0, %s92
    %s114 = sphi 0, %s116
    %s117 = sphi 0, %s114
    %s118 = sphi 0, %s117
    %s134 = sphi 0, %s118
  $region4: #{mae_forward.7} parent=0 // loop_header_branch
    %13 = sbr.rel (%p11) target = $region8
  $region5: #{mae_forward.7} parent=0 // loop_body
    %s15 = ssub.s32 %s10, 1
    %s16 = ssub.s32 %s10, 2
    %s17 = sadd.s32 %s10, 1
    %s18 = ssub.s32 %s10, %s17
    %p19 = scmp.eq.s32.totalorder %s18, 0
    %s21 = sadd.s32 %s20, 1
    %s22 = scalar_select %p19, %s20, %s21
    %p25 = pneg %p19
    %p26 = scmp.eq.s32.totalorder %s10, 1
    %p27 = por %p25, %p26
    %p28 = scmp.ne.s32.totalorder %s20, %s23
    %p29 = scmp.eq.s32.totalorder %s10, 0
    %p30 = por %p28, %p29
    %p31 = scmp.ne.s32.totalorder %s20, %s23
    %p32 = scmp.eq.s32.totalorder %s15, 1
    %p33 = por %p31, %p32
    %p34 = scmp.ne.s32.totalorder %s23, %s24
    %p35 = scmp.eq.s32.totalorder %s15, 0
    %p36 = por %p34, %p35
    %p37 = scmp.ne.s32.totalorder %s23, %s24
    %p38 = scmp.eq.s32.totalorder %s16, 1
    %p39 = por %p37, %p38
    %p41 = scmp.ne.s32.totalorder %s24, %s40
    %p42 = scmp.eq.s32.totalorder %s16, 0
    %p43 = por %p41, %p42
    %s45 = sadd.s32 %s44, 1
    %p48 = scmp.eq.s32.totalorder %s10, 1
    %p49 = scmp.ne.s32.totalorder %s44, %s46
    %p50 = scmp.eq.s32.totalorder %s10, 0
    %p51 = por %p49, %p50
    %p52 = scmp.ne.s32.totalorder %s44, %s46
    %p53 = scmp.eq.s32.totalorder %s15, 1
    %p54 = por %p52, %p53
    %p55 = scmp.ne.s32.totalorder %s46, %s47
    %p56 = scmp.eq.s32.totalorder %s15, 0
    %p57 = por %p55, %p56
    %p58 = scmp.ne.s32.totalorder %s46, %s47
    %p59 = scmp.eq.s32.totalorder %s16, 1
    %p60 = por %p58, %p59
    %p62 = scmp.ne.s32.totalorder %s47, %s61
    %p63 = scmp.eq.s32.totalorder %s16, 0
    %p64 = por %p62, %p63
    %s66 = sadd.s32 %s65, 1
    %p69 = scmp.eq.s32.totalorder %s10, 1
    %p70 = scmp.ne.s32.totalorder %s65, %s67
    %p71 = scmp.eq.s32.totalorder %s10, 0
    %p72 = por %p70, %p71
    %p73 = scmp.ne.s32.totalorder %s65, %s67
    %p74 = scmp.eq.s32.totalorder %s15, 1
    %p75 = por %p73, %p74
    %p76 = scmp.ne.s32.totalorder %s67, %s68
    %p77 = scmp.eq.s32.totalorder %s15, 0
    %p78 = por %p76, %p77
    %p79 = scmp.ne.s32.totalorder %s67, %s68
    %p80 = scmp.eq.s32.totalorder %s16, 1
    %p81 = por %p79, %p80
    %p83 = scmp.ne.s32.totalorder %s68, %s82
    %p84 = scmp.eq.s32.totalorder %s16, 0
    %p85 = por %p83, %p84
    %s86 = ssub.s32 %s10, %s17
    %p87 = scmp.eq.s32.totalorder %s86, 0
    %s89 = sadd.s32 %s88, 1
    %s90 = scalar_select %p87, %s88, %s89
    %p93 = pneg %p87
    %p94 = scmp.eq.s32.totalorder %s10, 1
    %p95 = por %p93, %p94
    %p96 = scmp.ne.s32.totalorder %s88, %s91
    %p97 = scmp.eq.s32.totalorder %s10, 0
    %p98 = por %p96, %p97
    %p99 = scmp.ne.s32.totalorder %s88, %s91
    %p100 = scmp.eq.s32.totalorder %s15, 1
    %p101 = por %p99, %p100
    %p102 = scmp.ne.s32.totalorder %s91, %s92
    %p103 = scmp.eq.s32.totalorder %s15, 0
    %p104 = por %p102, %p103
    %p105 = scmp.ne.s32.totalorder %s91, %s92
    %p106 = scmp.eq.s32.totalorder %s16, 1
    %p107 = por %p105, %p106
    %p109 = scmp.ne.s32.totalorder %s92, %s108
    %p110 = scmp.eq.s32.totalorder %s16, 0
    %p111 = por %p109, %p110
    %s112 = ssub.s32 %s10, %s17
    %p113 = scmp.eq.s32.totalorder %s112, 0
    %s115 = sadd.s32 %s114, 1
    %s116 = scalar_select %p113, %s114, %s115
    %p119 = pneg %p113
    %p120 = scmp.eq.s32.totalorder %s10, 1
    %p121 = por %p119, %p120
    %p122 = scmp.ne.s32.totalorder %s114, %s117
    %p123 = scmp.eq.s32.totalorder %s10, 0
    %p124 = por %p122, %p123
    %p125 = scmp.ne.s32.totalorder %s114, %s117
    %p126 = scmp.eq.s32.totalorder %s15, 1
    %p127 = por %p125, %p126
    %p128 = scmp.ne.s32.totalorder %s117, %s118
    %p129 = scmp.eq.s32.totalorder %s15, 0
    %p130 = por %p128, %p129
    %p131 = scmp.ne.s32.totalorder %s117, %s118
    %p132 = scmp.eq.s32.totalorder %s16, 1
    %p133 = por %p131, %p132
    %p135 = scmp.ne.s32.totalorder %s118, %s134
    %p136 = scmp.eq.s32.totalorder %s16, 0
    %p137 = por %p135, %p136
    %p138 = scmp.le.s32.totalorder 1, %s10
    %p139 = scmp.lt.s32.totalorder %s10, 3
    %p140 = pnand %p138, %p139
    %p141 = pneg %p140
    // Predicated region
    $region9: #{mae_forward.7} parent=5 // pred_check
      _
    $region10: #{mae_forward.7} parent=5 // pred_check_branch
      %143 = sbr.rel (%p140) target = $region12
    $region11: #{mae_forward.7} parent=5 // pred_region
      %s144 = ssub.s32 %s10, 1
      // Predicated region
      $region13: #{mae_forward.7} parent=11 // pred_check
        %p145 = pneg %p57
      $region14: #{mae_forward.7} parent=11 // pred_check_branch
        %147 = sbr.rel (%p145) target = $region16
      $region15: #{mae_forward.7} parent=11 // pred_region
        _
      $region16: #{mae_forward.7} parent=11 // pred_fallthru
        _
      // Predicated region
      $region17: #{mae_forward.7} parent=11 // pred_check
        %p148 = pneg %p78
      $region18: #{mae_forward.7} parent=11 // pred_check_branch
        %150 = sbr.rel (%p148) target = $region20
      $region19: #{mae_forward.7} parent=11 // pred_region
        _
      $region20: #{mae_forward.7} parent=11 // pred_fallthru
        _
    $region12: #{mae_forward.7} parent=5 // pred_fallthru
      _
    %p151 = scmp.lt.s32.totalorder %s10, 2
    // Predicated region
    $region21: #{mae_forward.7} parent=5 // pred_check
      %p152 = pneg %p151
    $region22: #{mae_forward.7} parent=5 // pred_check_branch
      %154 = sbr.rel (%p152) target = $region24
    $region23: #{mae_forward.7} parent=5 // pred_region
      // Predicated region
      $region25: #{mae_forward.7} parent=23 // pred_check
        %p155 = pneg %p30
      $region26: #{mae_forward.7} parent=23 // pred_check_branch
        %157 = sbr.rel (%p155) target = $region28
      $region27: #{mae_forward.7} parent=23 // pred_region
        %p158 = scmp.lt.s32.totalorder %s10, 1
        %s159 = scalar_select %p158, %s10, 1
        %s160 = smul.addr %s159, 4
        %s161 = scalar_lea.vmem %s0, %s160
      $region28: #{mae_forward.7} parent=23 // pred_fallthru
        _
      // Predicated region
      $region29: #{mae_forward.7} parent=23 // pred_check
        %p162 = pneg %p98
      $region30: #{mae_forward.7} parent=23 // pred_check_branch
        %164 = sbr.rel (%p162) target = $region32
      $region31: #{mae_forward.7} parent=23 // pred_region
        %p165 = scmp.lt.s32.totalorder %s10, 1
        %s166 = scalar_select %p165, %s10, 1
        %s167 = smul.addr %s166, 4
        %s168 = scalar_lea.vmem %s3, %s167
      $region32: #{mae_forward.7} parent=23 // pred_fallthru
        _
    $region24: #{mae_forward.7} parent=5 // pred_fallthru
      _
    %p169 = scmp.le.s32.totalorder 1, %s10
    %p170 = scmp.lt.s32.totalorder %s10, 3
    %p171 = pnand %p169, %p170
    %p172 = pneg %p171
    // Predicated region
    $region33: #{mae_forward.7} parent=5 // pred_check
      _
    $region34: #{mae_forward.7} parent=5 // pred_check_branch
      %174 = sbr.rel (%p171) target = $region36
    $region35: #{mae_forward.7} parent=5 // pred_region
      %s175 = ssub.s32 %s10, 1
      %p176 = scmp.lt.s32.totalorder %s15, 1
      %s177 = scalar_select %p176, %s15, 1
      %s178 = smul.addr %s177, 4
      %s179 = scalar_lea.vmem %s0, %s178
      %p180 = pneg %p36
      %p181 = pneg %p33
      %p182 = pneg %p57
      %p183 = pneg %p54
      %p184 = pneg %p78
      %p185 = pneg %p75
      %p186 = scmp.lt.s32.totalorder %s15, 1
      %s187 = scalar_select %p186, %s15, 1
      %s188 = smul.addr %s187, 4
      %s189 = scalar_lea.vmem %s3, %s188
      %p190 = pneg %p104
      %p191 = pneg %p101
      %p192 = pneg %p130
      %p193 = pneg %p127
      %p194 = scmp.lt.s32.totalorder %s15, 1
      %s195 = scalar_select %p194, %s15, 1
      %s196 = smul.addr %s195, 4
      %s197 = scalar_lea.vmem %s4, %s196
      %p198 = scmp.lt.s32.totalorder %s15, 1
      %s199 = scalar_select %p198, %s15, 1
      %s200 = smul.addr %s199, 4
      %s201 = scalar_lea.vmem %s0, %s200
      %p202 = scmp.lt.s32.totalorder %s15, 1
      %s203 = scalar_select %p202, %s15, 1
      %s204 = smul.addr %s203, 4
      %s205 = scalar_lea.vmem %s3, %s204
      %p206 = scmp.lt.s32.totalorder %s15, 1
      %s207 = scalar_select %p206, %s15, 1
      %s208 = smul.addr %s207, 4
      %s209 = scalar_lea.vmem %s4, %s208
      %v211 = vld [vmem:[%s201] sm:$0xf]
      %v212 = vpack.c.bf16 %v211, %v211
      %v213 = vld [vmem:[%s1] sm:$0xf]
      %v214 = vld [vmem:[%s1 + $0x4] sm:$0xf]
      %v215 = vld [vmem:[%s1 + $0x8] sm:$0xf]
      %v216 = vld [vmem:[%s1 + $0xc] sm:$0xf]
      %v217 = vld [vmem:[%s2] sm:$0x1]
      %v219 = vlaneseq
      %v220 = vshrl.u32 %v219, 7
      %v221 = vsub.s32 0, %v220
      %v222 = vrot.slane %v217, %v221
      %v228 = vunpack.c.l.b16 %v213
      %v229 = vunpack.c.l.b16 %v214
      %v230 = vunpack.c.l.b16 %v215
      %v231 = vunpack.c.l.b16 %v216
      %v232 = vpack.c.b16 %v229, %v228
      %v233 = vpack.c.b16 %v231, %v230
      %vm236 = vcmask 261120
      %v238 = vsel %vm236, %v212, 0
      %240 = vmatprep.subr.bf16.mxu0 0
      %241 = vmatpush1.bf16.msra.mxu0 0
      %242 = vmatprep.subr.bf16.mxu0 0
      %243 = vmatpush1.bf16.msra.mxu0 0
      %244 = vmatprep.subr.bf16.mxu0 0
      %245 = vmatpush1.bf16.msra.mxu0 0
      %246 = vmatprep.subr.bf16.mxu0 0
      %247 = vmatpush1.bf16.msra.mxu0 0
      %248 = vmatprep.subr.bf16.mxu0 0
      %249 = vmatpush1.bf16.msra.mxu0 0
      %250 = vmatprep.subr.bf16.mxu0 0
      %251 = vmatpush1.bf16.msra.mxu0 0
      %252 = vmatprep.subr.bf16.mxu0 0
      %253 = vmatpush1.bf16.msra.mxu0 %v233
      %254 = vmatprep.subr.bf16.mxu0 0
      %255 = vmatpush1.bf16.msra.mxu0 %v232
      %256 = vmatprep.subr.bf16.mxu0 0
      %257 = vmatpush2.bf16.msra.mxu0 0
      %258 = vmatprep.subr.bf16.mxu0 0
      %259 = vmatpush2.bf16.msra.mxu0 0
      %260 = vmatprep.subr.bf16.mxu0 0
      %261 = vmatpush2.bf16.msra.mxu0 0
      %262 = vmatprep.subr.bf16.mxu0 0
      %263 = vmatpush2.bf16.msra.mxu0 0
      %264 = vmatprep.subr.bf16.mxu0 0
      %265 = vmatpush2.bf16.msra.mxu0 0
      %266 = vmatprep.subr.bf16.mxu0 0
      %267 = vmatpush2.bf16.msra.mxu0 0
      %268 = vmatprep.subr.bf16.mxu0 0
      %269 = vmatpush2.bf16.msra.mxu0 0
      %270 = vmatprep.subr.bf16.mxu0 0
      %271 = vmatpush2.bf16.msra.mxu0 0
      %272 = vmatprep.mubr.bf16.mxu0 0
      %273 = vmatmul.mubr.bf16.gmra.mxu0 %v238
      %v274 = vpop.f32.mrf.mxu0
      %v275 = vadd.f32 %v222, %v274
      %v276 = vpop.f32.mrf.mxu0
      %v277 = vpop.f32.mrf.mxu0
      %v278 = vpop.f32.mrf.mxu0
      %279 = vdwg.mxu0
      %v280 = vld [vmem:[%s205] sm:$0xf]
      %v281 = vadd.f32 %v275, %v280
      %vm282 = vcmask 125952
      %283 = vst.msk [vmem:[%s209] sm:$0xf] %vm282, %v281
      %p284 = scmp.lt.s32.totalorder %s15, 1
      %s285 = scalar_select %p284, %s15, 1
      %s286 = smul.addr %s285, 4
      %s287 = scalar_lea.vmem %s4, %s286
      // Predicated region
      $region37: #{mae_forward.7} parent=35 // pred_check
        %p288 = pneg %p127
      $region38: #{mae_forward.7} parent=35 // pred_check_branch
        %290 = sbr.rel (%p288) target = $region40
      $region39: #{mae_forward.7} parent=35 // pred_region
        _
      $region40: #{mae_forward.7} parent=35 // pred_fallthru
        _
    $region36: #{mae_forward.7} parent=5 // pred_fallthru
      _
    %p291 = scmp.le.s32.totalorder 2, %s10
    // Predicated region
    $region41: #{mae_forward.7} parent=5 // pred_check
      %p292 = pneg %p291
    $region42: #{mae_forward.7} parent=5 // pred_check_branch
      %294 = sbr.rel (%p292) target = $region44
    $region43: #{mae_forward.7} parent=5 // pred_region
      %s295 = ssub.s32 %s10, 2
      // Predicated region
      $region45: #{mae_forward.7} parent=43 // pred_check
        %p296 = pneg %p133
      $region46: #{mae_forward.7} parent=43 // pred_check_branch
        %298 = sbr.rel (%p296) target = $region48
      $region47: #{mae_forward.7} parent=43 // pred_region
        %p299 = scmp.lt.s32.totalorder %s16, 1
        %s300 = scalar_select %p299, %s16, 1
        %s301 = smul.addr %s300, 4
        %s302 = scalar_lea.vmem %s4, %s301
      $region48: #{mae_forward.7} parent=43 // pred_fallthru
        _
    $region44: #{mae_forward.7} parent=5 // pred_fallthru
      _
  $region6: #{mae_forward.7} parent=0 // loop_footer
    %s14 = sadd.s32 1, %s10
  $region7: #{mae_forward.7} parent=0 // loop_footer_branch
    %9 = sbr.rel target = $region3
  $region8: #{mae_forward.7} parent=0 // loop_exit
    _

// kernel: mae_forward.6
$region0: #{mae_forward.6}
  #allocation0 [shape = 'u32[]', space=smem, size = 0x4, offset = 0x4, fixed_abs, tag = 'smem constant byte address 0x4 - core index']
  #allocation1 [shape = 'u32[144,128]{1,0:T(1,128)}', space=vmem, size = 0x12000, scoped, tag = 'internal scratch']
  #allocation2 [shape = 'f32[8,32]{1,0:T(8,128)}', space=vmem, size = 0x1000, scoped, tag = 'scratch operand']
  #allocation3 [shape = 'f32[8,32]{1,0:T(8,128)}', space=vmem, size = 0x1000, scoped, tag = 'scratch operand']
  %s0 = inlined_call_operand.vmem [shape: f32[8,32], index: 0, kind: input, shape index: {}]
  %s1 = inlined_call_operand.vmem [shape: f32[1,1,32], index: 1, kind: input, shape index: {}]
  %s2 = inlined_call_operand.vmem [shape: f32[1,1,32], index: 2, kind: input, shape index: {}]
  %s3 = inlined_call_operand.vmem [shape: bf16[1,32,96], index: 3, kind: input, shape index: {}]
  %s4 = inlined_call_operand.vmem [shape: bf16[1,32,32], index: 4, kind: input, shape index: {}]
  %s5 = inlined_call_operand.vmem [shape: f32[1,1,32], index: 5, kind: input, shape index: {}]
  %s6 = inlined_call_operand.vmem [shape: f32[1,1,32], index: 6, kind: input, shape index: {}]
  %s7 = inlined_call_operand.vmem [shape: f32[1,1,32], index: 7, kind: input, shape index: {}]
  %s8 = inlined_call_operand.vmem [shape: bf16[1,32,128], index: 8, kind: input, shape index: {}]
  %s9 = inlined_call_operand.vmem [shape: f32[1,1,128], index: 9, kind: input, shape index: {}]
  %s10 = inlined_call_operand.vmem [shape: bf16[1,128,32], index: 10, kind: input, shape index: {}]
  %s11 = inlined_call_operand.vmem [shape: f32[1,1,32], index: 11, kind: input, shape index: {}]
  %s12 = inlined_call_operand.vmem [shape: f32[1,32], index: 12, kind: input, shape index: {}]
  %s13 = inlined_call_operand.vmem [shape: f32[1,32], index: 13, kind: input, shape index: {}]
  %s14 = inlined_call_operand.vmem [shape: f32[8,32], index: 14, kind: output, shape index: {}]
  %s15 = sld [smem:[#allocation0]]
  $region74: #{mae_forward.6} parent=0
    _
  %s17 = ssub.s32 1, %s15
  %s18 = scalar_select 0, %s17, %s15
  // Predicated region
  $region2: #{mae_forward.6} parent=0 // pred_check
    _
  $region3: #{mae_forward.6} parent=0 // pred_check_branch
    %20 = sbr.rel (0) target = $region5
  $region4: #{mae_forward.6} parent=0 // pred_region
    _
  $region5: #{mae_forward.6} parent=0 // pred_fallthru
    _
  // Predicated region
  $region6: #{mae_forward.6} parent=0 // pred_check
    _
  $region7: #{mae_forward.6} parent=0 // pred_check_branch
    %22 = sbr.rel (0) target = $region9
  $region8: #{mae_forward.6} parent=0 // pred_region
    _
  $region9: #{mae_forward.6} parent=0 // pred_fallthru
    _
  // Predicated region
  $region10: #{mae_forward.6} parent=0 // pred_check
    _
  $region11: #{mae_forward.6} parent=0 // pred_check_branch
    %24 = sbr.rel (0) target = $region13
  $region12: #{mae_forward.6} parent=0 // pred_region
    _
  $region13: #{mae_forward.6} parent=0 // pred_fallthru
    _
  // Predicated region
  $region14: #{mae_forward.6} parent=0 // pred_check
    _
  $region15: #{mae_forward.6} parent=0 // pred_check_branch
    %26 = sbr.rel (0) target = $region17
  $region16: #{mae_forward.6} parent=0 // pred_region
    _
  $region17: #{mae_forward.6} parent=0 // pred_fallthru
    _
  // Predicated region
  $region18: #{mae_forward.6} parent=0 // pred_check
    _
  $region19: #{mae_forward.6} parent=0 // pred_check_branch
    %28 = sbr.rel (0) target = $region21
  $region20: #{mae_forward.6} parent=0 // pred_region
    _
  $region21: #{mae_forward.6} parent=0 // pred_fallthru
    _
  // Predicated region
  $region22: #{mae_forward.6} parent=0 // pred_check
    _
  $region23: #{mae_forward.6} parent=0 // pred_check_branch
    %30 = sbr.rel (0) target = $region25
  $region24: #{mae_forward.6} parent=0 // pred_region
    _
  $region25: #{mae_forward.6} parent=0 // pred_fallthru
    _
  // Predicated region
  $region26: #{mae_forward.6} parent=0 // pred_check
    _
  $region27: #{mae_forward.6} parent=0 // pred_check_branch
    %32 = sbr.rel (0) target = $region29
  $region28: #{mae_forward.6} parent=0 // pred_region
    _
  $region29: #{mae_forward.6} parent=0 // pred_fallthru
    _
  // Predicated region
  $region30: #{mae_forward.6} parent=0 // pred_check
    _
  $region31: #{mae_forward.6} parent=0 // pred_check_branch
    %34 = sbr.rel (0) target = $region33
  $region32: #{mae_forward.6} parent=0 // pred_region
    _
  $region33: #{mae_forward.6} parent=0 // pred_fallthru
    _
  // Predicated region
  $region34: #{mae_forward.6} parent=0 // pred_check
    _
  $region35: #{mae_forward.6} parent=0 // pred_check_branch
    %36 = sbr.rel (0) target = $region37
  $region36: #{mae_forward.6} parent=0 // pred_region
    _
  $region37: #{mae_forward.6} parent=0 // pred_fallthru
    _
  // Predicated region
  $region38: #{mae_forward.6} parent=0 // pred_check
    _
  $region39: #{mae_forward.6} parent=0 // pred_check_branch
    %38 = sbr.rel (0) target = $region41
  $region40: #{mae_forward.6} parent=0 // pred_region
    _
  $region41: #{mae_forward.6} parent=0 // pred_fallthru
    _
  // Predicated region
  $region42: #{mae_forward.6} parent=0 // pred_check
    _
  $region43: #{mae_forward.6} parent=0 // pred_check_branch
    %40 = sbr.rel (0) target = $region45
  $region44: #{mae_forward.6} parent=0 // pred_region
    _
  $region45: #{mae_forward.6} parent=0 // pred_fallthru
    _
  // Predicated region
  $region46: #{mae_forward.6} parent=0 // pred_check
    _
  $region47: #{mae_forward.6} parent=0 // pred_check_branch
    %42 = sbr.rel (0) target = $region49
  $region48: #{mae_forward.6} parent=0 // pred_region
    _
  $region49: #{mae_forward.6} parent=0 // pred_fallthru
    _
  // Predicated region
  $region50: #{mae_forward.6} parent=0 // pred_check
    _
  $region51: #{mae_forward.6} parent=0 // pred_check_branch
    %44 = sbr.rel (0) target = $region53
  $region52: #{mae_forward.6} parent=0 // pred_region
    _
  $region53: #{mae_forward.6} parent=0 // pred_fallthru
    _
  // Predicated region
  $region54: #{mae_forward.6} parent=0 // pred_check
    _
  $region55: #{mae_forward.6} parent=0 // pred_check_branch
    %46 = sbr.rel (0) target = $region57
  $region56: #{mae_forward.6} parent=0 // pred_region
    _
  $region57: #{mae_forward.6} parent=0 // pred_fallthru
    _
  %p48 = scmp.eq.s32.totalorder 0, 0
  // Predicated region
  $region58: #{mae_forward.6} parent=0 // pred_check
    %p49 = pneg %p48
  $region59: #{mae_forward.6} parent=0 // pred_check_branch
    %51 = sbr.rel (%p49) target = $region61
  $region60: #{mae_forward.6} parent=0 // pred_region
    %v52 = vld [vmem:[%s0] sm:$0xff]
    %vm53 = vcmask 261120
    %54 = vst.msk [vmem:[#allocation2] sm:$0xff] %vm53, %v52
  $region61: #{mae_forward.6} parent=0 // pred_fallthru
    _
  %v55 = vld [vmem:[#allocation2] sm:$0xff]
  %v56 = vld [vmem:[%s1] sm:$0x1]
  %v57 = vld [vmem:[%s2] sm:$0x1]
  %vm58 = vcmask 261120
  %v59 = vsel %vm58, %v55, 0.0
  %60 = vadd.xlane.f32.xlu0 %v59
  %v61 = vpop.xlane.xlu0 %60
  %v62 = vrcp.pop 32.0
  %v63 = vmul.f32 %v61, %v62
  %v64 = vsub.f32 %v55, %v63
  %v65 = vmul.f32 %v64, %v64
  %v66 = vsel %vm58, %v65, 0.0
  %67 = vadd.xlane.f32.xlu0 %v66
  %v68 = vpop.xlane.xlu0 %67
  %v69 = vmul.f32 %v68, %v62
  %v70 = vadd.f32 %v69, 1e-05
  %v71 = vrsqrt.pop %v70
  %v72 = vmul.f32 %v64, %v71
  %v74 = vlaneseq
  %v75 = vshrl.u32 %v74, 7
  %v76 = vsub.s32 0, %v75
  %v77 = vrot.slane %v56, %v76
  %v79 = vmul.f32 %v72, %v77
  %v81 = vlaneseq
  %v82 = vshrl.u32 %v81, 7
  %v83 = vsub.s32 0, %v82
  %v84 = vrot.slane %v57, %v83
  %v86 = vadd.f32 %v79, %v84
  %v87 = vpack.c.bf16 %v86, %v86
  %v88 = vld [vmem:[%s3] sm:$0xf]
  %v89 = vld [vmem:[%s3 + $0x4] sm:$0xf]
  %v90 = vld [vmem:[%s3 + $0x8] sm:$0xf]
  %v91 = vld [vmem:[%s3 + $0xc] sm:$0xf]
  %v96 = vunpack.c.l.b16 %v88
  %v97 = vunpack.c.l.b16 %v89
  %v98 = vunpack.c.l.b16 %v90
  %v99 = vunpack.c.l.b16 %v91
  %v100 = vpack.c.b16 %v97, %v96
  %v101 = vpack.c.b16 %v99, %v98
  %v105 = vsel %vm58, %v87, 0
  %107 = vmatprep.subr.bf16.mxu0 0
  %108 = vmatpush1.bf16.msra.mxu0 0
  %109 = vmatprep.subr.bf16.mxu0 0
  %110 = vmatpush1.bf16.msra.mxu0 0
  %111 = vmatprep.subr.bf16.mxu0 0
  %112 = vmatpush1.bf16.msra.mxu0 0
  %113 = vmatprep.subr.bf16.mxu0 0
  %114 = vmatpush1.bf16.msra.mxu0 0
  %115 = vmatprep.subr.bf16.mxu0 0
  %116 = vmatpush1.bf16.msra.mxu0 0
  %117 = vmatprep.subr.bf16.mxu0 0
  %118 = vmatpush1.bf16.msra.mxu0 0
  %119 = vmatprep.subr.bf16.mxu0 0
  %120 = vmatpush1.bf16.msra.mxu0 %v101
  %121 = vmatprep.subr.bf16.mxu0 0
  %122 = vmatpush1.bf16.msra.mxu0 %v100
  %123 = vmatprep.subr.bf16.mxu0 0
  %124 = vmatpush2.bf16.msra.mxu0 0
  %125 = vmatprep.subr.bf16.mxu0 0
  %126 = vmatpush2.bf16.msra.mxu0 0
  %127 = vmatprep.subr.bf16.mxu0 0
  %128 = vmatpush2.bf16.msra.mxu0 0
  %129 = vmatprep.subr.bf16.mxu0 0
  %130 = vmatpush2.bf16.msra.mxu0 0
  %131 = vmatprep.subr.bf16.mxu0 0
  %132 = vmatpush2.bf16.msra.mxu0 0
  %133 = vmatprep.subr.bf16.mxu0 0
  %134 = vmatpush2.bf16.msra.mxu0 0
  %135 = vmatprep.subr.bf16.mxu0 0
  %136 = vmatpush2.bf16.msra.mxu0 0
  %137 = vmatprep.subr.bf16.mxu0 0
  %138 = vmatpush2.bf16.msra.mxu0 0
  %139 = vmatprep.mubr.bf16.mxu0 0
  %140 = vmatmul.mubr.bf16.gmra.mxu0 %v105
  %v141 = vpop.f32.mrf.mxu0
  %v142 = vadd.f32 0.0, %v141
  %v143 = vpop.f32.mrf.mxu0
  %v144 = vpop.f32.mrf.mxu0
  %v145 = vpop.f32.mrf.mxu0
  %146 = vdwg.mxu0
  %v147 = vpack.c.bf16 %v142, %v142
  %149 = vrot.lane.b32.xlu0 %v147, 96
  %v150 = vpop.permute.xlu0 %149
  %vm151 = vcmask 64512
  %v153 = vsel %vm151, %v147, 0
  %v156 = vsel %vm151, %v150, 0
  %158 = vmatprep.subr.bf16.mxu0 0
  %159 = vmatpush1.bf16.xpose.msra.mxu0 0
  %160 = vmatprep.subr.bf16.mxu0 0
  %161 = vmatpush1.bf16.xpose.msra.mxu0 0
  %162 = vmatprep.subr.bf16.mxu0 0
  %163 = vmatpush1.bf16.xpose.msra.mxu0 0
  %164 = vmatprep.subr.bf16.mxu0 0
  %165 = vmatpush1.bf16.xpose.msra.mxu0 0
  %166 = vmatprep.subr.bf16.mxu0 0
  %167 = vmatpush1.bf16.xpose.msra.mxu0 0
  %168 = vmatprep.subr.bf16.mxu0 0
  %169 = vmatpush1.bf16.xpose.msra.mxu0 0
  %170 = vmatprep.subr.bf16.mxu0 0
  %171 = vmatpush1.bf16.xpose.msra.mxu0 0
  %172 = vmatprep.subr.bf16.mxu0 0
  %173 = vmatpush1.bf16.xpose.msra.mxu0 %v156
  %174 = vmatprep.subr.bf16.mxu0 0
  %175 = vmatpush2.bf16.xpose.msra.mxu0 0
  %176 = vmatprep.subr.bf16.mxu0 0
  %177 = vmatpush2.bf16.xpose.msra.mxu0 0
  %178 = vmatprep.subr.bf16.mxu0 0
  %179 = vmatpush2.bf16.xpose.msra.mxu0 0
  %180 = vmatprep.subr.bf16.mxu0 0
  %181 = vmatpush2.bf16.xpose.msra.mxu0 0
  %182 = vmatprep.subr.bf16.mxu0 0
  %183 = vmatpush2.bf16.xpose.msra.mxu0 0
  %184 = vmatprep.subr.bf16.mxu0 0
  %185 = vmatpush2.bf16.xpose.msra.mxu0 0
  %186 = vmatprep.subr.bf16.mxu0 0
  %187 = vmatpush2.bf16.xpose.msra.mxu0 0
  %188 = vmatprep.subr.bf16.mxu0 0
  %189 = vmatpush2.bf16.xpose.msra.mxu0 0
  %190 = vmatprep.mubr.bf16.mxu0 0
  %191 = vmatmul.mubr.bf16.gmra.mxu0 %v153
  %v192 = vpop.f32.mrf.mxu0
  %v193 = vadd.f32 0.0, %v192
  %v194 = vpop.f32.mrf.mxu0
  %v195 = vpop.f32.mrf.mxu0
  %v196 = vpop.f32.mrf.mxu0
  %197 = vdwg.mxu0
  %vm198 = vcmask 27648
  %v199 = vsel %vm198, %v193, -inf
  %200 = vmax.xlane.f32.xlu0 %v199
  %v201 = vpop.xlane.xlu0 %200
  %v202 = vsub.f32 %v193, %v201
  %v203 = vmul.f32 %v202, 1.442695
  %v204 = vpow.pop %v203
  %v205 = vsel %vm198, %v204, 0.0
  %206 = vadd.xlane.f32.xlu0 %v205
  %v207 = vpop.xlane.xlu0 %206
  %v208 = vrcp.pop %v207
  %v209 = vmul.f32 %v204, %v208
  %v210 = vpack.c.bf16 %v209, %v209
  %211 = vrot.lane.b32.xlu0 %v147, 64
  %v212 = vpop.permute.xlu0 %211
  %vm213 = vcmask 31744
  %v215 = vsel %vm213, %v210, 0
  %vm217 = vcmask 1041408
  %v219 = vsel %vm217, %v212, 0
  %221 = vmatprep.subr.bf16.mxu0 0
  %222 = vmatpush1.bf16.msra.mxu0 0
  %223 = vmatprep.subr.bf16.mxu0 0
  %224 = vmatpush1.bf16.msra.mxu0 0
  %225 = vmatprep.subr.bf16.mxu0 0
  %226 = vmatpush1.bf16.msra.mxu0 0
  %227 = vmatprep.subr.bf16.mxu0 0
  %228 = vmatpush1.bf16.msra.mxu0 0
  %229 = vmatprep.subr.bf16.mxu0 0
  %230 = vmatpush1.bf16.msra.mxu0 0
  %231 = vmatprep.subr.bf16.mxu0 0
  %232 = vmatpush1.bf16.msra.mxu0 0
  %233 = vmatprep.subr.bf16.mxu0 0
  %234 = vmatpush1.bf16.msra.mxu0 0
  %235 = vmatprep.subr.bf16.mxu0 0
  %236 = vmatpush1.bf16.msra.mxu0 %v219
  %237 = vmatprep.subr.bf16.mxu0 0
  %238 = vmatpush2.bf16.msra.mxu0 0
  %239 = vmatprep.subr.bf16.mxu0 0
  %240 = vmatpush2.bf16.msra.mxu0 0
  %241 = vmatprep.subr.bf16.mxu0 0
  %242 = vmatpush2.bf16.msra.mxu0 0
  %243 = vmatprep.subr.bf16.mxu0 0
  %244 = vmatpush2.bf16.msra.mxu0 0
  %245 = vmatprep.subr.bf16.mxu0 0
  %246 = vmatpush2.bf16.msra.mxu0 0
  %247 = vmatprep.subr.bf16.mxu0 0
  %248 = vmatpush2.bf16.msra.mxu0 0
  %249 = vmatprep.subr.bf16.mxu0 0
  %250 = vmatpush2.bf16.msra.mxu0 0
  %251 = vmatprep.subr.bf16.mxu0 0
  %252 = vmatpush2.bf16.msra.mxu0 0
  %253 = vmatprep.mubr.bf16.mxu0 0
  %254 = vmatmul.mubr.bf16.gmra.mxu0 %v215
  %v255 = vpop.f32.mrf.mxu0
  %v256 = vadd.f32 0.0, %v255
  %v257 = vpop.f32.mrf.mxu0
  %v258 = vpop.f32.mrf.mxu0
  %v259 = vpop.f32.mrf.mxu0
  %260 = vdwg.mxu0
  %vm261 = vcmask 60416
  %262 = vst.msk [vmem:[#allocation3] sm:$0xf] %vm261, %v256
  %263 = vrot.lane.b32.xlu0 %v147, 120
  %v264 = vpop.permute.xlu0 %263
  %265 = vrot.lane.b32.xlu0 %v147, 88
  %v266 = vpop.permute.xlu0 %265
  %v268 = vsel %vm151, %v264, 0
  %v271 = vsel %vm151, %v266, 0
  %273 = vmatprep.subr.bf16.mxu0 0
  %274 = vmatpush1.bf16.xpose.msra.mxu0 0
  %275 = vmatprep.subr.bf16.mxu0 0
  %276 = vmatpush1.bf16.xpose.msra.mxu0 0
  %277 = vmatprep.subr.bf16.mxu0 0
  %278 = vmatpush1.bf16.xpose.msra.mxu0 0
  %279 = vmatprep.subr.bf16.mxu0 0
  %280 = vmatpush1.bf16.xpose.msra.mxu0 0
  %281 = vmatprep.subr.bf16.mxu0 0
  %282 = vmatpush1.bf16.xpose.msra.mxu0 0
  %283 = vmatprep.subr.bf16.mxu0 0
  %284 = vmatpush1.bf16.xpose.msra.mxu0 0
  %285 = vmatprep.subr.bf16.mxu0 0
  %286 = vmatpush1.bf16.xpose.msra.mxu0 0
  %287 = vmatprep.subr.bf16.mxu0 0
  %288 = vmatpush1.bf16.xpose.msra.mxu0 %v271
  %289 = vmatprep.subr.bf16.mxu0 0
  %290 = vmatpush2.bf16.xpose.msra.mxu0 0
  %291 = vmatprep.subr.bf16.mxu0 0
  %292 = vmatpush2.bf16.xpose.msra.mxu0 0
  %293 = vmatprep.subr.bf16.mxu0 0
  %294 = vmatpush2.bf16.xpose.msra.mxu0 0
  %295 = vmatprep.subr.bf16.mxu0 0
  %296 = vmatpush2.bf16.xpose.msra.mxu0 0
  %297 = vmatprep.subr.bf16.mxu0 0
  %298 = vmatpush2.bf16.xpose.msra.mxu0 0
  %299 = vmatprep.subr.bf16.mxu0 0
  %300 = vmatpush2.bf16.xpose.msra.mxu0 0
  %301 = vmatprep.subr.bf16.mxu0 0
  %302 = vmatpush2.bf16.xpose.msra.mxu0 0
  %303 = vmatprep.subr.bf16.mxu0 0
  %304 = vmatpush2.bf16.xpose.msra.mxu0 0
  %305 = vmatprep.mubr.bf16.mxu0 0
  %306 = vmatmul.mubr.bf16.gmra.mxu0 %v268
  %v307 = vpop.f32.mrf.mxu0
  %v308 = vadd.f32 0.0, %v307
  %v309 = vpop.f32.mrf.mxu0
  %v310 = vpop.f32.mrf.mxu0
  %v311 = vpop.f32.mrf.mxu0
  %312 = vdwg.mxu0
  %v313 = vsel %vm198, %v308, -inf
  %314 = vmax.xlane.f32.xlu0 %v313
  %v315 = vpop.xlane.xlu0 %314
  %v316 = vsub.f32 %v308, %v315
  %v317 = vmul.f32 %v316, 1.442695
  %v318 = vpow.pop %v317
  %v319 = vsel %vm198, %v318, 0.0
  %320 = vadd.xlane.f32.xlu0 %v319
  %v321 = vpop.xlane.xlu0 %320
  %v322 = vrcp.pop %v321
  %v323 = vmul.f32 %v318, %v322
  %v324 = vpack.c.bf16 %v323, %v323
  %325 = vrot.lane.b32.xlu0 %v147, 56
  %v326 = vpop.permute.xlu0 %325
  %v328 = vsel %vm213, %v324, 0
  %v331 = vsel %vm217, %v326, 0
  %333 = vmatprep.subr.bf16.mxu0 0
  %334 = vmatpush1.bf16.msra.mxu0 0
  %335 = vmatprep.subr.bf16.mxu0 0
  %336 = vmatpush1.bf16.msra.mxu0 0
  %337 = vmatprep.subr.bf16.mxu0 0
  %338 = vmatpush1.bf16.msra.mxu0 0
  %339 = vmatprep.subr.bf16.mxu0 0
  %340 = vmatpush1.bf16.msra.mxu0 0
  %341 = vmatprep.subr.bf16.mxu0 0
  %342 = vmatpush1.bf16.msra.mxu0 0
  %343 = vmatprep.subr.bf16.mxu0 0
  %344 = vmatpush1.bf16.msra.mxu0 0
  %345 = vmatprep.subr.bf16.mxu0 0
  %346 = vmatpush1.bf16.msra.mxu0 0
  %347 = vmatprep.subr.bf16.mxu0 0
  %348 = vmatpush1.bf16.msra.mxu0 %v331
  %349 = vmatprep.subr.bf16.mxu0 0
  %350 = vmatpush2.bf16.msra.mxu0 0
  %351 = vmatprep.subr.bf16.mxu0 0
  %352 = vmatpush2.bf16.msra.mxu0 0
  %353 = vmatprep.subr.bf16.mxu0 0
  %354 = vmatpush2.bf16.msra.mxu0 0
  %355 = vmatprep.subr.bf16.mxu0 0
  %356 = vmatpush2.bf16.msra.mxu0 0
  %357 = vmatprep.subr.bf16.mxu0 0
  %358 = vmatpush2.bf16.msra.mxu0 0
  %359 = vmatprep.subr.bf16.mxu0 0
  %360 = vmatpush2.bf16.msra.mxu0 0
  %361 = vmatprep.subr.bf16.mxu0 0
  %362 = vmatpush2.bf16.msra.mxu0 0
  %363 = vmatprep.subr.bf16.mxu0 0
  %364 = vmatpush2.bf16.msra.mxu0 0
  %365 = vmatprep.mubr.bf16.mxu0 0
  %366 = vmatmul.mubr.bf16.gmra.mxu0 %v328
  %v367 = vpop.f32.mrf.mxu0
  %v368 = vadd.f32 0.0, %v367
  %v369 = vpop.f32.mrf.mxu0
  %v370 = vpop.f32.mrf.mxu0
  %v371 = vpop.f32.mrf.mxu0
  %372 = vdwg.mxu0
  %374 = vrot.lane.b32.xlu0 %v368, 8
  %v375 = vpop.permute.xlu0 %374
  %vm377 = vcmask 126016
  %378 = vst.msk [vmem:[#allocation3] sm:$0xf] %vm377, %v375
  %379 = vrot.lane.b32.xlu0 %v147, 112
  %v380 = vpop.permute.xlu0 %379
  %381 = vrot.lane.b32.xlu0 %v147, 80
  %v382 = vpop.permute.xlu0 %381
  %v384 = vsel %vm151, %v380, 0
  %v387 = vsel %vm151, %v382, 0
  %389 = vmatprep.subr.bf16.mxu0 0
  %390 = vmatpush1.bf16.xpose.msra.mxu0 0
  %391 = vmatprep.subr.bf16.mxu0 0
  %392 = vmatpush1.bf16.xpose.msra.mxu0 0
  %393 = vmatprep.subr.bf16.mxu0 0
  %394 = vmatpush1.bf16.xpose.msra.mxu0 0
  %395 = vmatprep.subr.bf16.mxu0 0
  %396 = vmatpush1.bf16.xpose.msra.mxu0 0
  %397 = vmatprep.subr.bf16.mxu0 0
  %398 = vmatpush1.bf16.xpose.msra.mxu0 0
  %399 = vmatprep.subr.bf16.mxu0 0
  %400 = vmatpush1.bf16.xpose.msra.mxu0 0
  %401 = vmatprep.subr.bf16.mxu0 0
  %402 = vmatpush1.bf16.xpose.msra.mxu0 0
  %403 = vmatprep.subr.bf16.mxu0 0
  %404 = vmatpush1.bf16.xpose.msra.mxu0 %v387
  %405 = vmatprep.subr.bf16.mxu0 0
  %406 = vmatpush2.bf16.xpose.msra.mxu0 0
  %407 = vmatprep.subr.bf16.mxu0 0
  %408 = vmatpush2.bf16.xpose.msra.mxu0 0
  %409 = vmatprep.subr.bf16.mxu0 0
  %410 = vmatpush2.bf16.xpose.msra.mxu0 0
  %411 = vmatprep.subr.bf16.mxu0 0
  %412 = vmatpush2.bf16.xpose.msra.mxu0 0
  %413 = vmatprep.subr.bf16.mxu0 0
  %414 = vmatpush2.bf16.xpose.msra.mxu0 0
  %415 = vmatprep.subr.bf16.mxu0 0
  %416 = vmatpush2.bf16.xpose.msra.mxu0 0
  %417 = vmatprep.subr.bf16.mxu0 0
  %418 = vmatpush2.bf16.xpose.msra.mxu0 0
  %419 = vmatprep.subr.bf16.mxu0 0
  %420 = vmatpush2.bf16.xpose.msra.mxu0 0
  %421 = vmatprep.mubr.bf16.mxu0 0
  %422 = vmatmul.mubr.bf16.gmra.mxu0 %v384
  %v423 = vpop.f32.mrf.mxu0
  %v424 = vadd.f32 0.0, %v423
  %v425 = vpop.f32.mrf.mxu0
  %v426 = vpop.f32.mrf.mxu0
  %v427 = vpop.f32.mrf.mxu0
  %428 = vdwg.mxu0
  %v429 = vsel %vm198, %v424, -inf
  %430 = vmax.xlane.f32.xlu0 %v429
  %v431 = vpop.xlane.xlu0 %430
  %v432 = vsub.f32 %v424, %v431
  %v433 = vmul.f32 %v432, 1.442695
  %v434 = vpow.pop %v433
  %v435 = vsel %vm198, %v434, 0.0
  %436 = vadd.xlane.f32.xlu0 %v435
  %v437 = vpop.xlane.xlu0 %436
  %v438 = vrcp.pop %v437
  %v439 = vmul.f32 %v434, %v438
  %v440 = vpack.c.bf16 %v439, %v439
  %441 = vrot.lane.b32.xlu0 %v147, 48
  %v442 = vpop.permute.xlu0 %441
  %v444 = vsel %vm213, %v440, 0
  %v447 = vsel %vm217, %v442, 0
  %449 = vmatprep.subr.bf16.mxu0 0
  %450 = vmatpush1.bf16.msra.mxu0 0
  %451 = vmatprep.subr.bf16.mxu0 0
  %452 = vmatpush1.bf16.msra.mxu0 0
  %453 = vmatprep.subr.bf16.mxu0 0
  %454 = vmatpush1.bf16.msra.mxu0 0
  %455 = vmatprep.subr.bf16.mxu0 0
  %456 = vmatpush1.bf16.msra.mxu0 0
  %457 = vmatprep.subr.bf16.mxu0 0
  %458 = vmatpush1.bf16.msra.mxu0 0
  %459 = vmatprep.subr.bf16.mxu0 0
  %460 = vmatpush1.bf16.msra.mxu0 0
  %461 = vmatprep.subr.bf16.mxu0 0
  %462 = vmatpush1.bf16.msra.mxu0 0
  %463 = vmatprep.subr.bf16.mxu0 0
  %464 = vmatpush1.bf16.msra.mxu0 %v447
  %465 = vmatprep.subr.bf16.mxu0 0
  %466 = vmatpush2.bf16.msra.mxu0 0
  %467 = vmatprep.subr.bf16.mxu0 0
  %468 = vmatpush2.bf16.msra.mxu0 0
  %469 = vmatprep.subr.bf16.mxu0 0
  %470 = vmatpush2.bf16.msra.mxu0 0
  %471 = vmatprep.subr.bf16.mxu0 0
  %472 = vmatpush2.bf16.msra.mxu0 0
  %473 = vmatprep.subr.bf16.mxu0 0
  %474 = vmatpush2.bf16.msra.mxu0 0
  %475 = vmatprep.subr.bf16.mxu0 0
  %476 = vmatpush2.bf16.msra.mxu0 0
  %477 = vmatprep.subr.bf16.mxu0 0
  %478 = vmatpush2.bf16.msra.mxu0 0
  %479 = vmatprep.subr.bf16.mxu0 0
  %480 = vmatpush2.bf16.msra.mxu0 0
  %481 = vmatprep.mubr.bf16.mxu0 0
  %482 = vmatmul.mubr.bf16.gmra.mxu0 %v444
  %v483 = vpop.f32.mrf.mxu0
  %v484 = vadd.f32 0.0, %v483
  %v485 = vpop.f32.mrf.mxu0
  %v486 = vpop.f32.mrf.mxu0
  %v487 = vpop.f32.mrf.mxu0
  %488 = vdwg.mxu0
  %490 = vrot.lane.b32.xlu0 %v484, 16
  %v491 = vpop.permute.xlu0 %490
  %vm493 = vcmask 191616
  %494 = vst.msk [vmem:[#allocation3] sm:$0xf] %vm493, %v491
  %495 = vrot.lane.b32.xlu0 %v147, 104
  %v496 = vpop.permute.xlu0 %495
  %497 = vrot.lane.b32.xlu0 %v147, 72
  %v498 = vpop.permute.xlu0 %497
  %v500 = vsel %vm151, %v496, 0
  %v503 = vsel %vm151, %v498, 0
  %505 = vmatprep.subr.bf16.mxu0 0
  %506 = vmatpush1.bf16.xpose.msra.mxu0 0
  %507 = vmatprep.subr.bf16.mxu0 0
  %508 = vmatpush1.bf16.xpose.msra.mxu0 0
  %509 = vmatprep.subr.bf16.mxu0 0
  %510 = vmatpush1.bf16.xpose.msra.mxu0 0
  %511 = vmatprep.subr.bf16.mxu0 0
  %512 = vmatpush1.bf16.xpose.msra.mxu0 0
  %513 = vmatprep.subr.bf16.mxu0 0
  %514 = vmatpush1.bf16.xpose.msra.mxu0 0
  %515 = vmatprep.subr.bf16.mxu0 0
  %516 = vmatpush1.bf16.xpose.msra.mxu0 0
  %517 = vmatprep.subr.bf16.mxu0 0
  %518 = vmatpush1.bf16.xpose.msra.mxu0 0
  %519 = vmatprep.subr.bf16.mxu0 0
  %520 = vmatpush1.bf16.xpose.msra.mxu0 %v503
  %521 = vmatprep.subr.bf16.mxu0 0
  %522 = vmatpush2.bf16.xpose.msra.mxu0 0
  %523 = vmatprep.subr.bf16.mxu0 0
  %524 = vmatpush2.bf16.xpose.msra.mxu0 0
  %525 = vmatprep.subr.bf16.mxu0 0
  %526 = vmatpush2.bf16.xpose.msra.mxu0 0
  %527 = vmatprep.subr.bf16.mxu0 0
  %528 = vmatpush2.bf16.xpose.msra.mxu0 0
  %529 = vmatprep.subr.bf16.mxu0 0
  %530 = vmatpush2.bf16.xpose.msra.mxu0 0
  %531 = vmatprep.subr.bf16.mxu0 0
  %532 = vmatpush2.bf16.xpose.msra.mxu0 0
  %533 = vmatprep.subr.bf16.mxu0 0
  %534 = vmatpush2.bf16.xpose.msra.mxu0 0
  %535 = vmatprep.subr.bf16.mxu0 0
  %536 = vmatpush2.bf16.xpose.msra.mxu0 0
  %537 = vmatprep.mubr.bf16.mxu0 0
  %538 = vmatmul.mubr.bf16.gmra.mxu0 %v500
  %v539 = vpop.f32.mrf.mxu0
  %v540 = vadd.f32 0.0, %v539
  %v541 = vpop.f32.mrf.mxu0
  %v542 = vpop.f32.mrf.mxu0
  %v543 = vpop.f32.mrf.mxu0
  %544 = vdwg.mxu0
  %v545 = vsel %vm198, %v540, -inf
  %546 = vmax.xlane.f32.xlu0 %v545
  %v547 = vpop.xlane.xlu0 %546
  %v548 = vsub.f32 %v540, %v547
  %v549 = vmul.f32 %v548, 1.442695
  %v550 = vpow.pop %v549
  %v551 = vsel %vm198, %v550, 0.0
  %552 = vadd.xlane.f32.xlu0 %v551
  %v553 = vpop.xlane.xlu0 %552
  %v554 = vrcp.pop %v553
  %v555 = vmul.f32 %v550, %v554
  %v556 = vpack.c.bf16 %v555, %v555
  %557 = vrot.lane.b32.xlu0 %v147, 40
  %v558 = vpop.permute.xlu0 %557
  %v560 = vsel %vm213, %v556, 0
  %v563 = vsel %vm217, %v558, 0
  %565 = vmatprep.subr.bf16.mxu0 0
  %566 = vmatpush1.bf16.msra.mxu0 0
  %567 = vmatprep.subr.bf16.mxu0 0
  %568 = vmatpush1.bf16.msra.mxu0 0
  %569 = vmatprep.subr.bf16.mxu0 0
  %570 = vmatpush1.bf16.msra.mxu0 0
  %571 = vmatprep.subr.bf16.mxu0 0
  %572 = vmatpush1.bf16.msra.mxu0 0
  %573 = vmatprep.subr.bf16.mxu0 0
  %574 = vmatpush1.bf16.msra.mxu0 0
  %575 = vmatprep.subr.bf16.mxu0 0
  %576 = vmatpush1.bf16.msra.mxu0 0
  %577 = vmatprep.subr.bf16.mxu0 0
  %578 = vmatpush1.bf16.msra.mxu0 0
  %579 = vmatprep.subr.bf16.mxu0 0
  %580 = vmatpush1.bf16.msra.mxu0 %v563
  %581 = vmatprep.subr.bf16.mxu0 0
  %582 = vmatpush2.bf16.msra.mxu0 0
  %583 = vmatprep.subr.bf16.mxu0 0
  %584 = vmatpush2.bf16.msra.mxu0 0
  %585 = vmatprep.subr.bf16.mxu0 0
  %586 = vmatpush2.bf16.msra.mxu0 0
  %587 = vmatprep.subr.bf16.mxu0 0
  %588 = vmatpush2.bf16.msra.mxu0 0
  %589 = vmatprep.subr.bf16.mxu0 0
  %590 = vmatpush2.bf16.msra.mxu0 0
  %591 = vmatprep.subr.bf16.mxu0 0
  %592 = vmatpush2.bf16.msra.mxu0 0
  %593 = vmatprep.subr.bf16.mxu0 0
  %594 = vmatpush2.bf16.msra.mxu0 0
  %595 = vmatprep.subr.bf16.mxu0 0
  %596 = vmatpush2.bf16.msra.mxu0 0
  %597 = vmatprep.mubr.bf16.mxu0 0
  %598 = vmatmul.mubr.bf16.gmra.mxu0 %v560
  %v599 = vpop.f32.mrf.mxu0
  %v600 = vadd.f32 0.0, %v599
  %v601 = vpop.f32.mrf.mxu0
  %v602 = vpop.f32.mrf.mxu0
  %v603 = vpop.f32.mrf.mxu0
  %604 = vdwg.mxu0
  %606 = vrot.lane.b32.xlu0 %v600, 24
  %v607 = vpop.permute.xlu0 %606
  %vm609 = vcmask 257216
  %610 = vst.msk [vmem:[#allocation3] sm:$0xf] %vm609, %v607
  %v611 = vrot.slane %v147, 2
  %612 = vrot.lane.b32.xlu0 %v611, 96
  %v613 = vpop.permute.xlu0 %612
  %v615 = vsel %vm151, %v611, 0
  %v618 = vsel %vm151, %v613, 0
  %620 = vmatprep.subr.bf16.mxu0 0
  %621 = vmatpush1.bf16.xpose.msra.mxu0 0
  %622 = vmatprep.subr.bf16.mxu0 0
  %623 = vmatpush1.bf16.xpose.msra.mxu0 0
  %624 = vmatprep.subr.bf16.mxu0 0
  %625 = vmatpush1.bf16.xpose.msra.mxu0 0
  %626 = vmatprep.subr.bf16.mxu0 0
  %627 = vmatpush1.bf16.xpose.msra.mxu0 0
  %628 = vmatprep.subr.bf16.mxu0 0
  %629 = vmatpush1.bf16.xpose.msra.mxu0 0
  %630 = vmatprep.subr.bf16.mxu0 0
  %631 = vmatpush1.bf16.xpose.msra.mxu0 0
  %632 = vmatprep.subr.bf16.mxu0 0
  %633 = vmatpush1.bf16.xpose.msra.mxu0 0
  %634 = vmatprep.subr.bf16.mxu0 0
  %635 = vmatpush1.bf16.xpose.msra.mxu0 %v618
  %636 = vmatprep.subr.bf16.mxu0 0
  %637 = vmatpush2.bf16.xpose.msra.mxu0 0
  %638 = vmatprep.subr.bf16.mxu0 0
  %639 = vmatpush2.bf16.xpose.msra.mxu0 0
  %640 = vmatprep.subr.bf16.mxu0 0
  %641 = vmatpush2.bf16.xpose.msra.mxu0 0
  %642 = vmatprep.subr.bf16.mxu0 0
  %643 = vmatpush2.bf16.xpose.msra.mxu0 0
  %644 = vmatprep.subr.bf16.mxu0 0
  %645 = vmatpush2.bf16.xpose.msra.mxu0 0
  %646 = vmatprep.subr.bf16.mxu0 0
  %647 = vmatpush2.bf16.xpose.msra.mxu0 0
  %648 = vmatprep.subr.bf16.mxu0 0
  %649 = vmatpush2.bf16.xpose.msra.mxu0 0
  %650 = vmatprep.subr.bf16.mxu0 0
  %651 = vmatpush2.bf16.xpose.msra.mxu0 0
  %652 = vmatprep.mubr.bf16.mxu0 0
  %653 = vmatmul.mubr.bf16.gmra.mxu0 %v615
  %v654 = vpop.f32.mrf.mxu0
  %v655 = vadd.f32 0.0, %v654
  %v656 = vpop.f32.mrf.mxu0
  %v657 = vpop.f32.mrf.mxu0
  %v658 = vpop.f32.mrf.mxu0
  %659 = vdwg.mxu0
  %v660 = vsel %vm198, %v655, -inf
  %661 = vmax.xlane.f32.xlu0 %v660
  %v662 = vpop.xlane.xlu0 %661
  %v663 = vsub.f32 %v655, %v662
  %v664 = vmul.f32 %v663, 1.442695
  %v665 = vpow.pop %v664
  %v666 = vsel %vm198, %v665, 0.0
  %667 = vadd.xlane.f32.xlu0 %v666
  %v668 = vpop.xlane.xlu0 %667
  %v669 = vrcp.pop %v668
  %v670 = vmul.f32 %v665, %v669
  %v671 = vpack.c.bf16 %v670, %v670
  %672 = vrot.lane.b32.xlu0 %v611, 64
  %v673 = vpop.permute.xlu0 %672
  %v675 = vsel %vm213, %v671, 0
  %v678 = vsel %vm217, %v673, 0
  %680 = vmatprep.subr.bf16.mxu0 0
  %681 = vmatpush1.bf16.msra.mxu0 0
  %682 = vmatprep.subr.bf16.mxu0 0
  %683 = vmatpush1.bf16.msra.mxu0 0
  %684 = vmatprep.subr.bf16.mxu0 0
  %685 = vmatpush1.bf16.msra.mxu0 0
  %686 = vmatprep.subr.bf16.mxu0 0
  %687 = vmatpush1.bf16.msra.mxu0 0
  %688 = vmatprep.subr.bf16.mxu0 0
  %689 = vmatpush1.bf16.msra.mxu0 0
  %690 = vmatprep.subr.bf16.mxu0 0
  %691 = vmatpush1.bf16.msra.mxu0 0
  %692 = vmatprep.subr.bf16.mxu0 0
  %693 = vmatpush1.bf16.msra.mxu0 0
  %694 = vmatprep.subr.bf16.mxu0 0
  %695 = vmatpush1.bf16.msra.mxu0 %v678
  %696 = vmatprep.subr.bf16.mxu0 0
  %697 = vmatpush2.bf16.msra.mxu0 0
  %698 = vmatprep.subr.bf16.mxu0 0
  %699 = vmatpush2.bf16.msra.mxu0 0
  %700 = vmatprep.subr.bf16.mxu0 0
  %701 = vmatpush2.bf16.msra.mxu0 0
  %702 = vmatprep.subr.bf16.mxu0 0
  %703 = vmatpush2.bf16.msra.mxu0 0
  %704 = vmatprep.subr.bf16.mxu0 0
  %705 = vmatpush2.bf16.msra.mxu0 0
  %706 = vmatprep.subr.bf16.mxu0 0
  %707 = vmatpush2.bf16.msra.mxu0 0
  %708 = vmatprep.subr.bf16.mxu0 0
  %709 = vmatpush2.bf16.msra.mxu0 0
  %710 = vmatprep.subr.bf16.mxu0 0
  %711 = vmatpush2.bf16.msra.mxu0 0
  %712 = vmatprep.mubr.bf16.mxu0 0
  %713 = vmatmul.mubr.bf16.gmra.mxu0 %v675
  %v714 = vpop.f32.mrf.mxu0
  %v715 = vadd.f32 0.0, %v714
  %v716 = vpop.f32.mrf.mxu0
  %v717 = vpop.f32.mrf.mxu0
  %v718 = vpop.f32.mrf.mxu0
  %719 = vdwg.mxu0
  %720 = vst.msk [vmem:[#allocation3 + $0x4] sm:$0xf] %vm261, %v715
  %721 = vrot.lane.b32.xlu0 %v611, 120
  %v722 = vpop.permute.xlu0 %721
  %723 = vrot.lane.b32.xlu0 %v611, 88
  %v724 = vpop.permute.xlu0 %723
  %v726 = vsel %vm151, %v722, 0
  %v729 = vsel %vm151, %v724, 0
  %731 = vmatprep.subr.bf16.mxu0 0
  %732 = vmatpush1.bf16.xpose.msra.mxu0 0
  %733 = vmatprep.subr.bf16.mxu0 0
  %734 = vmatpush1.bf16.xpose.msra.mxu0 0
  %735 = vmatprep.subr.bf16.mxu0 0
  %736 = vmatpush1.bf16.xpose.msra.mxu0 0
  %737 = vmatprep.subr.bf16.mxu0 0
  %738 = vmatpush1.bf16.xpose.msra.mxu0 0
  %739 = vmatprep.subr.bf16.mxu0 0
  %740 = vmatpush1.bf16.xpose.msra.mxu0 0
  %741 = vmatprep.subr.bf16.mxu0 0
  %742 = vmatpush1.bf16.xpose.msra.mxu0 0
  %743 = vmatprep.subr.bf16.mxu0 0
  %744 = vmatpush1.bf16.xpose.msra.mxu0 0
  %745 = vmatprep.subr.bf16.mxu0 0
  %746 = vmatpush1.bf16.xpose.msra.mxu0 %v729
  %747 = vmatprep.subr.bf16.mxu0 0
  %748 = vmatpush2.bf16.xpose.msra.mxu0 0
  %749 = vmatprep.subr.bf16.mxu0 0
  %750 = vmatpush2.bf16.xpose.msra.mxu0 0
  %751 = vmatprep.subr.bf16.mxu0 0
  %752 = vmatpush2.bf16.xpose.msra.mxu0 0
  %753 = vmatprep.subr.bf16.mxu0 0
  %754 = vmatpush2.bf16.xpose.msra.mxu0 0
  %755 = vmatprep.subr.bf16.mxu0 0
  %756 = vmatpush2.bf16.xpose.msra.mxu0 0
  %757 = vmatprep.subr.bf16.mxu0 0
  %758 = vmatpush2.bf16.xpose.msra.mxu0 0
  %759 = vmatprep.subr.bf16.mxu0 0
  %760 = vmatpush2.bf16.xpose.msra.mxu0 0
  %761 = vmatprep.subr.bf16.mxu0 0
  %762 = vmatpush2.bf16.xpose.msra.mxu0 0
  %763 = vmatprep.mubr.bf16.mxu0 0
  %764 = vmatmul.mubr.bf16.gmra.mxu0 %v726
  %v765 = vpop.f32.mrf.mxu0
  %v766 = vadd.f32 0.0, %v765
  %v767 = vpop.f32.mrf.mxu0
  %v768 = vpop.f32.mrf.mxu0
  %v769 = vpop.f32.mrf.mxu0
  %770 = vdwg.mxu0
  %v771 = vsel %vm198, %v766, -inf
  %772 = vmax.xlane.f32.xlu0 %v771
  %v773 = vpop.xlane.xlu0 %772
  %v774 = vsub.f32 %v766, %v773
  %v775 = vmul.f32 %v774, 1.442695
  %v776 = vpow.pop %v775
  %v777 = vsel %vm198, %v776, 0.0
  %778 = vadd.xlane.f32.xlu0 %v777
  %v779 = vpop.xlane.xlu0 %778
  %v780 = vrcp.pop %v779
  %v781 = vmul.f32 %v776, %v780
  %v782 = vpack.c.bf16 %v781, %v781
  %783 = vrot.lane.b32.xlu0 %v611, 56
  %v784 = vpop.permute.xlu0 %783
  %v786 = vsel %vm213, %v782, 0
  %v789 = vsel %vm217, %v784, 0
  %791 = vmatprep.subr.bf16.mxu0 0
  %792 = vmatpush1.bf16.msra.mxu0 0
  %793 = vmatprep.subr.bf16.mxu0 0
  %794 = vmatpush1.bf16.msra.mxu0 0
  %795 = vmatprep.subr.bf16.mxu0 0
  %796 = vmatpush1.bf16.msra.mxu0 0
  %797 = vmatprep.subr.bf16.mxu0 0
  %798 = vmatpush1.bf16.msra.mxu0 0
  %799 = vmatprep.subr.bf16.mxu0 0
  %800 = vmatpush1.bf16.msra.mxu0 0
  %801 = vmatprep.subr.bf16.mxu0 0
  %802 = vmatpush1.bf16.msra.mxu0 0
  %803 = vmatprep.subr.bf16.mxu0 0
  %804 = vmatpush1.bf16.msra.mxu0 0
  %805 = vmatprep.subr.bf16.mxu0 0
  %806 = vmatpush1.bf16.msra.mxu0 %v789
  %807 = vmatprep.subr.bf16.mxu0 0
  %808 = vmatpush2.bf16.msra.mxu0 0
  %809 = vmatprep.subr.bf16.mxu0 0
  %810 = vmatpush2.bf16.msra.mxu0 0
  %811 = vmatprep.subr.bf16.mxu0 0
  %812 = vmatpush2.bf16.msra.mxu0 0
  %813 = vmatprep.subr.bf16.mxu0 0
  %814 = vmatpush2.bf16.msra.mxu0 0
  %815 = vmatprep.subr.bf16.mxu0 0
  %816 = vmatpush2.bf16.msra.mxu0 0
  %817 = vmatprep.subr.bf16.mxu0 0
  %818 = vmatpush2.bf16.msra.mxu0 0
  %819 = vmatprep.subr.bf16.mxu0 0
  %820 = vmatpush2.bf16.msra.mxu0 0
  %821 = vmatprep.subr.bf16.mxu0 0
  %822 = vmatpush2.bf16.msra.mxu0 0
  %823 = vmatprep.mubr.bf16.mxu0 0
  %824 = vmatmul.mubr.bf16.gmra.mxu0 %v786
  %v825 = vpop.f32.mrf.mxu0
  %v826 = vadd.f32 0.0, %v825
  %v827 = vpop.f32.mrf.mxu0
  %v828 = vpop.f32.mrf.mxu0
  %v829 = vpop.f32.mrf.mxu0
  %830 = vdwg.mxu0
  %832 = vrot.lane.b32.xlu0 %v826, 8
  %v833 = vpop.permute.xlu0 %832
  %835 = vst.msk [vmem:[#allocation3 + $0x4] sm:$0xf] %vm377, %v833
  %836 = vrot.lane.b32.xlu0 %v611, 112
  %v837 = vpop.permute.xlu0 %836
  %838 = vrot.lane.b32.xlu0 %v611, 80
  %v839 = vpop.permute.xlu0 %838
  %v841 = vsel %vm151, %v837, 0
  %v844 = vsel %vm151, %v839, 0
  %846 = vmatprep.subr.bf16.mxu0 0
  %847 = vmatpush1.bf16.xpose.msra.mxu0 0
  %848 = vmatprep.subr.bf16.mxu0 0
  %849 = vmatpush1.bf16.xpose.msra.mxu0 0
  %850 = vmatprep.subr.bf16.mxu0 0
  %851 = vmatpush1.bf16.xpose.msra.mxu0 0
  %852 = vmatprep.subr.bf16.mxu0 0
  %853 = vmatpush1.bf16.xpose.msra.mxu0 0
  %854 = vmatprep.subr.bf16.mxu0 0
  %855 = vmatpush1.bf16.xpose.msra.mxu0 0
  %856 = vmatprep.subr.bf16.mxu0 0
  %857 = vmatpush1.bf16.xpose.msra.mxu0 0
  %858 = vmatprep.subr.bf16.mxu0 0
  %859 = vmatpush1.bf16.xpose.msra.mxu0 0
  %860 = vmatprep.subr.bf16.mxu0 0
  %861 = vmatpush1.bf16.xpose.msra.mxu0 %v844
  %862 = vmatprep.subr.bf16.mxu0 0
  %863 = vmatpush2.bf16.xpose.msra.mxu0 0
  %864 = vmatprep.subr.bf16.mxu0 0
  %865 = vmatpush2.bf16.xpose.msra.mxu0 0
  %866 = vmatprep.subr.bf16.mxu0 0
  %867 = vmatpush2.bf16.xpose.msra.mxu0 0
  %868 = vmatprep.subr.bf16.mxu0 0
  %869 = vmatpush2.bf16.xpose.msra.mxu0 0
  %870 = vmatprep.subr.bf16.mxu0 0
  %871 = vmatpush2.bf16.xpose.msra.mxu0 0
  %872 = vmatprep.subr.bf16.mxu0 0
  %873 = vmatpush2.bf16.xpose.msra.mxu0 0
  %874 = vmatprep.subr.bf16.mxu0 0
  %875 = vmatpush2.bf16.xpose.msra.mxu0 0
  %876 = vmatprep.subr.bf16.mxu0 0
  %877 = vmatpush2.bf16.xpose.msra.mxu0 0
  %878 = vmatprep.mubr.bf16.mxu0 0
  %879 = vmatmul.mubr.bf16.gmra.mxu0 %v841
  %v880 = vpop.f32.mrf.mxu0
  %v881 = vadd.f32 0.0, %v880
  %v882 = vpop.f32.mrf.mxu0
  %v883 = vpop.f32.mrf.mxu0
  %v884 = vpop.f32.mrf.mxu0
  %885 = vdwg.mxu0
  %v886 = vsel %vm198, %v881, -inf
  %887 = vmax.xlane.f32.xlu0 %v886
  %v888 = vpop.xlane.xlu0 %887
  %v889 = vsub.f32 %v881, %v888
  %v890 = vmul.f32 %v889, 1.442695
  %v891 = vpow.pop %v890
  %v892 = vsel %vm198, %v891, 0.0
  %893 = vadd.xlane.f32.xlu0 %v892
  %v894 = vpop.xlane.xlu0 %893
  %v895 = vrcp.pop %v894
  %v896 = vmul.f32 %v891, %v895
  %v897 = vpack.c.bf16 %v896, %v896
  %898 = vrot.lane.b32.xlu0 %v611, 48
  %v899 = vpop.permute.xlu0 %898
  %v901 = vsel %vm213, %v897, 0
  %v904 = vsel %vm217, %v899, 0
  %906 = vmatprep.subr.bf16.mxu0 0
  %907 = vmatpush1.bf16.msra.mxu0 0
  %908 = vmatprep.subr.bf16.mxu0 0
  %909 = vmatpush1.bf16.msra.mxu0 0
  %910 = vmatprep.subr.bf16.mxu0 0
  %911 = vmatpush1.bf16.msra.mxu0 0
  %912 = vmatprep.subr.bf16.mxu0 0
  %913 = vmatpush1.bf16.msra.mxu0 0
  %914 = vmatprep.subr.bf16.mxu0 0
  %915 = vmatpush1.bf16.msra.mxu0 0
  %916 = vmatprep.subr.bf16.mxu0 0
  %917 = vmatpush1.bf16.msra.mxu0 0
  %918 = vmatprep.subr.bf16.mxu0 0
  %919 = vmatpush1.bf16.msra.mxu0 0
  %920 = vmatprep.subr.bf16.mxu0 0
  %921 = vmatpush1.bf16.msra.mxu0 %v904
  %922 = vmatprep.subr.bf16.mxu0 0
  %923 = vmatpush2.bf16.msra.mxu0 0
  %924 = vmatprep.subr.bf16.mxu0 0
  %925 = vmatpush2.bf16.msra.mxu0 0
  %926 = vmatprep.subr.bf16.mxu0 0
  %927 = vmatpush2.bf16.msra.mxu0 0
  %928 = vmatprep.subr.bf16.mxu0 0
  %929 = vmatpush2.bf16.msra.mxu0 0
  %930 = vmatprep.subr.bf16.mxu0 0
  %931 = vmatpush2.bf16.msra.mxu0 0
  %932 = vmatprep.subr.bf16.mxu0 0
  %933 = vmatpush2.bf16.msra.mxu0 0
  %934 = vmatprep.subr.bf16.mxu0 0
  %935 = vmatpush2.bf16.msra.mxu0 0
  %936 = vmatprep.subr.bf16.mxu0 0
  %937 = vmatpush2.bf16.msra.mxu0 0
  %938 = vmatprep.mubr.bf16.mxu0 0
  %939 = vmatmul.mubr.bf16.gmra.mxu0 %v901
  %v940 = vpop.f32.mrf.mxu0
  %v941 = vadd.f32 0.0, %v940
  %v942 = vpop.f32.mrf.mxu0
  %v943 = vpop.f32.mrf.mxu0
  %v944 = vpop.f32.mrf.mxu0
  %945 = vdwg.mxu0
  %947 = vrot.lane.b32.xlu0 %v941, 16
  %v948 = vpop.permute.xlu0 %947
  %950 = vst.msk [vmem:[#allocation3 + $0x4] sm:$0xf] %vm493, %v948
  %951 = vrot.lane.b32.xlu0 %v611, 104
  %v952 = vpop.permute.xlu0 %951
  %953 = vrot.lane.b32.xlu0 %v611, 72
  %v954 = vpop.permute.xlu0 %953
  %v956 = vsel %vm151, %v952, 0
  %v959 = vsel %vm151, %v954, 0
  %961 = vmatprep.subr.bf16.mxu0 0
  %962 = vmatpush1.bf16.xpose.msra.mxu0 0
  %963 = vmatprep.subr.bf16.mxu0 0
  %964 = vmatpush1.bf16.xpose.msra.mxu0 0
  %965 = vmatprep.subr.bf16.mxu0 0
  %966 = vmatpush1.bf16.xpose.msra.mxu0 0
  %967 = vmatprep.subr.bf16.mxu0 0
  %968 = vmatpush1.bf16.xpose.msra.mxu0 0
  %969 = vmatprep.subr.bf16.mxu0 0
  %970 = vmatpush1.bf16.xpose.msra.mxu0 0
  %971 = vmatprep.subr.bf16.mxu0 0
  %972 = vmatpush1.bf16.xpose.msra.mxu0 0
  %973 = vmatprep.subr.bf16.mxu0 0
  %974 = vmatpush1.bf16.xpose.msra.mxu0 0
  %975 = vmatprep.subr.bf16.mxu0 0
  %976 = vmatpush1.bf16.xpose.msra.mxu0 %v959
  %977 = vmatprep.subr.bf16.mxu0 0
  %978 = vmatpush2.bf16.xpose.msra.mxu0 0
  %979 = vmatprep.subr.bf16.mxu0 0
  %980 = vmatpush2.bf16.xpose.msra.mxu0 0
  %981 = vmatprep.subr.bf16.mxu0 0
  %982 = vmatpush2.bf16.xpose.msra.mxu0 0
  %983 = vmatprep.subr.bf16.mxu0 0
  %984 = vmatpush2.bf16.xpose.msra.mxu0 0
  %985 = vmatprep.subr.bf16.mxu0 0
  %986 = vmatpush2.bf16.xpose.msra.mxu0 0
  %987 = vmatprep.subr.bf16.mxu0 0
  %988 = vmatpush2.bf16.xpose.msra.mxu0 0
  %989 = vmatprep.subr.bf16.mxu0 0
  %990 = vmatpush2.bf16.xpose.msra.mxu0 0
  %991 = vmatprep.subr.bf16.mxu0 0
  %992 = vmatpush2.bf16.xpose.msra.mxu0 0
  %993 = vmatprep.mubr.bf16.mxu0 0
  %994 = vmatmul.mubr.bf16.gmra.mxu0 %v956
  %v995 = vpop.f32.mrf.mxu0
  %v996 = vadd.f32 0.0, %v995
  %v997 = vpop.f32.mrf.mxu0
  %v998 = vpop.f32.mrf.mxu0
  %v999 = vpop.f32.mrf.mxu0
  %1000 = vdwg.mxu0
  %v1001 = vsel %vm198, %v996, -inf
  %1002 = vmax.xlane.f32.xlu0 %v1001
  %v1003 = vpop.xlane.xlu0 %1002
  %v1004 = vsub.f32 %v996, %v1003
  %v1005 = vmul.f32 %v1004, 1.442695
  %v1006 = vpow.pop %v1005
  %v1007 = vsel %vm198, %v1006, 0.0
  %1008 = vadd.xlane.f32.xlu0 %v1007
  %v1009 = vpop.xlane.xlu0 %1008
  %v1010 = vrcp.pop %v1009
  %v1011 = vmul.f32 %v1006, %v1010
  %v1012 = vpack.c.bf16 %v1011, %v1011
  %1013 = vrot.lane.b32.xlu0 %v611, 40
  %v1014 = vpop.permute.xlu0 %1013
  %v1016 = vsel %vm213, %v1012, 0
  %v1019 = vsel %vm217, %v1014, 0
  %1021 = vmatprep.subr.bf16.mxu0 0
  %1022 = vmatpush1.bf16.msra.mxu0 0
  %1023 = vmatprep.subr.bf16.mxu0 0
  %1024 = vmatpush1.bf16.msra.mxu0 0
  %1025 = vmatprep.subr.bf16.mxu0 0
  %1026 = vmatpush1.bf16.msra.mxu0 0
  %1027 = vmatprep.subr.bf16.mxu0 0
  %1028 = vmatpush1.bf16.msra.mxu0 0
  %1029 = vmatprep.subr.bf16.mxu0 0
  %1030 = vmatpush1.bf16.msra.mxu0 0
  %1031 = vmatprep.subr.bf16.mxu0 0
  %1032 = vmatpush1.bf16.msra.mxu0 0
  %1033 = vmatprep.subr.bf16.mxu0 0
  %1034 = vmatpush1.bf16.msra.mxu0 0
  %1035 = vmatprep.subr.bf16.mxu0 0
  %1036 = vmatpush1.bf16.msra.mxu0 %v1019
  %1037 = vmatprep.subr.bf16.mxu0 0
  %1038 = vmatpush2.bf16.msra.mxu0 0
  %1039 = vmatprep.subr.bf16.mxu0 0
  %1040 = vmatpush2.bf16.msra.mxu0 0
  %1041 = vmatprep.subr.bf16.mxu0 0
  %1042 = vmatpush2.bf16.msra.mxu0 0
  %1043 = vmatprep.subr.bf16.mxu0 0
  %1044 = vmatpush2.bf16.msra.mxu0 0
  %1045 = vmatprep.subr.bf16.mxu0 0
  %1046 = vmatpush2.bf16.msra.mxu0 0
  %1047 = vmatprep.subr.bf16.mxu0 0
  %1048 = vmatpush2.bf16.msra.mxu0 0
  %1049 = vmatprep.subr.bf16.mxu0 0
  %1050 = vmatpush2.bf16.msra.mxu0 0
  %1051 = vmatprep.subr.bf16.mxu0 0
  %1052 = vmatpush2.bf16.msra.mxu0 0
  %1053 = vmatprep.mubr.bf16.mxu0 0
  %1054 = vmatmul.mubr.bf16.gmra.mxu0 %v1016
  %v1055 = vpop.f32.mrf.mxu0
  %v1056 = vadd.f32 0.0, %v1055
  %v1057 = vpop.f32.mrf.mxu0
  %v1058 = vpop.f32.mrf.mxu0
  %v1059 = vpop.f32.mrf.mxu0
  %1060 = vdwg.mxu0
  %1062 = vrot.lane.b32.xlu0 %v1056, 24
  %v1063 = vpop.permute.xlu0 %1062
  %1065 = vst.msk [vmem:[#allocation3 + $0x4] sm:$0xf] %vm609, %v1063
  %v1066 = vld [vmem:[#allocation3] sm:$0xff]
  %v1067 = vpack.c.bf16 %v1066, %v1066
  %v1068 = vld [vmem:[%s4] sm:$0xf]
  %v1069 = vld [vmem:[%s4 + $0x4] sm:$0xf]
  %v1070 = vld [vmem:[%s4 + $0x8] sm:$0xf]
  %v1071 = vld [vmem:[%s4 + $0xc] sm:$0xf]
  %v1072 = vld [vmem:[%s5] sm:$0x1]
  %v1074 = vlaneseq
  %v1075 = vshrl.u32 %v1074, 7
  %v1076 = vsub.s32 0, %v1075
  %v1077 = vrot.slane %v1072, %v1076
  %v1083 = vunpack.c.l.b16 %v1068
  %v1084 = vunpack.c.l.b16 %v1069
  %v1085 = vunpack.c.l.b16 %v1070
  %v1086 = vunpack.c.l.b16 %v1071
  %v1087 = vpack.c.b16 %v1084, %v1083
  %v1088 = vpack.c.b16 %v1086, %v1085
  %v1092 = vsel %vm58, %v1067, 0
  %1094 = vmatprep.subr.bf16.mxu0 0
  %1095 = vmatpush1.bf16.msra.mxu0 0
  %1096 = vmatprep.subr.bf16.mxu0 0
  %1097 = vmatpush1.bf16.msra.mxu0 0
  %1098 = vmatprep.subr.bf16.mxu0 0
  %1099 = vmatpush1.bf16.msra.mxu0 0
  %1100 = vmatprep.subr.bf16.mxu0 0
  %1101 = vmatpush1.bf16.msra.mxu0 0
  %1102 = vmatprep.subr.bf16.mxu0 0
  %1103 = vmatpush1.bf16.msra.mxu0 0
  %1104 = vmatprep.subr.bf16.mxu0 0
  %1105 = vmatpush1.bf16.msra.mxu0 0
  %1106 = vmatprep.subr.bf16.mxu0 0
  %1107 = vmatpush1.bf16.msra.mxu0 %v1088
  %1108 = vmatprep.subr.bf16.mxu0 0
  %1109 = vmatpush1.bf16.msra.mxu0 %v1087
  %1110 = vmatprep.subr.bf16.mxu0 0
  %1111 = vmatpush2.bf16.msra.mxu0 0
  %1112 = vmatprep.subr.bf16.mxu0 0
  %1113 = vmatpush2.bf16.msra.mxu0 0
  %1114 = vmatprep.subr.bf16.mxu0 0
  %1115 = vmatpush2.bf16.msra.mxu0 0
  %1116 = vmatprep.subr.bf16.mxu0 0
  %1117 = vmatpush2.bf16.msra.mxu0 0
  %1118 = vmatprep.subr.bf16.mxu0 0
  %1119 = vmatpush2.bf16.msra.mxu0 0
  %1120 = vmatprep.subr.bf16.mxu0 0
  %1121 = vmatpush2.bf16.msra.mxu0 0
  %1122 = vmatprep.subr.bf16.mxu0 0
  %1123 = vmatpush2.bf16.msra.mxu0 0
  %1124 = vmatprep.subr.bf16.mxu0 0
  %1125 = vmatpush2.bf16.msra.mxu0 0
  %1126 = vmatprep.mubr.bf16.mxu0 0
  %1127 = vmatmul.mubr.bf16.gmra.mxu0 %v1092
  %v1128 = vpop.f32.mrf.mxu0
  %v1129 = vadd.f32 %v1077, %v1128
  %v1130 = vpop.f32.mrf.mxu0
  %v1131 = vpop.f32.mrf.mxu0
  %v1132 = vpop.f32.mrf.mxu0
  %1133 = vdwg.mxu0
  %v1134 = vadd.f32 %v55, %v1129
  %v1135 = vld [vmem:[%s6] sm:$0x1]
  %v1136 = vld [vmem:[%s7] sm:$0x1]
  %v1137 = vsel %vm58, %v1134, 0.0
  %1138 = vadd.xlane.f32.xlu0 %v1137
  %v1139 = vpop.xlane.xlu0 %1138
  %v1140 = vmul.f32 %v1139, %v62
  %v1141 = vsub.f32 %v1134, %v1140
  %v1142 = vmul.f32 %v1141, %v1141
  %v1143 = vsel %vm58, %v1142, 0.0
  %1144 = vadd.xlane.f32.xlu0 %v1143
  %v1145 = vpop.xlane.xlu0 %1144
  %v1146 = vmul.f32 %v1145, %v62
  %v1147 = vadd.f32 %v1146, 1e-05
  %v1148 = vrsqrt.pop %v1147
  %v1149 = vmul.f32 %v1141, %v1148
  %v1151 = vlaneseq
  %v1152 = vshrl.u32 %v1151, 7
  %v1153 = vsub.s32 0, %v1152
  %v1154 = vrot.slane %v1135, %v1153
  %v1156 = vmul.f32 %v1149, %v1154
  %v1158 = vlaneseq
  %v1159 = vshrl.u32 %v1158, 7
  %v1160 = vsub.s32 0, %v1159
  %v1161 = vrot.slane %v1136, %v1160
  %v1163 = vadd.f32 %v1156, %v1161
  %v1164 = vpack.c.bf16 %v1163, %v1163
  %v1165 = vld [vmem:[%s8] sm:$0xf]
  %v1166 = vld [vmem:[%s8 + $0x4] sm:$0xf]
  %v1167 = vld [vmem:[%s8 + $0x8] sm:$0xf]
  %v1168 = vld [vmem:[%s8 + $0xc] sm:$0xf]
  %v1169 = vld [vmem:[%s9] sm:$0x1]
  %v1171 = vlaneseq
  %v1172 = vshrl.u32 %v1171, 7
  %v1173 = vsub.s32 0, %v1172
  %v1174 = vrot.slane %v1169, %v1173
  %v1180 = vunpack.c.l.b16 %v1165
  %v1181 = vunpack.c.l.b16 %v1166
  %v1182 = vunpack.c.l.b16 %v1167
  %v1183 = vunpack.c.l.b16 %v1168
  %v1184 = vpack.c.b16 %v1181, %v1180
  %v1185 = vpack.c.b16 %v1183, %v1182
  %v1189 = vsel %vm58, %v1164, 0
  %1191 = vmatprep.subr.bf16.mxu0 0
  %1192 = vmatpush1.bf16.msra.mxu0 0
  %1193 = vmatprep.subr.bf16.mxu0 0
  %1194 = vmatpush1.bf16.msra.mxu0 0
  %1195 = vmatprep.subr.bf16.mxu0 0
  %1196 = vmatpush1.bf16.msra.mxu0 0
  %1197 = vmatprep.subr.bf16.mxu0 0
  %1198 = vmatpush1.bf16.msra.mxu0 0
  %1199 = vmatprep.subr.bf16.mxu0 0
  %1200 = vmatpush1.bf16.msra.mxu0 0
  %1201 = vmatprep.subr.bf16.mxu0 0
  %1202 = vmatpush1.bf16.msra.mxu0 0
  %1203 = vmatprep.subr.bf16.mxu0 0
  %1204 = vmatpush1.bf16.msra.mxu0 %v1185
  %1205 = vmatprep.subr.bf16.mxu0 0
  %1206 = vmatpush1.bf16.msra.mxu0 %v1184
  %1207 = vmatprep.subr.bf16.mxu0 0
  %1208 = vmatpush2.bf16.msra.mxu0 0
  %1209 = vmatprep.subr.bf16.mxu0 0
  %1210 = vmatpush2.bf16.msra.mxu0 0
  %1211 = vmatprep.subr.bf16.mxu0 0
  %1212 = vmatpush2.bf16.msra.mxu0 0
  %1213 = vmatprep.subr.bf16.mxu0 0
  %1214 = vmatpush2.bf16.msra.mxu0 0
  %1215 = vmatprep.subr.bf16.mxu0 0
  %1216 = vmatpush2.bf16.msra.mxu0 0
  %1217 = vmatprep.subr.bf16.mxu0 0
  %1218 = vmatpush2.bf16.msra.mxu0 0
  %1219 = vmatprep.subr.bf16.mxu0 0
  %1220 = vmatpush2.bf16.msra.mxu0 0
  %1221 = vmatprep.subr.bf16.mxu0 0
  %1222 = vmatpush2.bf16.msra.mxu0 0
  %1223 = vmatprep.mubr.bf16.mxu0 0
  %1224 = vmatmul.mubr.bf16.gmra.mxu0 %v1189
  %v1225 = vpop.f32.mrf.mxu0
  %v1226 = vadd.f32 %v1174, %v1225
  %v1227 = vpop.f32.mrf.mxu0
  %v1228 = vpop.f32.mrf.mxu0
  %v1229 = vpop.f32.mrf.mxu0
  %1230 = vdwg.mxu0
  %v1231 = vmul.f32 %v1226, %v1226
  %v1232 = vmul.f32 %v1226, %v1231
  %v1233 = vmul.f32 %v1232, 0.044715
  %v1234 = vadd.f32 %v1226, %v1233
  %v1235 = vmul.f32 %v1234, 0.7978846
  %v1236 = vtanh.pop %v1235
  %v1237 = vadd.f32 %v1236, 1.0
  %v1238 = vmul.f32 %v1237, 0.5
  %v1239 = vmul.f32 %v1226, %v1238
  %v1240 = vpack.c.bf16 %v1239, %v1239
  %v1241 = vld [vmem:[%s10] sm:$0xf]
  %v1242 = vld [vmem:[%s10 + $0x4] sm:$0xf]
  %v1243 = vld [vmem:[%s10 + $0x8] sm:$0xf]
  %v1244 = vld [vmem:[%s10 + $0xc] sm:$0xf]
  %v1245 = vld [vmem:[%s10 + $0x10] sm:$0xf]
  %v1246 = vld [vmem:[%s10 + $0x14] sm:$0xf]
  %v1247 = vld [vmem:[%s10 + $0x18] sm:$0xf]
  %v1248 = vld [vmem:[%s10 + $0x1c] sm:$0xf]
  %v1249 = vld [vmem:[%s10 + $0x20] sm:$0xf]
  %v1250 = vld [vmem:[%s10 + $0x24] sm:$0xf]
  %v1251 = vld [vmem:[%s10 + $0x28] sm:$0xf]
  %v1252 = vld [vmem:[%s10 + $0x2c] sm:$0xf]
  %v1253 = vld [vmem:[%s10 + $0x30] sm:$0xf]
  %v1254 = vld [vmem:[%s10 + $0x34] sm:$0xf]
  %v1255 = vld [vmem:[%s10 + $0x38] sm:$0xf]
  %v1256 = vld [vmem:[%s10 + $0x3c] sm:$0xf]
  %v1273 = vunpack.c.l.b16 %v1241
  %v1274 = vunpack.c.l.b16 %v1242
  %v1275 = vunpack.c.l.b16 %v1243
  %v1276 = vunpack.c.l.b16 %v1244
  %v1277 = vunpack.c.l.b16 %v1245
  %v1278 = vunpack.c.l.b16 %v1246
  %v1279 = vunpack.c.l.b16 %v1247
  %v1280 = vunpack.c.l.b16 %v1248
  %v1281 = vunpack.c.l.b16 %v1249
  %v1282 = vunpack.c.l.b16 %v1250
  %v1283 = vunpack.c.l.b16 %v1251
  %v1284 = vunpack.c.l.b16 %v1252
  %v1285 = vunpack.c.l.b16 %v1253
  %v1286 = vunpack.c.l.b16 %v1254
  %v1287 = vunpack.c.l.b16 %v1255
  %v1288 = vunpack.c.l.b16 %v1256
  %v1289 = vpack.c.b16 %v1274, %v1273
  %v1290 = vpack.c.b16 %v1276, %v1275
  %v1291 = vpack.c.b16 %v1278, %v1277
  %v1292 = vpack.c.b16 %v1280, %v1279
  %v1293 = vpack.c.b16 %v1282, %v1281
  %v1294 = vpack.c.b16 %v1284, %v1283
  %v1295 = vpack.c.b16 %v1286, %v1285
  %v1296 = vpack.c.b16 %v1288, %v1287
  %1305 = vmatprep.subr.bf16.mxu0 0
  %1306 = vmatpush1.bf16.msra.mxu0 %v1296
  %1307 = vmatprep.subr.bf16.mxu0 0
  %1308 = vmatpush1.bf16.msra.mxu0 %v1295
  %1309 = vmatprep.subr.bf16.mxu0 0
  %1310 = vmatpush1.bf16.msra.mxu0 %v1294
  %1311 = vmatprep.subr.bf16.mxu0 0
  %1312 = vmatpush1.bf16.msra.mxu0 %v1293
  %1313 = vmatprep.subr.bf16.mxu0 0
  %1314 = vmatpush1.bf16.msra.mxu0 %v1292
  %1315 = vmatprep.subr.bf16.mxu0 0
  %1316 = vmatpush1.bf16.msra.mxu0 %v1291
  %1317 = vmatprep.subr.bf16.mxu0 0
  %1318 = vmatpush1.bf16.msra.mxu0 %v1290
  %1319 = vmatprep.subr.bf16.mxu0 0
  %1320 = vmatpush1.bf16.msra.mxu0 %v1289
  %1321 = vmatprep.subr.bf16.mxu0 0
  %1322 = vmatpush2.bf16.msra.mxu0 0
  %1323 = vmatprep.subr.bf16.mxu0 0
  %1324 = vmatpush2.bf16.msra.mxu0 0
  %1325 = vmatprep.subr.bf16.mxu0 0
  %1326 = vmatpush2.bf16.msra.mxu0 0
  %1327 = vmatprep.subr.bf16.mxu0 0
  %1328 = vmatpush2.bf16.msra.mxu0 0
  %1329 = vmatprep.subr.bf16.mxu0 0
  %1330 = vmatpush2.bf16.msra.mxu0 0
  %1331 = vmatprep.subr.bf16.mxu0 0
  %1332 = vmatpush2.bf16.msra.mxu0 0
  %1333 = vmatprep.subr.bf16.mxu0 0
  %1334 = vmatpush2.bf16.msra.mxu0 0
  %1335 = vmatprep.subr.bf16.mxu0 0
  %1336 = vmatpush2.bf16.msra.mxu0 0
  %1337 = vmatprep.mubr.bf16.mxu0 0
  %1338 = vmatmul.mubr.bf16.gmra.mxu0 %v1240
  %v1339 = vpop.f32.mrf.mxu0
  %v1340 = vadd.f32 0.0, %v1339
  %v1341 = vpop.f32.mrf.mxu0
  %v1342 = vpop.f32.mrf.mxu0
  %v1343 = vpop.f32.mrf.mxu0
  %1344 = vdwg.mxu0
  %v1345 = vadd.f32 %v1134, %v1340
  %v1346 = vld [vmem:[%s11] sm:$0x1]
  %v1348 = vlaneseq
  %v1349 = vshrl.u32 %v1348, 7
  %v1350 = vsub.s32 0, %v1349
  %v1351 = vrot.slane %v1346, %v1350
  %v1353 = vadd.f32 %v1345, %v1351
  %1354 = vst.msk [vmem:[#allocation2] sm:$0xff] %vm58, %v1353
  // Predicated region
  $region62: #{mae_forward.6} parent=0 // pred_check
    %p1355 = pneg %p48
  $region63: #{mae_forward.6} parent=0 // pred_check_branch
    %1357 = sbr.rel (%p1355) target = $region65
  $region64: #{mae_forward.6} parent=0 // pred_region
    %v1358 = vld [vmem:[%s12] sm:$0x1]
    %v1359 = vld [vmem:[%s13] sm:$0x1]
    %v1360 = vsel %vm58, %v1353, 0.0
    %1361 = vadd.xlane.f32.xlu0 %v1360
    %v1362 = vpop.xlane.xlu0 %1361
    %v1363 = vmul.f32 %v1362, %v62
    %v1364 = vsub.f32 %v1353, %v1363
    %v1365 = vmul.f32 %v1364, %v1364
    %v1366 = vsel %vm58, %v1365, 0.0
    %1367 = vadd.xlane.f32.xlu0 %v1366
    %v1368 = vpop.xlane.xlu0 %1367
    %v1369 = vmul.f32 %v1368, %v62
    %v1370 = vadd.f32 %v1369, 1e-05
    %v1371 = vrsqrt.pop %v1370
    %v1372 = vmul.f32 %v1364, %v1371
    %v1374 = vlaneseq
    %v1375 = vshrl.u32 %v1374, 7
    %v1376 = vsub.s32 0, %v1375
    %v1377 = vrot.slane %v1358, %v1376
    %v1379 = vmul.f32 %v1372, %v1377
    %v1381 = vlaneseq
    %v1382 = vshrl.u32 %v1381, 7
    %v1383 = vsub.s32 0, %v1382
    %v1384 = vrot.slane %v1359, %v1383
    %v1386 = vadd.f32 %v1379, %v1384
    %1387 = vst.msk [vmem:[%s14] sm:$0xff] %vm58, %v1386
  $region65: #{mae_forward.6} parent=0 // pred_fallthru
    _
  // Predicated region
  $region66: #{mae_forward.6} parent=0 // pred_check
    _
  $region67: #{mae_forward.6} parent=0 // pred_check_branch
    %1389 = sbr.rel (0) target = $region69
  $region68: #{mae_forward.6} parent=0 // pred_region
    _
  $region69: #{mae_forward.6} parent=0 // pred_fallthru
    _
  // Predicated region
  $region70: #{mae_forward.6} parent=0 // pred_check
    _
  $region71: #{mae_forward.6} parent=0 // pred_check_branch
    %1391 = sbr.rel (0) target = $region73
  $region72: #{mae_forward.6} parent=0 // pred_region
    _
  $region73: #{mae_forward.6} parent=0 // pred_fallthru
    _

// kernel: mae_forward.9
$region0: #{mae_forward.9}
  #allocation0 [shape = 'u32[]', space=smem, size = 0x4, offset = 0x4, fixed_abs, tag = 'smem constant byte address 0x4 - core index']
  #allocation1 [shape = 'u32[144,128]{1,0:T(1,128)}', space=vmem, size = 0x12000, scoped, tag = 'internal scratch']
  #allocation2 [shape = 'f32[1]{0:T(128)}', space=smem, size = 0x200, scoped, tag = 'scratch operand']
  %s0 = inlined_call_operand.vmem [shape: f32[2,12,16], index: 0, kind: input, shape index: {}]
  %s1 = inlined_call_operand.vmem [shape: bf16[16,16], index: 1, kind: input, shape index: {}]
  %s2 = inlined_call_operand.vmem [shape: f32[1,16], index: 2, kind: input, shape index: {}]
  %s3 = inlined_call_operand.vmem [shape: f32[2,12,16], index: 3, kind: input, shape index: {}]
  %s4 = inlined_call_operand.vmem [shape: f32[2,12,16], index: 4, kind: output, shape index: {0}]
  %s5 = inlined_call_operand.hbm [shape: f32[1,1], index: 5, kind: output, shape index: {1}]
  %6 = xla_tuple %s4, %s5
  %s7 = sld [smem:[#allocation0]]
  $region69: #{mae_forward.9} parent=0
    _
  %s9 = ssub.s32 1, %s7
  %s10 = scalar_select 0, %s9, %s7
  $region1: #{mae_forward.9} parent=0
    #allocation3 [shape = 'u8[512]{0}', space=smem, size = 0x200, scoped, tag = 'output window, operand 1, single buffered']
    #allocation4 [shape = 's32[2]{0}', space=sflag, size = 0x8, scoped, tag = 'scoped memory for mae_forward.9']
    %11 = vsyncpa [#allocation4], 0
    loop: start=0, step=1, limit=4
    $region2: #{mae_forward.9} parent=1 // loop_pre_header
      _
    $region3: #{mae_forward.9} parent=1 // loop_header
      %s13 = sphi 0, %s17
      %p14 = scmp.ge.s32.totalorder %s13, 4
      %s23 = sphi 0, %s25
      %s26 = sphi 0, %s23
      %s27 = sphi 0, %s26
      %s43 = sphi 0, %s27
      %s47 = sphi 0, %s47
      %s49 = sphi 0, %s47
      %s50 = sphi 0, %s49
      %s64 = sphi 0, %s50
      %s68 = sphi 0, %s68
      %s70 = sphi 0, %s68
      %s71 = sphi 0, %s70
      %s85 = sphi 0, %s71
      %s91 = sphi 0, %s93
      %s94 = sphi 0, %s91
      %s95 = sphi 0, %s94
      %s111 = sphi 0, %s95
      %s117 = sphi 0, %s119
      %s120 = sphi 0, %s117
      %s121 = sphi 0, %s120
      %s137 = sphi 0, %s121
      %s141 = sphi 0, %s141
      %s143 = sphi 0, %s141
      %s144 = sphi 0, %s143
      %s158 = sphi 0, %s144
    $region4: #{mae_forward.9} parent=1 // loop_header_branch
      %16 = sbr.rel (%p14) target = $region8
    $region5: #{mae_forward.9} parent=1 // loop_body
      %s18 = ssub.s32 %s13, 1
      %s19 = ssub.s32 %s13, 2
      %s20 = sadd.s32 %s13, 1
      %s21 = ssub.s32 %s13, %s20
      %p22 = scmp.eq.s32.totalorder %s21, 0
      %s24 = sadd.s32 %s23, 1
      %s25 = scalar_select %p22, %s23, %s24
      %p28 = pneg %p22
      %p29 = scmp.eq.s32.totalorder %s13, 1
      %p30 = por %p28, %p29
      %p31 = scmp.ne.s32.totalorder %s23, %s26
      %p32 = scmp.eq.s32.totalorder %s13, 0
      %p33 = por %p31, %p32
      %p34 = scmp.ne.s32.totalorder %s23, %s26
      %p35 = scmp.eq.s32.totalorder %s18, 1
      %p36 = por %p34, %p35
      %p37 = scmp.ne.s32.totalorder %s26, %s27
      %p38 = scmp.eq.s32.totalorder %s18, 0
      %p39 = por %p37, %p38
      %p40 = scmp.ne.s32.totalorder %s26, %s27
      %p41 = scmp.eq.s32.totalorder %s19, 1
      %p42 = por %p40, %p41
      %p44 = scmp.ne.s32.totalorder %s27, %s43
      %p45 = scmp.eq.s32.totalorder %s19, 0
      %p46 = por %p44, %p45
      %s48 = sadd.s32 %s47, 1
      %p51 = scmp.eq.s32.totalorder %s13, 1
      %p52 = scmp.ne.s32.totalorder %s47, %s49
      %p53 = scmp.eq.s32.totalorder %s13, 0
      %p54 = por %p52, %p53
      %p55 = scmp.ne.s32.totalorder %s47, %s49
      %p56 = scmp.eq.s32.totalorder %s18, 1
      %p57 = por %p55, %p56
      %p58 = scmp.ne.s32.totalorder %s49, %s50
      %p59 = scmp.eq.s32.totalorder %s18, 0
      %p60 = por %p58, %p59
      %p61 = scmp.ne.s32.totalorder %s49, %s50
      %p62 = scmp.eq.s32.totalorder %s19, 1
      %p63 = por %p61, %p62
      %p65 = scmp.ne.s32.totalorder %s50, %s64
      %p66 = scmp.eq.s32.totalorder %s19, 0
      %p67 = por %p65, %p66
      %s69 = sadd.s32 %s68, 1
      %p72 = scmp.eq.s32.totalorder %s13, 1
      %p73 = scmp.ne.s32.totalorder %s68, %s70
      %p74 = scmp.eq.s32.totalorder %s13, 0
      %p75 = por %p73, %p74
      %p76 = scmp.ne.s32.totalorder %s68, %s70
      %p77 = scmp.eq.s32.totalorder %s18, 1
      %p78 = por %p76, %p77
      %p79 = scmp.ne.s32.totalorder %s70, %s71
      %p80 = scmp.eq.s32.totalorder %s18, 0
      %p81 = por %p79, %p80
      %p82 = scmp.ne.s32.totalorder %s70, %s71
      %p83 = scmp.eq.s32.totalorder %s19, 1
      %p84 = por %p82, %p83
      %p86 = scmp.ne.s32.totalorder %s71, %s85
      %p87 = scmp.eq.s32.totalorder %s19, 0
      %p88 = por %p86, %p87
      %s89 = ssub.s32 %s13, %s20
      %p90 = scmp.eq.s32.totalorder %s89, 0
      %s92 = sadd.s32 %s91, 1
      %s93 = scalar_select %p90, %s91, %s92
      %p96 = pneg %p90
      %p97 = scmp.eq.s32.totalorder %s13, 1
      %p98 = por %p96, %p97
      %p99 = scmp.ne.s32.totalorder %s91, %s94
      %p100 = scmp.eq.s32.totalorder %s13, 0
      %p101 = por %p99, %p100
      %p102 = scmp.ne.s32.totalorder %s91, %s94
      %p103 = scmp.eq.s32.totalorder %s18, 1
      %p104 = por %p102, %p103
      %p105 = scmp.ne.s32.totalorder %s94, %s95
      %p106 = scmp.eq.s32.totalorder %s18, 0
      %p107 = por %p105, %p106
      %p108 = scmp.ne.s32.totalorder %s94, %s95
      %p109 = scmp.eq.s32.totalorder %s19, 1
      %p110 = por %p108, %p109
      %p112 = scmp.ne.s32.totalorder %s95, %s111
      %p113 = scmp.eq.s32.totalorder %s19, 0
      %p114 = por %p112, %p113
      %s115 = ssub.s32 %s13, %s20
      %p116 = scmp.eq.s32.totalorder %s115, 0
      %s118 = sadd.s32 %s117, 1
      %s119 = scalar_select %p116, %s117, %s118
      %p122 = pneg %p116
      %p123 = scmp.eq.s32.totalorder %s13, 1
      %p124 = por %p122, %p123
      %p125 = scmp.ne.s32.totalorder %s117, %s120
      %p126 = scmp.eq.s32.totalorder %s13, 0
      %p127 = por %p125, %p126
      %p128 = scmp.ne.s32.totalorder %s117, %s120
      %p129 = scmp.eq.s32.totalorder %s18, 1
      %p130 = por %p128, %p129
      %p131 = scmp.ne.s32.totalorder %s120, %s121
      %p132 = scmp.eq.s32.totalorder %s18, 0
      %p133 = por %p131, %p132
      %p134 = scmp.ne.s32.totalorder %s120, %s121
      %p135 = scmp.eq.s32.totalorder %s19, 1
      %p136 = por %p134, %p135
      %p138 = scmp.ne.s32.totalorder %s121, %s137
      %p139 = scmp.eq.s32.totalorder %s19, 0
      %p140 = por %p138, %p139
      %s142 = sadd.s32 %s141, 1
      %p145 = scmp.eq.s32.totalorder %s13, 1
      %p146 = scmp.ne.s32.totalorder %s141, %s143
      %p147 = scmp.eq.s32.totalorder %s13, 0
      %p148 = por %p146, %p147
      %p149 = scmp.ne.s32.totalorder %s141, %s143
      %p150 = scmp.eq.s32.totalorder %s18, 1
      %p151 = por %p149, %p150
      %p152 = scmp.ne.s32.totalorder %s143, %s144
      %p153 = scmp.eq.s32.totalorder %s18, 0
      %p154 = por %p152, %p153
      %p155 = scmp.ne.s32.totalorder %s143, %s144
      %p156 = scmp.eq.s32.totalorder %s19, 1
      %p157 = por %p155, %p156
      %p159 = scmp.ne.s32.totalorder %s144, %s158
      %p160 = scmp.eq.s32.totalorder %s19, 0
      %p161 = por %p159, %p160
      %p162 = scmp.le.s32.totalorder 1, %s13
      %p163 = scmp.lt.s32.totalorder %s13, 3
      %p164 = pnand %p162, %p163
      %p165 = pneg %p164
      // Predicated region
      $region9: #{mae_forward.9} parent=5 // pred_check
        _
      $region10: #{mae_forward.9} parent=5 // pred_check_branch
        %167 = sbr.rel (%p164) target = $region12
      $region11: #{mae_forward.9} parent=5 // pred_region
        %s168 = ssub.s32 %s13, 1
        // Predicated region
        $region13: #{mae_forward.9} parent=11 // pred_check
          %p169 = pneg %p60
        $region14: #{mae_forward.9} parent=11 // pred_check_branch
          %171 = sbr.rel (%p169) target = $region16
        $region15: #{mae_forward.9} parent=11 // pred_region
          _
        $region16: #{mae_forward.9} parent=11 // pred_fallthru
          _
        // Predicated region
        $region17: #{mae_forward.9} parent=11 // pred_check
          %p172 = pneg %p81
        $region18: #{mae_forward.9} parent=11 // pred_check_branch
          %174 = sbr.rel (%p172) target = $region20
        $region19: #{mae_forward.9} parent=11 // pred_region
          _
        $region20: #{mae_forward.9} parent=11 // pred_fallthru
          _
      $region12: #{mae_forward.9} parent=5 // pred_fallthru
        _
      %p175 = scmp.lt.s32.totalorder %s13, 2
      // Predicated region
      $region21: #{mae_forward.9} parent=5 // pred_check
        %p176 = pneg %p175
      $region22: #{mae_forward.9} parent=5 // pred_check_branch
        %178 = sbr.rel (%p176) target = $region24
      $region23: #{mae_forward.9} parent=5 // pred_region
        // Predicated region
        $region25: #{mae_forward.9} parent=23 // pred_check
          %p179 = pneg %p33
        $region26: #{mae_forward.9} parent=23 // pred_check_branch
          %181 = sbr.rel (%p179) target = $region28
        $region27: #{mae_forward.9} parent=23 // pred_region
          %p182 = scmp.lt.s32.totalorder %s13, 1
          %s183 = scalar_select %p182, %s13, 1
          %s184 = smul.addr %s183, 2
          %s185 = smul.addr %s184, 8
          %s186 = scalar_lea.vmem %s0, %s185
        $region28: #{mae_forward.9} parent=23 // pred_fallthru
          _
        // Predicated region
        $region29: #{mae_forward.9} parent=23 // pred_check
          %p187 = pneg %p101
        $region30: #{mae_forward.9} parent=23 // pred_check_branch
          %189 = sbr.rel (%p187) target = $region32
        $region31: #{mae_forward.9} parent=23 // pred_region
          %p190 = scmp.lt.s32.totalorder %s13, 1
          %s191 = scalar_select %p190, %s13, 1
          %s192 = smul.addr %s191, 2
          %s193 = smul.addr %s192, 8
          %s194 = scalar_lea.vmem %s3, %s193
        $region32: #{mae_forward.9} parent=23 // pred_fallthru
          _
      $region24: #{mae_forward.9} parent=5 // pred_fallthru
        _
      %p195 = scmp.le.s32.totalorder 1, %s13
      %p196 = scmp.lt.s32.totalorder %s13, 3
      %p197 = pnand %p195, %p196
      %p198 = pneg %p197
      // Predicated region
      $region33: #{mae_forward.9} parent=5 // pred_check
        _
      $region34: #{mae_forward.9} parent=5 // pred_check_branch
        %200 = sbr.rel (%p197) target = $region36
      $region35: #{mae_forward.9} parent=5 // pred_region
        %s201 = ssub.s32 %s13, 1
        %p202 = scmp.lt.s32.totalorder %s18, 1
        %s203 = scalar_select %p202, %s18, 1
        %s204 = smul.addr %s203, 2
        %s205 = smul.addr %s204, 8
        %s206 = scalar_lea.vmem %s0, %s205
        %p207 = pneg %p39
        %p208 = pneg %p36
        %p209 = pneg %p60
        %p210 = pneg %p57
        %p211 = pneg %p81
        %p212 = pneg %p78
        %p213 = scmp.lt.s32.totalorder %s18, 1
        %s214 = scalar_select %p213, %s18, 1
        %s215 = smul.addr %s214, 2
        %s216 = smul.addr %s215, 8
        %s217 = scalar_lea.vmem %s3, %s216
        %p218 = pneg %p107
        %p219 = pneg %p104
        %p220 = pneg %p133
        %p221 = pneg %p130
        %p222 = scmp.lt.s32.totalorder %s18, 1
        %s223 = scalar_select %p222, %s18, 1
        %s224 = smul.addr %s223, 2
        %s225 = smul.addr %s224, 8
        %s226 = scalar_lea.vmem %s4, %s225
        %p227 = pneg %p154
        %p228 = pneg %p151
        %p229 = scmp.lt.s32.totalorder %s18, 1
        %s230 = scalar_select %p229, %s18, 1
        %s231 = smul.addr %s230, 2
        %s232 = smul.addr %s231, 8
        %s233 = scalar_lea.vmem %s0, %s232
        %p234 = scmp.lt.s32.totalorder %s18, 1
        %s235 = scalar_select %p234, %s18, 1
        %s236 = smul.addr %s235, 2
        %s237 = smul.addr %s236, 8
        %s238 = scalar_lea.vmem %s3, %s237
        %p239 = scmp.lt.s32.totalorder %s18, 1
        %s240 = scalar_select %p239, %s18, 1
        %s241 = smul.addr %s240, 2
        %s242 = smul.addr %s241, 8
        %s243 = scalar_lea.vmem %s4, %s242
        %v245 = vld [vmem:[%s233] sm:$0xff]
        %v246 = vld [vmem:[%s233 + $0x8] sm:$0xf]
        %v247 = vpack.c.bf16 %v246, %v245
        %v248 = vld [vmem:[%s1] sm:$0xf]
        %v249 = vld [vmem:[%s1 + $0x4] sm:$0xf]
        %v250 = vld [vmem:[%s2] sm:$0x1]
        %v252 = vlaneseq
        %v253 = vshrl.u32 %v252, 7
        %v254 = vsub.s32 0, %v253
        %v255 = vrot.slane %v250, %v254
        %v259 = vunpack.c.l.b16 %v248
        %v260 = vunpack.c.l.b16 %v249
        %v261 = vpack.c.b16 %v260, %v259
        %vm263 = vcmask 130048
        %v265 = vsel %vm263, %v247, 0
        %267 = vmatprep.subr.bf16.mxu0 0
        %268 = vmatpush1.bf16.msra.mxu0 0
        %269 = vmatprep.subr.bf16.mxu0 0
        %270 = vmatpush1.bf16.msra.mxu0 0
        %271 = vmatprep.subr.bf16.mxu0 0
        %272 = vmatpush1.bf16.msra.mxu0 0
        %273 = vmatprep.subr.bf16.mxu0 0
        %274 = vmatpush1.bf16.msra.mxu0 0
        %275 = vmatprep.subr.bf16.mxu0 0
        %276 = vmatpush1.bf16.msra.mxu0 0
        %277 = vmatprep.subr.bf16.mxu0 0
        %278 = vmatpush1.bf16.msra.mxu0 0
        %279 = vmatprep.subr.bf16.mxu0 0
        %280 = vmatpush1.bf16.msra.mxu0 0
        %281 = vmatprep.subr.bf16.mxu0 0
        %282 = vmatpush1.bf16.msra.mxu0 %v261
        %283 = vmatprep.subr.bf16.mxu0 0
        %284 = vmatpush2.bf16.msra.mxu0 0
        %285 = vmatprep.subr.bf16.mxu0 0
        %286 = vmatpush2.bf16.msra.mxu0 0
        %287 = vmatprep.subr.bf16.mxu0 0
        %288 = vmatpush2.bf16.msra.mxu0 0
        %289 = vmatprep.subr.bf16.mxu0 0
        %290 = vmatpush2.bf16.msra.mxu0 0
        %291 = vmatprep.subr.bf16.mxu0 0
        %292 = vmatpush2.bf16.msra.mxu0 0
        %293 = vmatprep.subr.bf16.mxu0 0
        %294 = vmatpush2.bf16.msra.mxu0 0
        %295 = vmatprep.subr.bf16.mxu0 0
        %296 = vmatpush2.bf16.msra.mxu0 0
        %297 = vmatprep.subr.bf16.mxu0 0
        %298 = vmatpush2.bf16.msra.mxu0 0
        %299 = vmatprep.mubr.bf16.mxu0 0
        %300 = vmatmul.mubr.bf16.gmra.mxu0 %v265
        %v301 = vpop.f32.mrf.mxu0
        %v302 = vadd.f32 %v255, %v301
        %v303 = vpop.f32.mrf.mxu0
        %v304 = vpop.f32.mrf.mxu0
        %v305 = vadd.f32 %v255, %v304
        %v306 = vpop.f32.mrf.mxu0
        %307 = vdwg.mxu0
        %308 = vst.msk [vmem:[%s243] sm:$0xff] %vm263, %v302
        %vm309 = vcmask 125952
        %310 = vst.msk [vmem:[%s243 + $0x8] sm:$0xf] %vm309, %v305
        %v311 = vld [vmem:[%s238] sm:$0xff]
        %v312 = vld [vmem:[%s238 + $0x8] sm:$0xf]
        %v313 = vsub.f32 %v302, %v311
        %v314 = vsub.f32 %v305, %v312
        %v315 = vmul.f32 %v313, %v313
        %v316 = vmul.f32 %v314, %v314
        %v317 = vsel %vm263, %v315, 0.0
        %v318 = vsel %vm309, %v316, 0.0
        %v319 = vadd.f32 %v317, %v318
        %320 = vadd.xlane.f32.xlu0 %v319
        %v321 = vpop.xlane.xlu0 %320
        %v322 = vrot.slane %v321, 4
        %v323 = vadd.f32 %v321, %v322
        %v324 = vrot.slane %v323, 2
        %v325 = vadd.f32 %v323, %v324
        %v326 = vrot.slane %v325, 1
        %v327 = vadd.f32 %v325, %v326
        %s328 = vtos %v327
        %p329 = scmp.eq.s32.totalorder %s18, 0
        // Predicated region
        $region37: #{mae_forward.9} parent=35 // pred_check
          %p330 = pneg %p329
        $region38: #{mae_forward.9} parent=35 // pred_check_branch
          %332 = sbr.rel (%p330) target = $region40
        $region39: #{mae_forward.9} parent=35 // pred_region
          %s333 = scalar_lea.smem [#allocation2], 0
          %334 = sst [smem:[%s333]] %s328
        $region40: #{mae_forward.9} parent=35 // pred_fallthru
          _
        %p335 = scmp.gt.s32.totalorder %s18, 0
        // Predicated region
        $region41: #{mae_forward.9} parent=35 // pred_check
          %p336 = pneg %p335
        $region42: #{mae_forward.9} parent=35 // pred_check_branch
          %338 = sbr.rel (%p336) target = $region44
        $region43: #{mae_forward.9} parent=35 // pred_region
          %s339 = sld [smem:[#allocation2]]
          %s340 = sadd.f32 %s339, %s328
          %s341 = scalar_lea.smem [#allocation2], 0
          %342 = sst [smem:[%s341]] %s340
        $region44: #{mae_forward.9} parent=35 // pred_fallthru
          _
        %p343 = scmp.eq.s32.totalorder %s18, 1
        // Predicated region
        $region45: #{mae_forward.9} parent=35 // pred_check
          %p344 = pneg %p343
        $region46: #{mae_forward.9} parent=35 // pred_check_branch
          %346 = sbr.rel (%p344) target = $region48
        $region47: #{mae_forward.9} parent=35 // pred_region
          %s347 = sld [smem:[#allocation2]]
          %s348 = smul.f32 %s347, 0.0026041667
          %s349 = scalar_lea.smem [#allocation3], 0
          %350 = sst [smem:[%s349]] %s348
        $region48: #{mae_forward.9} parent=35 // pred_fallthru
          _
        %p351 = scmp.lt.s32.totalorder %s18, 1
        %s352 = scalar_select %p351, %s18, 1
        %s353 = smul.addr %s352, 2
        %s354 = smul.addr %s353, 8
        %s355 = scalar_lea.vmem %s4, %s354
        // Predicated region
        $region49: #{mae_forward.9} parent=35 // pred_check
          %p356 = pneg %p130
        $region50: #{mae_forward.9} parent=35 // pred_check_branch
          %358 = sbr.rel (%p356) target = $region52
        $region51: #{mae_forward.9} parent=35 // pred_region
          _
        $region52: #{mae_forward.9} parent=35 // pred_fallthru
          _
        // Predicated region
        $region53: #{mae_forward.9} parent=35 // pred_check
          %p359 = pneg %p151
        $region54: #{mae_forward.9} parent=35 // pred_check_branch
          %361 = sbr.rel (%p359) target = $region56
        $region55: #{mae_forward.9} parent=35 // pred_region
          %s363 = ssub.s32 16, 16
          %364 = vsyncadd [#allocation4], %s363
          %367 = dma.smem_to_hbm [#allocation3], 16, %s5, [#allocation4]
        $region56: #{mae_forward.9} parent=35 // pred_fallthru
          _
        // Predicated region
        $region57: #{mae_forward.9} parent=35 // pred_check
          %p368 = pneg %p151
        $region58: #{mae_forward.9} parent=35 // pred_check_branch
          %370 = sbr.rel (%p368) target = $region60
        $region59: #{mae_forward.9} parent=35 // pred_region
          %371 = dma.done [#allocation4], 16
        $region60: #{mae_forward.9} parent=35 // pred_fallthru
          _
        %372 = sfence
      $region36: #{mae_forward.9} parent=5 // pred_fallthru
        _
      %p373 = scmp.le.s32.totalorder 2, %s13
      // Predicated region
      $region61: #{mae_forward.9} parent=5 // pred_check
        %p374 = pneg %p373
      $region62: #{mae_forward.9} parent=5 // pred_check_branch
        %376 = sbr.rel (%p374) target = $region64
      $region63: #{mae_forward.9} parent=5 // pred_region
        %s377 = ssub.s32 %s13, 2
        // Predicated region
        $region65: #{mae_forward.9} parent=63 // pred_check
          %p378 = pneg %p136
        $region66: #{mae_forward.9} parent=63 // pred_check_branch
          %380 = sbr.rel (%p378) target = $region68
        $region67: #{mae_forward.9} parent=63 // pred_region
          %p381 = scmp.lt.s32.totalorder %s19, 1
          %s382 = scalar_select %p381, %s19, 1
          %s383 = smul.addr %s382, 2
          %s384 = smul.addr %s383, 8
          %s385 = scalar_lea.vmem %s4, %s384
        $region68: #{mae_forward.9} parent=63 // pred_fallthru
          _
      $region64: #{mae_forward.9} parent=5 // pred_fallthru
        _
    $region6: #{mae_forward.9} parent=1 // loop_footer
      %s17 = sadd.s32 1, %s13
    $region7: #{mae_forward.9} parent=1 // loop_footer_branch
      %12 = sbr.rel target = $region3
    $region8: #{mae_forward.9} parent=1 // loop_exit
      _
    %386 = vsyncpa [#allocation4], 1
    %s387 = scalar_lea.sflag [#allocation4], 1
    %388 = vsyncpa %s387, 1

// kernel: mae_forward.8
$region0: #{mae_forward.8}
  #allocation0 [shape = 'u32[]', space=smem, size = 0x4, offset = 0x4, fixed_abs, tag = 'smem constant byte address 0x4 - core index']
  #allocation1 [shape = 'u32[144,128]{1,0:T(1,128)}', space=vmem, size = 0x12000, scoped, tag = 'internal scratch']
  #allocation2 [shape = 'f32[32,16]{1,0:T(8,128)}', space=vmem, size = 0x4000, scoped, tag = 'scratch operand']
  #allocation3 [shape = 'f32[32,16]{1,0:T(8,128)}', space=vmem, size = 0x4000, scoped, tag = 'scratch operand']
  %s0 = inlined_call_operand.vmem [shape: f32[32,16], index: 0, kind: input, shape index: {}]
  %s1 = inlined_call_operand.vmem [shape: f32[1,1,16], index: 1, kind: input, shape index: {}]
  %s2 = inlined_call_operand.vmem [shape: f32[1,1,16], index: 2, kind: input, shape index: {}]
  %s3 = inlined_call_operand.vmem [shape: bf16[1,16,48], index: 3, kind: input, shape index: {}]
  %s4 = inlined_call_operand.vmem [shape: bf16[1,16,16], index: 4, kind: input, shape index: {}]
  %s5 = inlined_call_operand.vmem [shape: f32[1,1,16], index: 5, kind: input, shape index: {}]
  %s6 = inlined_call_operand.vmem [shape: f32[1,1,16], index: 6, kind: input, shape index: {}]
  %s7 = inlined_call_operand.vmem [shape: f32[1,1,16], index: 7, kind: input, shape index: {}]
  %s8 = inlined_call_operand.vmem [shape: bf16[1,16,64], index: 8, kind: input, shape index: {}]
  %s9 = inlined_call_operand.vmem [shape: f32[1,1,64], index: 9, kind: input, shape index: {}]
  %s10 = inlined_call_operand.vmem [shape: bf16[1,64,16], index: 10, kind: input, shape index: {}]
  %s11 = inlined_call_operand.vmem [shape: f32[1,1,16], index: 11, kind: input, shape index: {}]
  %s12 = inlined_call_operand.vmem [shape: f32[1,16], index: 12, kind: input, shape index: {}]
  %s13 = inlined_call_operand.vmem [shape: f32[1,16], index: 13, kind: input, shape index: {}]
  %s14 = inlined_call_operand.vmem [shape: f32[32,16], index: 14, kind: output, shape index: {}]
  %s15 = sld [smem:[#allocation0]]
  $region74: #{mae_forward.8} parent=0
    _
  %s17 = ssub.s32 1, %s15
  %s18 = scalar_select 0, %s17, %s15
  // Predicated region
  $region2: #{mae_forward.8} parent=0 // pred_check
    _
  $region3: #{mae_forward.8} parent=0 // pred_check_branch
    %20 = sbr.rel (0) target = $region5
  $region4: #{mae_forward.8} parent=0 // pred_region
    _
  $region5: #{mae_forward.8} parent=0 // pred_fallthru
    _
  // Predicated region
  $region6: #{mae_forward.8} parent=0 // pred_check
    _
  $region7: #{mae_forward.8} parent=0 // pred_check_branch
    %22 = sbr.rel (0) target = $region9
  $region8: #{mae_forward.8} parent=0 // pred_region
    _
  $region9: #{mae_forward.8} parent=0 // pred_fallthru
    _
  // Predicated region
  $region10: #{mae_forward.8} parent=0 // pred_check
    _
  $region11: #{mae_forward.8} parent=0 // pred_check_branch
    %24 = sbr.rel (0) target = $region13
  $region12: #{mae_forward.8} parent=0 // pred_region
    _
  $region13: #{mae_forward.8} parent=0 // pred_fallthru
    _
  // Predicated region
  $region14: #{mae_forward.8} parent=0 // pred_check
    _
  $region15: #{mae_forward.8} parent=0 // pred_check_branch
    %26 = sbr.rel (0) target = $region17
  $region16: #{mae_forward.8} parent=0 // pred_region
    _
  $region17: #{mae_forward.8} parent=0 // pred_fallthru
    _
  // Predicated region
  $region18: #{mae_forward.8} parent=0 // pred_check
    _
  $region19: #{mae_forward.8} parent=0 // pred_check_branch
    %28 = sbr.rel (0) target = $region21
  $region20: #{mae_forward.8} parent=0 // pred_region
    _
  $region21: #{mae_forward.8} parent=0 // pred_fallthru
    _
  // Predicated region
  $region22: #{mae_forward.8} parent=0 // pred_check
    _
  $region23: #{mae_forward.8} parent=0 // pred_check_branch
    %30 = sbr.rel (0) target = $region25
  $region24: #{mae_forward.8} parent=0 // pred_region
    _
  $region25: #{mae_forward.8} parent=0 // pred_fallthru
    _
  // Predicated region
  $region26: #{mae_forward.8} parent=0 // pred_check
    _
  $region27: #{mae_forward.8} parent=0 // pred_check_branch
    %32 = sbr.rel (0) target = $region29
  $region28: #{mae_forward.8} parent=0 // pred_region
    _
  $region29: #{mae_forward.8} parent=0 // pred_fallthru
    _
  // Predicated region
  $region30: #{mae_forward.8} parent=0 // pred_check
    _
  $region31: #{mae_forward.8} parent=0 // pred_check_branch
    %34 = sbr.rel (0) target = $region33
  $region32: #{mae_forward.8} parent=0 // pred_region
    _
  $region33: #{mae_forward.8} parent=0 // pred_fallthru
    _
  // Predicated region
  $region34: #{mae_forward.8} parent=0 // pred_check
    _
  $region35: #{mae_forward.8} parent=0 // pred_check_branch
    %36 = sbr.rel (0) target = $region37
  $region36: #{mae_forward.8} parent=0 // pred_region
    _
  $region37: #{mae_forward.8} parent=0 // pred_fallthru
    _
  // Predicated region
  $region38: #{mae_forward.8} parent=0 // pred_check
    _
  $region39: #{mae_forward.8} parent=0 // pred_check_branch
    %38 = sbr.rel (0) target = $region41
  $region40: #{mae_forward.8} parent=0 // pred_region
    _
  $region41: #{mae_forward.8} parent=0 // pred_fallthru
    _
  // Predicated region
  $region42: #{mae_forward.8} parent=0 // pred_check
    _
  $region43: #{mae_forward.8} parent=0 // pred_check_branch
    %40 = sbr.rel (0) target = $region45
  $region44: #{mae_forward.8} parent=0 // pred_region
    _
  $region45: #{mae_forward.8} parent=0 // pred_fallthru
    _
  // Predicated region
  $region46: #{mae_forward.8} parent=0 // pred_check
    _
  $region47: #{mae_forward.8} parent=0 // pred_check_branch
    %42 = sbr.rel (0) target = $region49
  $region48: #{mae_forward.8} parent=0 // pred_region
    _
  $region49: #{mae_forward.8} parent=0 // pred_fallthru
    _
  // Predicated region
  $region50: #{mae_forward.8} parent=0 // pred_check
    _
  $region51: #{mae_forward.8} parent=0 // pred_check_branch
    %44 = sbr.rel (0) target = $region53
  $region52: #{mae_forward.8} parent=0 // pred_region
    _
  $region53: #{mae_forward.8} parent=0 // pred_fallthru
    _
  // Predicated region
  $region54: #{mae_forward.8} parent=0 // pred_check
    _
  $region55: #{mae_forward.8} parent=0 // pred_check_branch
    %46 = sbr.rel (0) target = $region57
  $region56: #{mae_forward.8} parent=0 // pred_region
    _
  $region57: #{mae_forward.8} parent=0 // pred_fallthru
    _
  %p48 = scmp.eq.s32.totalorder 0, 0
  // Predicated region
  $region58: #{mae_forward.8} parent=0 // pred_check
    %p49 = pneg %p48
  $region59: #{mae_forward.8} parent=0 // pred_check_branch
    %51 = sbr.rel (%p49) target = $region61
  $region60: #{mae_forward.8} parent=0 // pred_region
    %v52 = vld [vmem:[%s0] sm:$0xff]
    %v53 = vld [vmem:[%s0 + $0x8] sm:$0xff]
    %v54 = vld [vmem:[%s0 + $0x10] sm:$0xff]
    %v55 = vld [vmem:[%s0 + $0x18] sm:$0xff]
    %vm56 = vcmask 130048
    %57 = vst.msk [vmem:[#allocation2] sm:$0xff] %vm56, %v52
    %58 = vst.msk [vmem:[#allocation2 + $0x8] sm:$0xff] %vm56, %v53
    %59 = vst.msk [vmem:[#allocation2 + $0x10] sm:$0xff] %vm56, %v54
    %60 = vst.msk [vmem:[#allocation2 + $0x18] sm:$0xff] %vm56, %v55
  $region61: #{mae_forward.8} parent=0 // pred_fallthru
    _
  %v61 = vld [vmem:[#allocation2] sm:$0xff]
  %v62 = vld [vmem:[#allocation2 + $0x8] sm:$0xff]
  %v63 = vld [vmem:[#allocation2 + $0x10] sm:$0xff]
  %v64 = vld [vmem:[#allocation2 + $0x18] sm:$0xff]
  %v65 = vld [vmem:[%s1] sm:$0x1]
  %v66 = vld [vmem:[%s2] sm:$0x1]
  %vm67 = vcmask 130048
  %v68 = vsel %vm67, %v61, 0.0
  %69 = vadd.xlane.f32.xlu0 %v68
  %v70 = vpop.xlane.xlu0 %69
  %v71 = vsel %vm67, %v62, 0.0
  %72 = vadd.xlane.f32.xlu0 %v71
  %v73 = vpop.xlane.xlu0 %72
  %v74 = vsel %vm67, %v63, 0.0
  %75 = vadd.xlane.f32.xlu0 %v74
  %v76 = vpop.xlane.xlu0 %75
  %v77 = vsel %vm67, %v64, 0.0
  %78 = vadd.xlane.f32.xlu0 %v77
  %v79 = vpop.xlane.xlu0 %78
  %v80 = vrcp.pop 16.0
  %v81 = vmul.f32 %v70, %v80
  %v82 = vmul.f32 %v73, %v80
  %v83 = vmul.f32 %v76, %v80
  %v84 = vmul.f32 %v79, %v80
  %v85 = vsub.f32 %v61, %v81
  %v86 = vsub.f32 %v62, %v82
  %v87 = vsub.f32 %v63, %v83
  %v88 = vsub.f32 %v64, %v84
  %v89 = vmul.f32 %v85, %v85
  %v90 = vmul.f32 %v86, %v86
  %v91 = vmul.f32 %v87, %v87
  %v92 = vmul.f32 %v88, %v88
  %v93 = vsel %vm67, %v89, 0.0
  %94 = vadd.xlane.f32.xlu0 %v93
  %v95 = vpop.xlane.xlu0 %94
  %v96 = vsel %vm67, %v90, 0.0
  %97 = vadd.xlane.f32.xlu0 %v96
  %v98 = vpop.xlane.xlu0 %97
  %v99 = vsel %vm67, %v91, 0.0
  %100 = vadd.xlane.f32.xlu0 %v99
  %v101 = vpop.xlane.xlu0 %100
  %v102 = vsel %vm67, %v92, 0.0
  %103 = vadd.xlane.f32.xlu0 %v102
  %v104 = vpop.xlane.xlu0 %103
  %v105 = vmul.f32 %v95, %v80
  %v106 = vmul.f32 %v98, %v80
  %v107 = vmul.f32 %v101, %v80
  %v108 = vmul.f32 %v104, %v80
  %v109 = vadd.f32 %v105, 1e-05
  %v110 = vadd.f32 %v106, 1e-05
  %v111 = vadd.f32 %v107, 1e-05
  %v112 = vadd.f32 %v108, 1e-05
  %v113 = vrsqrt.pop %v109
  %v114 = vrsqrt.pop %v110
  %v115 = vrsqrt.pop %v111
  %v116 = vrsqrt.pop %v112
  %v117 = vmul.f32 %v85, %v113
  %v118 = vmul.f32 %v86, %v114
  %v119 = vmul.f32 %v87, %v115
  %v120 = vmul.f32 %v88, %v116
  %v122 = vlaneseq
  %v123 = vshrl.u32 %v122, 7
  %v124 = vsub.s32 0, %v123
  %v125 = vrot.slane %v65, %v124
  %v127 = vmul.f32 %v117, %v125
  %v128 = vmul.f32 %v118, %v125
  %v129 = vmul.f32 %v119, %v125
  %v130 = vmul.f32 %v120, %v125
  %v132 = vlaneseq
  %v133 = vshrl.u32 %v132, 7
  %v134 = vsub.s32 0, %v133
  %v135 = vrot.slane %v66, %v134
  %v137 = vadd.f32 %v127, %v135
  %v138 = vadd.f32 %v128, %v135
  %v139 = vadd.f32 %v129, %v135
  %v140 = vadd.f32 %v130, %v135
  %v141 = vpack.c.bf16 %v138, %v137
  %v142 = vpack.c.bf16 %v140, %v139
  %v143 = vld [vmem:[%s3] sm:$0xf]
  %v144 = vld [vmem:[%s3 + $0x4] sm:$0xf]
  %v147 = vunpack.c.l.b16 %v143
  %v148 = vunpack.c.l.b16 %v144
  %v149 = vpack.c.b16 %v148, %v147
  %v152 = vsel %vm67, %v141, 0
  %v155 = vsel %vm67, %v142, 0
  %157 = vmatprep.subr.bf16.mxu0 0
  %158 = vmatpush1.bf16.msra.mxu0 0
  %159 = vmatprep.subr.bf16.mxu0 0
  %160 = vmatpush1.bf16.msra.mxu0 0
  %161 = vmatprep.subr.bf16.mxu0 0
  %162 = vmatpush1.bf16.msra.mxu0 0
  %163 = vmatprep.subr.bf16.mxu0 0
  %164 = vmatpush1.bf16.msra.mxu0 0
  %165 = vmatprep.subr.bf16.mxu0 0
  %166 = vmatpush1.bf16.msra.mxu0 0
  %167 = vmatprep.subr.bf16.mxu0 0
  %168 = vmatpush1.bf16.msra.mxu0 0
  %169 = vmatprep.subr.bf16.mxu0 0
  %170 = vmatpush1.bf16.msra.mxu0 0
  %171 = vmatprep.subr.bf16.mxu0 0
  %172 = vmatpush1.bf16.msra.mxu0 %v149
  %173 = vmatprep.subr.bf16.mxu0 0
  %174 = vmatpush2.bf16.msra.mxu0 0
  %175 = vmatprep.subr.bf16.mxu0 0
  %176 = vmatpush2.bf16.msra.mxu0 0
  %177 = vmatprep.subr.bf16.mxu0 0
  %178 = vmatpush2.bf16.msra.mxu0 0
  %179 = vmatprep.subr.bf16.mxu0 0
  %180 = vmatpush2.bf16.msra.mxu0 0
  %181 = vmatprep.subr.bf16.mxu0 0
  %182 = vmatpush2.bf16.msra.mxu0 0
  %183 = vmatprep.subr.bf16.mxu0 0
  %184 = vmatpush2.bf16.msra.mxu0 0
  %185 = vmatprep.subr.bf16.mxu0 0
  %186 = vmatpush2.bf16.msra.mxu0 0
  %187 = vmatprep.subr.bf16.mxu0 0
  %188 = vmatpush2.bf16.msra.mxu0 0
  %189 = vmatprep.mubr.bf16.mxu0 0
  %190 = vmatmul.mubr.bf16.gmra.mxu0 %v152
  %v191 = vpop.f32.mrf.mxu0
  %v192 = vadd.f32 0.0, %v191
  %v193 = vpop.f32.mrf.mxu0
  %v194 = vpop.f32.mrf.mxu0
  %v195 = vadd.f32 0.0, %v194
  %v196 = vpop.f32.mrf.mxu0
  %197 = vmatprep.mubr.bf16.mxu0 0
  %198 = vmatmul.mubr.bf16.gmra.mxu0 %v155
  %v199 = vpop.f32.mrf.mxu0
  %v200 = vadd.f32 0.0, %v199
  %v201 = vpop.f32.mrf.mxu0
  %v202 = vpop.f32.mrf.mxu0
  %v203 = vadd.f32 0.0, %v202
  %v204 = vpop.f32.mrf.mxu0
  %205 = vdwg.mxu0
  %v206 = vpack.c.bf16 %v195, %v192
  %208 = vrot.lane.b32.xlu0 %v206, 112
  %v209 = vpop.permute.xlu0 %208
  %vm210 = vcmask 64512
  %v212 = vsel %vm210, %v206, 0
  %v215 = vsel %vm210, %v209, 0
  %217 = vmatprep.subr.bf16.mxu0 0
  %218 = vmatpush1.bf16.xpose.msra.mxu0 0
  %219 = vmatprep.subr.bf16.mxu0 0
  %220 = vmatpush1.bf16.xpose.msra.mxu0 0
  %221 = vmatprep.subr.bf16.mxu0 0
  %222 = vmatpush1.bf16.xpose.msra.mxu0 0
  %223 = vmatprep.subr.bf16.mxu0 0
  %224 = vmatpush1.bf16.xpose.msra.mxu0 0
  %225 = vmatprep.subr.bf16.mxu0 0
  %226 = vmatpush1.bf16.xpose.msra.mxu0 0
  %227 = vmatprep.subr.bf16.mxu0 0
  %228 = vmatpush1.bf16.xpose.msra.mxu0 0
  %229 = vmatprep.subr.bf16.mxu0 0
  %230 = vmatpush1.bf16.xpose.msra.mxu0 0
  %231 = vmatprep.subr.bf16.mxu0 0
  %232 = vmatpush1.bf16.xpose.msra.mxu0 %v215
  %233 = vmatprep.subr.bf16.mxu0 0
  %234 = vmatpush2.bf16.xpose.msra.mxu0 0
  %235 = vmatprep.subr.bf16.mxu0 0
  %236 = vmatpush2.bf16.xpose.msra.mxu0 0
  %237 = vmatprep.subr.bf16.mxu0 0
  %238 = vmatpush2.bf16.xpose.msra.mxu0 0
  %239 = vmatprep.subr.bf16.mxu0 0
  %240 = vmatpush2.bf16.xpose.msra.mxu0 0
  %241 = vmatprep.subr.bf16.mxu0 0
  %242 = vmatpush2.bf16.xpose.msra.mxu0 0
  %243 = vmatprep.subr.bf16.mxu0 0
  %244 = vmatpush2.bf16.xpose.msra.mxu0 0
  %245 = vmatprep.subr.bf16.mxu0 0
  %246 = vmatpush2.bf16.xpose.msra.mxu0 0
  %247 = vmatprep.subr.bf16.mxu0 0
  %248 = vmatpush2.bf16.xpose.msra.mxu0 0
  %249 = vmatprep.mubr.bf16.mxu0 0
  %250 = vmatmul.mubr.bf16.gmra.mxu0 %v212
  %v251 = vpop.f32.mrf.mxu0
  %v252 = vadd.f32 0.0, %v251
  %v253 = vpop.f32.mrf.mxu0
  %v254 = vpop.f32.mrf.mxu0
  %v255 = vadd.f32 0.0, %v254
  %v256 = vpop.f32.mrf.mxu0
  %257 = vdwg.mxu0
  %v258 = vsel %vm67, %v252, -inf
  %259 = vmax.xlane.f32.xlu0 %v258
  %v260 = vpop.xlane.xlu0 %259
  %v261 = vsel %vm67, %v255, -inf
  %262 = vmax.xlane.f32.xlu0 %v261
  %v263 = vpop.xlane.xlu0 %262
  %v264 = vsub.f32 %v252, %v260
  %v265 = vsub.f32 %v255, %v263
  %v266 = vmul.f32 %v264, 1.442695
  %v267 = vpow.pop %v266
  %v268 = vmul.f32 %v265, 1.442695
  %v269 = vpow.pop %v268
  %v270 = vsel %vm67, %v267, 0.0
  %271 = vadd.xlane.f32.xlu0 %v270
  %v272 = vpop.xlane.xlu0 %271
  %v273 = vsel %vm67, %v269, 0.0
  %274 = vadd.xlane.f32.xlu0 %v273
  %v275 = vpop.xlane.xlu0 %274
  %v276 = vrcp.pop %v272
  %v277 = vrcp.pop %v275
  %v278 = vmul.f32 %v267, %v276
  %v279 = vmul.f32 %v269, %v277
  %v280 = vpack.c.bf16 %v279, %v278
  %281 = vrot.lane.b32.xlu0 %v206, 96
  %v282 = vpop.permute.xlu0 %281
  %v285 = vsel %vm67, %v280, 0
  %287 = vmatprep.subr.bf16.mxu0 0
  %288 = vmatpush1.bf16.msra.mxu0 0
  %289 = vmatprep.subr.bf16.mxu0 0
  %290 = vmatpush1.bf16.msra.mxu0 0
  %291 = vmatprep.subr.bf16.mxu0 0
  %292 = vmatpush1.bf16.msra.mxu0 0
  %293 = vmatprep.subr.bf16.mxu0 0
  %294 = vmatpush1.bf16.msra.mxu0 0
  %295 = vmatprep.subr.bf16.mxu0 0
  %296 = vmatpush1.bf16.msra.mxu0 0
  %297 = vmatprep.subr.bf16.mxu0 0
  %298 = vmatpush1.bf16.msra.mxu0 0
  %299 = vmatprep.subr.bf16.mxu0 0
  %300 = vmatpush1.bf16.msra.mxu0 0
  %301 = vmatprep.subr.bf16.mxu0 0
  %302 = vmatpush1.bf16.msra.mxu0 %v282
  %303 = vmatprep.subr.bf16.mxu0 0
  %304 = vmatpush2.bf16.msra.mxu0 0
  %305 = vmatprep.subr.bf16.mxu0 0
  %306 = vmatpush2.bf16.msra.mxu0 0
  %307 = vmatprep.subr.bf16.mxu0 0
  %308 = vmatpush2.bf16.msra.mxu0 0
  %309 = vmatprep.subr.bf16.mxu0 0
  %310 = vmatpush2.bf16.msra.mxu0 0
  %311 = vmatprep.subr.bf16.mxu0 0
  %312 = vmatpush2.bf16.msra.mxu0 0
  %313 = vmatprep.subr.bf16.mxu0 0
  %314 = vmatpush2.bf16.msra.mxu0 0
  %315 = vmatprep.subr.bf16.mxu0 0
  %316 = vmatpush2.bf16.msra.mxu0 0
  %317 = vmatprep.subr.bf16.mxu0 0
  %318 = vmatpush2.bf16.msra.mxu0 0
  %319 = vmatprep.mubr.bf16.mxu0 0
  %320 = vmatmul.mubr.bf16.gmra.mxu0 %v285
  %v321 = vpop.f32.mrf.mxu0
  %v322 = vadd.f32 0.0, %v321
  %v323 = vpop.f32.mrf.mxu0
  %v324 = vpop.f32.mrf.mxu0
  %v325 = vadd.f32 0.0, %v324
  %v326 = vpop.f32.mrf.mxu0
  %327 = vdwg.mxu0
  %328 = vst.msk [vmem:[#allocation3] sm:$0xff] %vm210, %v322
  %329 = vst.msk [vmem:[#allocation3 + $0x8] sm:$0xff] %vm210, %v325
  %330 = vrot.lane.b32.xlu0 %v206, 120
  %v331 = vpop.permute.xlu0 %330
  %332 = vrot.lane.b32.xlu0 %v206, 104
  %v333 = vpop.permute.xlu0 %332
  %v335 = vsel %vm210, %v331, 0
  %v338 = vsel %vm210, %v333, 0
  %340 = vmatprep.subr.bf16.mxu0 0
  %341 = vmatpush1.bf16.xpose.msra.mxu0 0
  %342 = vmatprep.subr.bf16.mxu0 0
  %343 = vmatpush1.bf16.xpose.msra.mxu0 0
  %344 = vmatprep.subr.bf16.mxu0 0
  %345 = vmatpush1.bf16.xpose.msra.mxu0 0
  %346 = vmatprep.subr.bf16.mxu0 0
  %347 = vmatpush1.bf16.xpose.msra.mxu0 0
  %348 = vmatprep.subr.bf16.mxu0 0
  %349 = vmatpush1.bf16.xpose.msra.mxu0 0
  %350 = vmatprep.subr.bf16.mxu0 0
  %351 = vmatpush1.bf16.xpose.msra.mxu0 0
  %352 = vmatprep.subr.bf16.mxu0 0
  %353 = vmatpush1.bf16.xpose.msra.mxu0 0
  %354 = vmatprep.subr.bf16.mxu0 0
  %355 = vmatpush1.bf16.xpose.msra.mxu0 %v338
  %356 = vmatprep.subr.bf16.mxu0 0
  %357 = vmatpush2.bf16.xpose.msra.mxu0 0
  %358 = vmatprep.subr.bf16.mxu0 0
  %359 = vmatpush2.bf16.xpose.msra.mxu0 0
  %360 = vmatprep.subr.bf16.mxu0 0
  %361 = vmatpush2.bf16.xpose.msra.mxu0 0
  %362 = vmatprep.subr.bf16.mxu0 0
  %363 = vmatpush2.bf16.xpose.msra.mxu0 0
  %364 = vmatprep.subr.bf16.mxu0 0
  %365 = vmatpush2.bf16.xpose.msra.mxu0 0
  %366 = vmatprep.subr.bf16.mxu0 0
  %367 = vmatpush2.bf16.xpose.msra.mxu0 0
  %368 = vmatprep.subr.bf16.mxu0 0
  %369 = vmatpush2.bf16.xpose.msra.mxu0 0
  %370 = vmatprep.subr.bf16.mxu0 0
  %371 = vmatpush2.bf16.xpose.msra.mxu0 0
  %372 = vmatprep.mubr.bf16.mxu0 0
  %373 = vmatmul.mubr.bf16.gmra.mxu0 %v335
  %v374 = vpop.f32.mrf.mxu0
  %v375 = vadd.f32 0.0, %v374
  %v376 = vpop.f32.mrf.mxu0
  %v377 = vpop.f32.mrf.mxu0
  %v378 = vadd.f32 0.0, %v377
  %v379 = vpop.f32.mrf.mxu0
  %380 = vdwg.mxu0
  %v381 = vsel %vm67, %v375, -inf
  %382 = vmax.xlane.f32.xlu0 %v381
  %v383 = vpop.xlane.xlu0 %382
  %v384 = vsel %vm67, %v378, -inf
  %385 = vmax.xlane.f32.xlu0 %v384
  %v386 = vpop.xlane.xlu0 %385
  %v387 = vsub.f32 %v375, %v383
  %v388 = vsub.f32 %v378, %v386
  %v389 = vmul.f32 %v387, 1.442695
  %v390 = vpow.pop %v389
  %v391 = vmul.f32 %v388, 1.442695
  %v392 = vpow.pop %v391
  %v393 = vsel %vm67, %v390, 0.0
  %394 = vadd.xlane.f32.xlu0 %v393
  %v395 = vpop.xlane.xlu0 %394
  %v396 = vsel %vm67, %v392, 0.0
  %397 = vadd.xlane.f32.xlu0 %v396
  %v398 = vpop.xlane.xlu0 %397
  %v399 = vrcp.pop %v395
  %v400 = vrcp.pop %v398
  %v401 = vmul.f32 %v390, %v399
  %v402 = vmul.f32 %v392, %v400
  %v403 = vpack.c.bf16 %v402, %v401
  %404 = vrot.lane.b32.xlu0 %v206, 88
  %v405 = vpop.permute.xlu0 %404
  %v408 = vsel %vm67, %v403, 0
  %410 = vmatprep.subr.bf16.mxu0 0
  %411 = vmatpush1.bf16.msra.mxu0 0
  %412 = vmatprep.subr.bf16.mxu0 0
  %413 = vmatpush1.bf16.msra.mxu0 0
  %414 = vmatprep.subr.bf16.mxu0 0
  %415 = vmatpush1.bf16.msra.mxu0 0
  %416 = vmatprep.subr.bf16.mxu0 0
  %417 = vmatpush1.bf16.msra.mxu0 0
  %418 = vmatprep.subr.bf16.mxu0 0
  %419 = vmatpush1.bf16.msra.mxu0 0
  %420 = vmatprep.subr.bf16.mxu0 0
  %421 = vmatpush1.bf16.msra.mxu0 0
  %422 = vmatprep.subr.bf16.mxu0 0
  %423 = vmatpush1.bf16.msra.mxu0 0
  %424 = vmatprep.subr.bf16.mxu0 0
  %425 = vmatpush1.bf16.msra.mxu0 %v405
  %426 = vmatprep.subr.bf16.mxu0 0
  %427 = vmatpush2.bf16.msra.mxu0 0
  %428 = vmatprep.subr.bf16.mxu0 0
  %429 = vmatpush2.bf16.msra.mxu0 0
  %430 = vmatprep.subr.bf16.mxu0 0
  %431 = vmatpush2.bf16.msra.mxu0 0
  %432 = vmatprep.subr.bf16.mxu0 0
  %433 = vmatpush2.bf16.msra.mxu0 0
  %434 = vmatprep.subr.bf16.mxu0 0
  %435 = vmatpush2.bf16.msra.mxu0 0
  %436 = vmatprep.subr.bf16.mxu0 0
  %437 = vmatpush2.bf16.msra.mxu0 0
  %438 = vmatprep.subr.bf16.mxu0 0
  %439 = vmatpush2.bf16.msra.mxu0 0
  %440 = vmatprep.subr.bf16.mxu0 0
  %441 = vmatpush2.bf16.msra.mxu0 0
  %442 = vmatprep.mubr.bf16.mxu0 0
  %443 = vmatmul.mubr.bf16.gmra.mxu0 %v408
  %v444 = vpop.f32.mrf.mxu0
  %v445 = vadd.f32 0.0, %v444
  %v446 = vpop.f32.mrf.mxu0
  %v447 = vpop.f32.mrf.mxu0
  %v448 = vadd.f32 0.0, %v447
  %v449 = vpop.f32.mrf.mxu0
  %450 = vdwg.mxu0
  %453 = vrot.lane.b32.xlu0 %v445, 8
  %v454 = vpop.permute.xlu0 %453
  %455 = vrot.lane.b32.xlu0 %v448, 8
  %v456 = vpop.permute.xlu0 %455
  %vm459 = vcmask 130112
  %460 = vst.msk [vmem:[#allocation3] sm:$0xff] %vm459, %v454
  %461 = vst.msk [vmem:[#allocation3 + $0x8] sm:$0xff] %vm459, %v456
  %v462 = vpack.c.bf16 %v203, %v200
  %464 = vrot.lane.b32.xlu0 %v462, 112
  %v465 = vpop.permute.xlu0 %464
  %v467 = vsel %vm210, %v462, 0
  %v470 = vsel %vm210, %v465, 0
  %472 = vmatprep.subr.bf16.mxu0 0
  %473 = vmatpush1.bf16.xpose.msra.mxu0 0
  %474 = vmatprep.subr.bf16.mxu0 0
  %475 = vmatpush1.bf16.xpose.msra.mxu0 0
  %476 = vmatprep.subr.bf16.mxu0 0
  %477 = vmatpush1.bf16.xpose.msra.mxu0 0
  %478 = vmatprep.subr.bf16.mxu0 0
  %479 = vmatpush1.bf16.xpose.msra.mxu0 0
  %480 = vmatprep.subr.bf16.mxu0 0
  %481 = vmatpush1.bf16.xpose.msra.mxu0 0
  %482 = vmatprep.subr.bf16.mxu0 0
  %483 = vmatpush1.bf16.xpose.msra.mxu0 0
  %484 = vmatprep.subr.bf16.mxu0 0
  %485 = vmatpush1.bf16.xpose.msra.mxu0 0
  %486 = vmatprep.subr.bf16.mxu0 0
  %487 = vmatpush1.bf16.xpose.msra.mxu0 %v470
  %488 = vmatprep.subr.bf16.mxu0 0
  %489 = vmatpush2.bf16.xpose.msra.mxu0 0
  %490 = vmatprep.subr.bf16.mxu0 0
  %491 = vmatpush2.bf16.xpose.msra.mxu0 0
  %492 = vmatprep.subr.bf16.mxu0 0
  %493 = vmatpush2.bf16.xpose.msra.mxu0 0
  %494 = vmatprep.subr.bf16.mxu0 0
  %495 = vmatpush2.bf16.xpose.msra.mxu0 0
  %496 = vmatprep.subr.bf16.mxu0 0
  %497 = vmatpush2.bf16.xpose.msra.mxu0 0
  %498 = vmatprep.subr.bf16.mxu0 0
  %499 = vmatpush2.bf16.xpose.msra.mxu0 0
  %500 = vmatprep.subr.bf16.mxu0 0
  %501 = vmatpush2.bf16.xpose.msra.mxu0 0
  %502 = vmatprep.subr.bf16.mxu0 0
  %503 = vmatpush2.bf16.xpose.msra.mxu0 0
  %504 = vmatprep.mubr.bf16.mxu0 0
  %505 = vmatmul.mubr.bf16.gmra.mxu0 %v467
  %v506 = vpop.f32.mrf.mxu0
  %v507 = vadd.f32 0.0, %v506
  %v508 = vpop.f32.mrf.mxu0
  %v509 = vpop.f32.mrf.mxu0
  %v510 = vadd.f32 0.0, %v509
  %v511 = vpop.f32.mrf.mxu0
  %512 = vdwg.mxu0
  %v513 = vsel %vm67, %v507, -inf
  %514 = vmax.xlane.f32.xlu0 %v513
  %v515 = vpop.xlane.xlu0 %514
  %v516 = vsel %vm67, %v510, -inf
  %517 = vmax.xlane.f32.xlu0 %v516
  %v518 = vpop.xlane.xlu0 %517
  %v519 = vsub.f32 %v507, %v515
  %v520 = vsub.f32 %v510, %v518
  %v521 = vmul.f32 %v519, 1.442695
  %v522 = vpow.pop %v521
  %v523 = vmul.f32 %v520, 1.442695
  %v524 = vpow.pop %v523
  %v525 = vsel %vm67, %v522, 0.0
  %526 = vadd.xlane.f32.xlu0 %v525
  %v527 = vpop.xlane.xlu0 %526
  %v528 = vsel %vm67, %v524, 0.0
  %529 = vadd.xlane.f32.xlu0 %v528
  %v530 = vpop.xlane.xlu0 %529
  %v531 = vrcp.pop %v527
  %v532 = vrcp.pop %v530
  %v533 = vmul.f32 %v522, %v531
  %v534 = vmul.f32 %v524, %v532
  %v535 = vpack.c.bf16 %v534, %v533
  %536 = vrot.lane.b32.xlu0 %v462, 96
  %v537 = vpop.permute.xlu0 %536
  %v540 = vsel %vm67, %v535, 0
  %542 = vmatprep.subr.bf16.mxu0 0
  %543 = vmatpush1.bf16.msra.mxu0 0
  %544 = vmatprep.subr.bf16.mxu0 0
  %545 = vmatpush1.bf16.msra.mxu0 0
  %546 = vmatprep.subr.bf16.mxu0 0
  %547 = vmatpush1.bf16.msra.mxu0 0
  %548 = vmatprep.subr.bf16.mxu0 0
  %549 = vmatpush1.bf16.msra.mxu0 0
  %550 = vmatprep.subr.bf16.mxu0 0
  %551 = vmatpush1.bf16.msra.mxu0 0
  %552 = vmatprep.subr.bf16.mxu0 0
  %553 = vmatpush1.bf16.msra.mxu0 0
  %554 = vmatprep.subr.bf16.mxu0 0
  %555 = vmatpush1.bf16.msra.mxu0 0
  %556 = vmatprep.subr.bf16.mxu0 0
  %557 = vmatpush1.bf16.msra.mxu0 %v537
  %558 = vmatprep.subr.bf16.mxu0 0
  %559 = vmatpush2.bf16.msra.mxu0 0
  %560 = vmatprep.subr.bf16.mxu0 0
  %561 = vmatpush2.bf16.msra.mxu0 0
  %562 = vmatprep.subr.bf16.mxu0 0
  %563 = vmatpush2.bf16.msra.mxu0 0
  %564 = vmatprep.subr.bf16.mxu0 0
  %565 = vmatpush2.bf16.msra.mxu0 0
  %566 = vmatprep.subr.bf16.mxu0 0
  %567 = vmatpush2.bf16.msra.mxu0 0
  %568 = vmatprep.subr.bf16.mxu0 0
  %569 = vmatpush2.bf16.msra.mxu0 0
  %570 = vmatprep.subr.bf16.mxu0 0
  %571 = vmatpush2.bf16.msra.mxu0 0
  %572 = vmatprep.subr.bf16.mxu0 0
  %573 = vmatpush2.bf16.msra.mxu0 0
  %574 = vmatprep.mubr.bf16.mxu0 0
  %575 = vmatmul.mubr.bf16.gmra.mxu0 %v540
  %v576 = vpop.f32.mrf.mxu0
  %v577 = vadd.f32 0.0, %v576
  %v578 = vpop.f32.mrf.mxu0
  %v579 = vpop.f32.mrf.mxu0
  %v580 = vadd.f32 0.0, %v579
  %v581 = vpop.f32.mrf.mxu0
  %582 = vdwg.mxu0
  %583 = vst.msk [vmem:[#allocation3 + $0x10] sm:$0xff] %vm210, %v577
  %584 = vst.msk [vmem:[#allocation3 + $0x18] sm:$0xff] %vm210, %v580
  %585 = vrot.lane.b32.xlu0 %v462, 120
  %v586 = vpop.permute.xlu0 %585
  %587 = vrot.lane.b32.xlu0 %v462, 104
  %v588 = vpop.permute.xlu0 %587
  %v590 = vsel %vm210, %v586, 0
  %v593 = vsel %vm210, %v588, 0
  %595 = vmatprep.subr.bf16.mxu0 0
  %596 = vmatpush1.bf16.xpose.msra.mxu0 0
  %597 = vmatprep.subr.bf16.mxu0 0
  %598 = vmatpush1.bf16.xpose.msra.mxu0 0
  %599 = vmatprep.subr.bf16.mxu0 0
  %600 = vmatpush1.bf16.xpose.msra.mxu0 0
  %601 = vmatprep.subr.bf16.mxu0 0
  %602 = vmatpush1.bf16.xpose.msra.mxu0 0
  %603 = vmatprep.subr.bf16.mxu0 0
  %604 = vmatpush1.bf16.xpose.msra.mxu0 0
  %605 = vmatprep.subr.bf16.mxu0 0
  %606 = vmatpush1.bf16.xpose.msra.mxu0 0
  %607 = vmatprep.subr.bf16.mxu0 0
  %608 = vmatpush1.bf16.xpose.msra.mxu0 0
  %609 = vmatprep.subr.bf16.mxu0 0
  %610 = vmatpush1.bf16.xpose.msra.mxu0 %v593
  %611 = vmatprep.subr.bf16.mxu0 0
  %612 = vmatpush2.bf16.xpose.msra.mxu0 0
  %613 = vmatprep.subr.bf16.mxu0 0
  %614 = vmatpush2.bf16.xpose.msra.mxu0 0
  %615 = vmatprep.subr.bf16.mxu0 0
  %616 = vmatpush2.bf16.xpose.msra.mxu0 0
  %617 = vmatprep.subr.bf16.mxu0 0
  %618 = vmatpush2.bf16.xpose.msra.mxu0 0
  %619 = vmatprep.subr.bf16.mxu0 0
  %620 = vmatpush2.bf16.xpose.msra.mxu0 0
  %621 = vmatprep.subr.bf16.mxu0 0
  %622 = vmatpush2.bf16.xpose.msra.mxu0 0
  %623 = vmatprep.subr.bf16.mxu0 0
  %624 = vmatpush2.bf16.xpose.msra.mxu0 0
  %625 = vmatprep.subr.bf16.mxu0 0
  %626 = vmatpush2.bf16.xpose.msra.mxu0 0
  %627 = vmatprep.mubr.bf16.mxu0 0
  %628 = vmatmul.mubr.bf16.gmra.mxu0 %v590
  %v629 = vpop.f32.mrf.mxu0
  %v630 = vadd.f32 0.0, %v629
  %v631 = vpop.f32.mrf.mxu0
  %v632 = vpop.f32.mrf.mxu0
  %v633 = vadd.f32 0.0, %v632
  %v634 = vpop.f32.mrf.mxu0
  %635 = vdwg.mxu0
  %v636 = vsel %vm67, %v630, -inf
  %637 = vmax.xlane.f32.xlu0 %v636
  %v638 = vpop.xlane.xlu0 %637
  %v639 = vsel %vm67, %v633, -inf
  %640 = vmax.xlane.f32.xlu0 %v639
  %v641 = vpop.xlane.xlu0 %640
  %v642 = vsub.f32 %v630, %v638
  %v643 = vsub.f32 %v633, %v641
  %v644 = vmul.f32 %v642, 1.442695
  %v645 = vpow.pop %v644
  %v646 = vmul.f32 %v643, 1.442695
  %v647 = vpow.pop %v646
  %v648 = vsel %vm67, %v645, 0.0
  %649 = vadd.xlane.f32.xlu0 %v648
  %v650 = vpop.xlane.xlu0 %649
  %v651 = vsel %vm67, %v647, 0.0
  %652 = vadd.xlane.f32.xlu0 %v651
  %v653 = vpop.xlane.xlu0 %652
  %v654 = vrcp.pop %v650
  %v655 = vrcp.pop %v653
  %v656 = vmul.f32 %v645, %v654
  %v657 = vmul.f32 %v647, %v655
  %v658 = vpack.c.bf16 %v657, %v656
  %659 = vrot.lane.b32.xlu0 %v462, 88
  %v660 = vpop.permute.xlu0 %659
  %v663 = vsel %vm67, %v658, 0
  %665 = vmatprep.subr.bf16.mxu0 0
  %666 = vmatpush1.bf16.msra.mxu0 0
  %667 = vmatprep.subr.bf16.mxu0 0
  %668 = vmatpush1.bf16.msra.mxu0 0
  %669 = vmatprep.subr.bf16.mxu0 0
  %670 = vmatpush1.bf16.msra.mxu0 0
  %671 = vmatprep.subr.bf16.mxu0 0
  %672 = vmatpush1.bf16.msra.mxu0 0
  %673 = vmatprep.subr.bf16.mxu0 0
  %674 = vmatpush1.bf16.msra.mxu0 0
  %675 = vmatprep.subr.bf16.mxu0 0
  %676 = vmatpush1.bf16.msra.mxu0 0
  %677 = vmatprep.subr.bf16.mxu0 0
  %678 = vmatpush1.bf16.msra.mxu0 0
  %679 = vmatprep.subr.bf16.mxu0 0
  %680 = vmatpush1.bf16.msra.mxu0 %v660
  %681 = vmatprep.subr.bf16.mxu0 0
  %682 = vmatpush2.bf16.msra.mxu0 0
  %683 = vmatprep.subr.bf16.mxu0 0
  %684 = vmatpush2.bf16.msra.mxu0 0
  %685 = vmatprep.subr.bf16.mxu0 0
  %686 = vmatpush2.bf16.msra.mxu0 0
  %687 = vmatprep.subr.bf16.mxu0 0
  %688 = vmatpush2.bf16.msra.mxu0 0
  %689 = vmatprep.subr.bf16.mxu0 0
  %690 = vmatpush2.bf16.msra.mxu0 0
  %691 = vmatprep.subr.bf16.mxu0 0
  %692 = vmatpush2.bf16.msra.mxu0 0
  %693 = vmatprep.subr.bf16.mxu0 0
  %694 = vmatpush2.bf16.msra.mxu0 0
  %695 = vmatprep.subr.bf16.mxu0 0
  %696 = vmatpush2.bf16.msra.mxu0 0
  %697 = vmatprep.mubr.bf16.mxu0 0
  %698 = vmatmul.mubr.bf16.gmra.mxu0 %v663
  %v699 = vpop.f32.mrf.mxu0
  %v700 = vadd.f32 0.0, %v699
  %v701 = vpop.f32.mrf.mxu0
  %v702 = vpop.f32.mrf.mxu0
  %v703 = vadd.f32 0.0, %v702
  %v704 = vpop.f32.mrf.mxu0
  %705 = vdwg.mxu0
  %708 = vrot.lane.b32.xlu0 %v700, 8
  %v709 = vpop.permute.xlu0 %708
  %710 = vrot.lane.b32.xlu0 %v703, 8
  %v711 = vpop.permute.xlu0 %710
  %714 = vst.msk [vmem:[#allocation3 + $0x10] sm:$0xff] %vm459, %v709
  %715 = vst.msk [vmem:[#allocation3 + $0x18] sm:$0xff] %vm459, %v711
  %v716 = vld [vmem:[#allocation3] sm:$0xff]
  %v717 = vld [vmem:[#allocation3 + $0x8] sm:$0xff]
  %v718 = vld [vmem:[#allocation3 + $0x10] sm:$0xff]
  %v719 = vld [vmem:[#allocation3 + $0x18] sm:$0xff]
  %v720 = vpack.c.bf16 %v717, %v716
  %v721 = vpack.c.bf16 %v719, %v718
  %v722 = vld [vmem:[%s4] sm:$0xf]
  %v723 = vld [vmem:[%s4 + $0x4] sm:$0xf]
  %v724 = vld [vmem:[%s5] sm:$0x1]
  %v726 = vlaneseq
  %v727 = vshrl.u32 %v726, 7
  %v728 = vsub.s32 0, %v727
  %v729 = vrot.slane %v724, %v728
  %v733 = vunpack.c.l.b16 %v722
  %v734 = vunpack.c.l.b16 %v723
  %v735 = vpack.c.b16 %v734, %v733
  %v738 = vsel %vm67, %v720, 0
  %v741 = vsel %vm67, %v721, 0
  %743 = vmatprep.subr.bf16.mxu0 0
  %744 = vmatpush1.bf16.msra.mxu0 0
  %745 = vmatprep.subr.bf16.mxu0 0
  %746 = vmatpush1.bf16.msra.mxu0 0
  %747 = vmatprep.subr.bf16.mxu0 0
  %748 = vmatpush1.bf16.msra.mxu0 0
  %749 = vmatprep.subr.bf16.mxu0 0
  %750 = vmatpush1.bf16.msra.mxu0 0
  %751 = vmatprep.subr.bf16.mxu0 0
  %752 = vmatpush1.bf16.msra.mxu0 0
  %753 = vmatprep.subr.bf16.mxu0 0
  %754 = vmatpush1.bf16.msra.mxu0 0
  %755 = vmatprep.subr.bf16.mxu0 0
  %756 = vmatpush1.bf16.msra.mxu0 0
  %757 = vmatprep.subr.bf16.mxu0 0
  %758 = vmatpush1.bf16.msra.mxu0 %v735
  %759 = vmatprep.subr.bf16.mxu0 0
  %760 = vmatpush2.bf16.msra.mxu0 0
  %761 = vmatprep.subr.bf16.mxu0 0
  %762 = vmatpush2.bf16.msra.mxu0 0
  %763 = vmatprep.subr.bf16.mxu0 0
  %764 = vmatpush2.bf16.msra.mxu0 0
  %765 = vmatprep.subr.bf16.mxu0 0
  %766 = vmatpush2.bf16.msra.mxu0 0
  %767 = vmatprep.subr.bf16.mxu0 0
  %768 = vmatpush2.bf16.msra.mxu0 0
  %769 = vmatprep.subr.bf16.mxu0 0
  %770 = vmatpush2.bf16.msra.mxu0 0
  %771 = vmatprep.subr.bf16.mxu0 0
  %772 = vmatpush2.bf16.msra.mxu0 0
  %773 = vmatprep.subr.bf16.mxu0 0
  %774 = vmatpush2.bf16.msra.mxu0 0
  %775 = vmatprep.mubr.bf16.mxu0 0
  %776 = vmatmul.mubr.bf16.gmra.mxu0 %v738
  %v777 = vpop.f32.mrf.mxu0
  %v778 = vadd.f32 %v729, %v777
  %v779 = vpop.f32.mrf.mxu0
  %v780 = vpop.f32.mrf.mxu0
  %v781 = vadd.f32 %v729, %v780
  %v782 = vpop.f32.mrf.mxu0
  %783 = vmatprep.mubr.bf16.mxu0 0
  %784 = vmatmul.mubr.bf16.gmra.mxu0 %v741
  %v785 = vpop.f32.mrf.mxu0
  %v786 = vadd.f32 %v729, %v785
  %v787 = vpop.f32.mrf.mxu0
  %v788 = vpop.f32.mrf.mxu0
  %v789 = vadd.f32 %v729, %v788
  %v790 = vpop.f32.mrf.mxu0
  %791 = vdwg.mxu0
  %v792 = vadd.f32 %v61, %v778
  %v793 = vadd.f32 %v62, %v781
  %v794 = vadd.f32 %v63, %v786
  %v795 = vadd.f32 %v64, %v789
  %v796 = vld [vmem:[%s6] sm:$0x1]
  %v797 = vld [vmem:[%s7] sm:$0x1]
  %v798 = vsel %vm67, %v792, 0.0
  %799 = vadd.xlane.f32.xlu0 %v798
  %v800 = vpop.xlane.xlu0 %799
  %v801 = vsel %vm67, %v793, 0.0
  %802 = vadd.xlane.f32.xlu0 %v801
  %v803 = vpop.xlane.xlu0 %802
  %v804 = vsel %vm67, %v794, 0.0
  %805 = vadd.xlane.f32.xlu0 %v804
  %v806 = vpop.xlane.xlu0 %805
  %v807 = vsel %vm67, %v795, 0.0
  %808 = vadd.xlane.f32.xlu0 %v807
  %v809 = vpop.xlane.xlu0 %808
  %v810 = vmul.f32 %v800, %v80
  %v811 = vmul.f32 %v803, %v80
  %v812 = vmul.f32 %v806, %v80
  %v813 = vmul.f32 %v809, %v80
  %v814 = vsub.f32 %v792, %v810
  %v815 = vsub.f32 %v793, %v811
  %v816 = vsub.f32 %v794, %v812
  %v817 = vsub.f32 %v795, %v813
  %v818 = vmul.f32 %v814, %v814
  %v819 = vmul.f32 %v815, %v815
  %v820 = vmul.f32 %v816, %v816
  %v821 = vmul.f32 %v817, %v817
  %v822 = vsel %vm67, %v818, 0.0
  %823 = vadd.xlane.f32.xlu0 %v822
  %v824 = vpop.xlane.xlu0 %823
  %v825 = vsel %vm67, %v819, 0.0
  %826 = vadd.xlane.f32.xlu0 %v825
  %v827 = vpop.xlane.xlu0 %826
  %v828 = vsel %vm67, %v820, 0.0
  %829 = vadd.xlane.f32.xlu0 %v828
  %v830 = vpop.xlane.xlu0 %829
  %v831 = vsel %vm67, %v821, 0.0
  %832 = vadd.xlane.f32.xlu0 %v831
  %v833 = vpop.xlane.xlu0 %832
  %v834 = vmul.f32 %v824, %v80
  %v835 = vmul.f32 %v827, %v80
  %v836 = vmul.f32 %v830, %v80
  %v837 = vmul.f32 %v833, %v80
  %v838 = vadd.f32 %v834, 1e-05
  %v839 = vadd.f32 %v835, 1e-05
  %v840 = vadd.f32 %v836, 1e-05
  %v841 = vadd.f32 %v837, 1e-05
  %v842 = vrsqrt.pop %v838
  %v843 = vrsqrt.pop %v839
  %v844 = vrsqrt.pop %v840
  %v845 = vrsqrt.pop %v841
  %v846 = vmul.f32 %v814, %v842
  %v847 = vmul.f32 %v815, %v843
  %v848 = vmul.f32 %v816, %v844
  %v849 = vmul.f32 %v817, %v845
  %v851 = vlaneseq
  %v852 = vshrl.u32 %v851, 7
  %v853 = vsub.s32 0, %v852
  %v854 = vrot.slane %v796, %v853
  %v856 = vmul.f32 %v846, %v854
  %v857 = vmul.f32 %v847, %v854
  %v858 = vmul.f32 %v848, %v854
  %v859 = vmul.f32 %v849, %v854
  %v861 = vlaneseq
  %v862 = vshrl.u32 %v861, 7
  %v863 = vsub.s32 0, %v862
  %v864 = vrot.slane %v797, %v863
  %v866 = vadd.f32 %v856, %v864
  %v867 = vadd.f32 %v857, %v864
  %v868 = vadd.f32 %v858, %v864
  %v869 = vadd.f32 %v859, %v864
  %v870 = vpack.c.bf16 %v867, %v866
  %v871 = vpack.c.bf16 %v869, %v868
  %v872 = vld [vmem:[%s8] sm:$0xf]
  %v873 = vld [vmem:[%s8 + $0x4] sm:$0xf]
  %v874 = vld [vmem:[%s9] sm:$0x1]
  %v876 = vlaneseq
  %v877 = vshrl.u32 %v876, 7
  %v878 = vsub.s32 0, %v877
  %v879 = vrot.slane %v874, %v878
  %v883 = vunpack.c.l.b16 %v872
  %v884 = vunpack.c.l.b16 %v873
  %v885 = vpack.c.b16 %v884, %v883
  %v888 = vsel %vm67, %v870, 0
  %v891 = vsel %vm67, %v871, 0
  %893 = vmatprep.subr.bf16.mxu0 0
  %894 = vmatpush1.bf16.msra.mxu0 0
  %895 = vmatprep.subr.bf16.mxu0 0
  %896 = vmatpush1.bf16.msra.mxu0 0
  %897 = vmatprep.subr.bf16.mxu0 0
  %898 = vmatpush1.bf16.msra.mxu0 0
  %899 = vmatprep.subr.bf16.mxu0 0
  %900 = vmatpush1.bf16.msra.mxu0 0
  %901 = vmatprep.subr.bf16.mxu0 0
  %902 = vmatpush1.bf16.msra.mxu0 0
  %903 = vmatprep.subr.bf16.mxu0 0
  %904 = vmatpush1.bf16.msra.mxu0 0
  %905 = vmatprep.subr.bf16.mxu0 0
  %906 = vmatpush1.bf16.msra.mxu0 0
  %907 = vmatprep.subr.bf16.mxu0 0
  %908 = vmatpush1.bf16.msra.mxu0 %v885
  %909 = vmatprep.subr.bf16.mxu0 0
  %910 = vmatpush2.bf16.msra.mxu0 0
  %911 = vmatprep.subr.bf16.mxu0 0
  %912 = vmatpush2.bf16.msra.mxu0 0
  %913 = vmatprep.subr.bf16.mxu0 0
  %914 = vmatpush2.bf16.msra.mxu0 0
  %915 = vmatprep.subr.bf16.mxu0 0
  %916 = vmatpush2.bf16.msra.mxu0 0
  %917 = vmatprep.subr.bf16.mxu0 0
  %918 = vmatpush2.bf16.msra.mxu0 0
  %919 = vmatprep.subr.bf16.mxu0 0
  %920 = vmatpush2.bf16.msra.mxu0 0
  %921 = vmatprep.subr.bf16.mxu0 0
  %922 = vmatpush2.bf16.msra.mxu0 0
  %923 = vmatprep.subr.bf16.mxu0 0
  %924 = vmatpush2.bf16.msra.mxu0 0
  %925 = vmatprep.mubr.bf16.mxu0 0
  %926 = vmatmul.mubr.bf16.gmra.mxu0 %v888
  %v927 = vpop.f32.mrf.mxu0
  %v928 = vadd.f32 %v879, %v927
  %v929 = vpop.f32.mrf.mxu0
  %v930 = vpop.f32.mrf.mxu0
  %v931 = vadd.f32 %v879, %v930
  %v932 = vpop.f32.mrf.mxu0
  %933 = vmatprep.mubr.bf16.mxu0 0
  %934 = vmatmul.mubr.bf16.gmra.mxu0 %v891
  %v935 = vpop.f32.mrf.mxu0
  %v936 = vadd.f32 %v879, %v935
  %v937 = vpop.f32.mrf.mxu0
  %v938 = vpop.f32.mrf.mxu0
  %v939 = vadd.f32 %v879, %v938
  %v940 = vpop.f32.mrf.mxu0
  %941 = vdwg.mxu0
  %v942 = vmul.f32 %v928, %v928
  %v943 = vmul.f32 %v931, %v931
  %v944 = vmul.f32 %v936, %v936
  %v945 = vmul.f32 %v939, %v939
  %v946 = vmul.f32 %v928, %v942
  %v947 = vmul.f32 %v931, %v943
  %v948 = vmul.f32 %v936, %v944
  %v949 = vmul.f32 %v939, %v945
  %v950 = vmul.f32 %v946, 0.044715
  %v951 = vmul.f32 %v947, 0.044715
  %v952 = vmul.f32 %v948, 0.044715
  %v953 = vmul.f32 %v949, 0.044715
  %v954 = vadd.f32 %v928, %v950
  %v955 = vadd.f32 %v931, %v951
  %v956 = vadd.f32 %v936, %v952
  %v957 = vadd.f32 %v939, %v953
  %v958 = vmul.f32 %v954, 0.7978846
  %v959 = vmul.f32 %v955, 0.7978846
  %v960 = vmul.f32 %v956, 0.7978846
  %v961 = vmul.f32 %v957, 0.7978846
  %v962 = vtanh.pop %v958
  %v963 = vtanh.pop %v959
  %v964 = vtanh.pop %v960
  %v965 = vtanh.pop %v961
  %v966 = vadd.f32 %v962, 1.0
  %v967 = vadd.f32 %v963, 1.0
  %v968 = vadd.f32 %v964, 1.0
  %v969 = vadd.f32 %v965, 1.0
  %v970 = vmul.f32 %v966, 0.5
  %v971 = vmul.f32 %v967, 0.5
  %v972 = vmul.f32 %v968, 0.5
  %v973 = vmul.f32 %v969, 0.5
  %v974 = vmul.f32 %v928, %v970
  %v975 = vmul.f32 %v931, %v971
  %v976 = vmul.f32 %v936, %v972
  %v977 = vmul.f32 %v939, %v973
  %v978 = vpack.c.bf16 %v975, %v974
  %v979 = vpack.c.bf16 %v977, %v976
  %v980 = vld [vmem:[%s10] sm:$0xf]
  %v981 = vld [vmem:[%s10 + $0x4] sm:$0xf]
  %v982 = vld [vmem:[%s10 + $0x8] sm:$0xf]
  %v983 = vld [vmem:[%s10 + $0xc] sm:$0xf]
  %v984 = vld [vmem:[%s10 + $0x10] sm:$0xf]
  %v985 = vld [vmem:[%s10 + $0x14] sm:$0xf]
  %v986 = vld [vmem:[%s10 + $0x18] sm:$0xf]
  %v987 = vld [vmem:[%s10 + $0x1c] sm:$0xf]
  %v996 = vunpack.c.l.b16 %v980
  %v997 = vunpack.c.l.b16 %v981
  %v998 = vunpack.c.l.b16 %v982
  %v999 = vunpack.c.l.b16 %v983
  %v1000 = vunpack.c.l.b16 %v984
  %v1001 = vunpack.c.l.b16 %v985
  %v1002 = vunpack.c.l.b16 %v986
  %v1003 = vunpack.c.l.b16 %v987
  %v1004 = vpack.c.b16 %v997, %v996
  %v1005 = vpack.c.b16 %v999, %v998
  %v1006 = vpack.c.b16 %v1001, %v1000
  %v1007 = vpack.c.b16 %v1003, %v1002
  %vm1012 = vcmask 523264
  %v1014 = vsel %vm1012, %v978, 0
  %v1017 = vsel %vm1012, %v979, 0
  %1019 = vmatprep.subr.bf16.mxu0 0
  %1020 = vmatpush1.bf16.msra.mxu0 0
  %1021 = vmatprep.subr.bf16.mxu0 0
  %1022 = vmatpush1.bf16.msra.mxu0 0
  %1023 = vmatprep.subr.bf16.mxu0 0
  %1024 = vmatpush1.bf16.msra.mxu0 0
  %1025 = vmatprep.subr.bf16.mxu0 0
  %1026 = vmatpush1.bf16.msra.mxu0 0
  %1027 = vmatprep.subr.bf16.mxu0 0
  %1028 = vmatpush1.bf16.msra.mxu0 %v1007
  %1029 = vmatprep.subr.bf16.mxu0 0
  %1030 = vmatpush1.bf16.msra.mxu0 %v1006
  %1031 = vmatprep.subr.bf16.mxu0 0
  %1032 = vmatpush1.bf16.msra.mxu0 %v1005
  %1033 = vmatprep.subr.bf16.mxu0 0
  %1034 = vmatpush1.bf16.msra.mxu0 %v1004
  %1035 = vmatprep.subr.bf16.mxu0 0
  %1036 = vmatpush2.bf16.msra.mxu0 0
  %1037 = vmatprep.subr.bf16.mxu0 0
  %1038 = vmatpush2.bf16.msra.mxu0 0
  %1039 = vmatprep.subr.bf16.mxu0 0
  %1040 = vmatpush2.bf16.msra.mxu0 0
  %1041 = vmatprep.subr.bf16.mxu0 0
  %1042 = vmatpush2.bf16.msra.mxu0 0
  %1043 = vmatprep.subr.bf16.mxu0 0
  %1044 = vmatpush2.bf16.msra.mxu0 0
  %1045 = vmatprep.subr.bf16.mxu0 0
  %1046 = vmatpush2.bf16.msra.mxu0 0
  %1047 = vmatprep.subr.bf16.mxu0 0
  %1048 = vmatpush2.bf16.msra.mxu0 0
  %1049 = vmatprep.subr.bf16.mxu0 0
  %1050 = vmatpush2.bf16.msra.mxu0 0
  %1051 = vmatprep.mubr.bf16.mxu0 0
  %1052 = vmatmul.mubr.bf16.gmra.mxu0 %v1014
  %v1053 = vpop.f32.mrf.mxu0
  %v1054 = vadd.f32 0.0, %v1053
  %v1055 = vpop.f32.mrf.mxu0
  %v1056 = vpop.f32.mrf.mxu0
  %v1057 = vadd.f32 0.0, %v1056
  %v1058 = vpop.f32.mrf.mxu0
  %1059 = vmatprep.mubr.bf16.mxu0 0
  %1060 = vmatmul.mubr.bf16.gmra.mxu0 %v1017
  %v1061 = vpop.f32.mrf.mxu0
  %v1062 = vadd.f32 0.0, %v1061
  %v1063 = vpop.f32.mrf.mxu0
  %v1064 = vpop.f32.mrf.mxu0
  %v1065 = vadd.f32 0.0, %v1064
  %v1066 = vpop.f32.mrf.mxu0
  %1067 = vdwg.mxu0
  %v1068 = vadd.f32 %v792, %v1054
  %v1069 = vadd.f32 %v793, %v1057
  %v1070 = vadd.f32 %v794, %v1062
  %v1071 = vadd.f32 %v795, %v1065
  %v1072 = vld [vmem:[%s11] sm:$0x1]
  %v1074 = vlaneseq
  %v1075 = vshrl.u32 %v1074, 7
  %v1076 = vsub.s32 0, %v1075
  %v1077 = vrot.slane %v1072, %v1076
  %v1079 = vadd.f32 %v1068, %v1077
  %v1080 = vadd.f32 %v1069, %v1077
  %v1081 = vadd.f32 %v1070, %v1077
  %v1082 = vadd.f32 %v1071, %v1077
  %1083 = vst.msk [vmem:[#allocation2] sm:$0xff] %vm67, %v1079
  %1084 = vst.msk [vmem:[#allocation2 + $0x8] sm:$0xff] %vm67, %v1080
  %1085 = vst.msk [vmem:[#allocation2 + $0x10] sm:$0xff] %vm67, %v1081
  %1086 = vst.msk [vmem:[#allocation2 + $0x18] sm:$0xff] %vm67, %v1082
  // Predicated region
  $region62: #{mae_forward.8} parent=0 // pred_check
    %p1087 = pneg %p48
  $region63: #{mae_forward.8} parent=0 // pred_check_branch
    %1089 = sbr.rel (%p1087) target = $region65
  $region64: #{mae_forward.8} parent=0 // pred_region
    %v1090 = vld [vmem:[%s12] sm:$0x1]
    %v1091 = vld [vmem:[%s13] sm:$0x1]
    %v1092 = vsel %vm67, %v1079, 0.0
    %1093 = vadd.xlane.f32.xlu0 %v1092
    %v1094 = vpop.xlane.xlu0 %1093
    %v1095 = vsel %vm67, %v1080, 0.0
    %1096 = vadd.xlane.f32.xlu0 %v1095
    %v1097 = vpop.xlane.xlu0 %1096
    %v1098 = vsel %vm67, %v1081, 0.0
    %1099 = vadd.xlane.f32.xlu0 %v1098
    %v1100 = vpop.xlane.xlu0 %1099
    %v1101 = vsel %vm67, %v1082, 0.0
    %1102 = vadd.xlane.f32.xlu0 %v1101
    %v1103 = vpop.xlane.xlu0 %1102
    %v1104 = vmul.f32 %v1094, %v80
    %v1105 = vmul.f32 %v1097, %v80
    %v1106 = vmul.f32 %v1100, %v80
    %v1107 = vmul.f32 %v1103, %v80
    %v1108 = vsub.f32 %v1079, %v1104
    %v1109 = vsub.f32 %v1080, %v1105
    %v1110 = vsub.f32 %v1081, %v1106
    %v1111 = vsub.f32 %v1082, %v1107
    %v1112 = vmul.f32 %v1108, %v1108
    %v1113 = vmul.f32 %v1109, %v1109
    %v1114 = vmul.f32 %v1110, %v1110
    %v1115 = vmul.f32 %v1111, %v1111
    %v1116 = vsel %vm67, %v1112, 0.0
    %1117 = vadd.xlane.f32.xlu0 %v1116
    %v1118 = vpop.xlane.xlu0 %1117
    %v1119 = vsel %vm67, %v1113, 0.0
    %1120 = vadd.xlane.f32.xlu0 %v1119
    %v1121 = vpop.xlane.xlu0 %1120
    %v1122 = vsel %vm67, %v1114, 0.0
    %1123 = vadd.xlane.f32.xlu0 %v1122
    %v1124 = vpop.xlane.xlu0 %1123
    %v1125 = vsel %vm67, %v1115, 0.0
    %1126 = vadd.xlane.f32.xlu0 %v1125
    %v1127 = vpop.xlane.xlu0 %1126
    %v1128 = vmul.f32 %v1118, %v80
    %v1129 = vmul.f32 %v1121, %v80
    %v1130 = vmul.f32 %v1124, %v80
    %v1131 = vmul.f32 %v1127, %v80
    %v1132 = vadd.f32 %v1128, 1e-05
    %v1133 = vadd.f32 %v1129, 1e-05
    %v1134 = vadd.f32 %v1130, 1e-05
    %v1135 = vadd.f32 %v1131, 1e-05
    %v1136 = vrsqrt.pop %v1132
    %v1137 = vrsqrt.pop %v1133
    %v1138 = vrsqrt.pop %v1134
    %v1139 = vrsqrt.pop %v1135
    %v1140 = vmul.f32 %v1108, %v1136
    %v1141 = vmul.f32 %v1109, %v1137
    %v1142 = vmul.f32 %v1110, %v1138
    %v1143 = vmul.f32 %v1111, %v1139
    %v1145 = vlaneseq
    %v1146 = vshrl.u32 %v1145, 7
    %v1147 = vsub.s32 0, %v1146
    %v1148 = vrot.slane %v1090, %v1147
    %v1150 = vmul.f32 %v1140, %v1148
    %v1151 = vmul.f32 %v1141, %v1148
    %v1152 = vmul.f32 %v1142, %v1148
    %v1153 = vmul.f32 %v1143, %v1148
    %v1155 = vlaneseq
    %v1156 = vshrl.u32 %v1155, 7
    %v1157 = vsub.s32 0, %v1156
    %v1158 = vrot.slane %v1091, %v1157
    %v1160 = vadd.f32 %v1150, %v1158
    %v1161 = vadd.f32 %v1151, %v1158
    %v1162 = vadd.f32 %v1152, %v1158
    %v1163 = vadd.f32 %v1153, %v1158
    %1164 = vst.msk [vmem:[%s14] sm:$0xff] %vm67, %v1160
    %1165 = vst.msk [vmem:[%s14 + $0x8] sm:$0xff] %vm67, %v1161
    %1166 = vst.msk [vmem:[%s14 + $0x10] sm:$0xff] %vm67, %v1162
    %1167 = vst.msk [vmem:[%s14 + $0x18] sm:$0xff] %vm67, %v1163
  $region65: #{mae_forward.8} parent=0 // pred_fallthru
    _
  // Predicated region
  $region66: #{mae_forward.8} parent=0 // pred_check
    _
  $region67: #{mae_forward.8} parent=0 // pred_check_branch
    %1169 = sbr.rel (0) target = $region69
  $region68: #{mae_forward.8} parent=0 // pred_region
    _
  $region69: #{mae_forward.8} parent=0 // pred_fallthru
    _
  // Predicated region
  $region70: #{mae_forward.8} parent=0 // pred_check
    _
  $region71: #{mae_forward.8} parent=0 // pred_check_branch
    %1171 = sbr.rel (0) target = $region73
  $region72: #{mae_forward.8} parent=0 // pred_region
    _
  $region73: #{mae_forward.8} parent=0 // pred_fallthru
    _

</llo_original>
